<compile_context>
chip_gen: v7x
topology: tpu7x:2x2x1
jax: 0.10.0
libtpu: 0.0.40
codegen_flags: <defaults>
</compile_context>

<pallas_src>
import functools

import jax
import jax.numpy as jnp
from jax.experimental import pallas as pl
from jax.experimental.pallas import tpu as pltpu


# --------------------------------------------------------------------------
# Generation-aware VMEM budget (v5e/v6e: 128 MiB physical -> ~96-100 MiB,
# v7x: 64 MiB physical -> ~48 MiB).
@functools.lru_cache(maxsize=None)
def _vmem_limit_bytes():
    cap = 128 * 1024 * 1024
    try:
        info = pltpu.get_tpu_info()
        cap = int(getattr(info, "vmem_capacity_bytes", cap))
    except Exception:
        pass
    return int(min(100 * 1024 * 1024, (cap * 3) // 4))


# ------------------------------ Pallas kernel ------------------------------
def _conv_bn_stats_kernel(x_ref, w_ref, mask_ref, y_ref, sum_ref, sq_ref,
                          acc_ref, *, dil, wp, rows_out):
    """Direct 3x3 dilated conv on a halo'd, row-flattened tile + BN partials.

    x_ref:    (1, rows_in, ck)   halo'd input rows, flattened (h, w) -> row
    w_ref:    (9, ck, Cout)      conv weight, taps on the leading axis
    mask_ref: (1, rows_out, 1)   1.0 for valid output pixels, 0.0 for the
                                 wrapped W columns / padded H rows
    y_ref:    (1, rows_out, Cout) raw (pre-BN) conv output tile
    sum_ref:  (1, 1, Cout)       per-tile per-channel sum of valid y
    sq_ref:   (1, 1, Cout)       per-tile per-channel sum of valid y*y
    acc_ref:  (rows_out, Cout)   f32 VMEM accumulator across the K (Cin) axis
    """
    k = pl.program_id(1)
    nk = pl.num_programs(1)

    @pl.when(k == 0)
    def _init():
        acc_ref[...] = jnp.zeros_like(acc_ref)

    contrib = None
    for dy in range(3):
        for dx in range(3):
            # Output flat-row r = h*wp + j needs input flat-row
            # r + dy*dil*wp + dx*dil -> a contiguous, static row window.
            s = dy * dil * wp + dx * dil
            xs = x_ref[0, s:s + rows_out, :]                 # (rows_out, ck)
            part = jnp.dot(xs, w_ref[dy * 3 + dx],
                           preferred_element_type=jnp.float32)
            contrib = part if contrib is None else contrib + part
    acc_ref[...] += contrib

    @pl.when(k == nk - 1)
    def _emit():
        y = acc_ref[...]                                     # f32
        y_ref[...] = y[None].astype(y_ref.dtype)
        ym = y * mask_ref[0]                                 # zero out invalid pixels
        sum_ref[...] = jnp.sum(ym, axis=0, keepdims=True)[None]
        sq_ref[...] = jnp.sum(ym * y, axis=0, keepdims=True)[None]


# ------------------------------ per-layer wrapper ---------------------------
def _conv_bn_relu_layer(x_nhwc, w_hwio, gamma, beta, *, padding, dilation,
                        tile_rows, k_chunk, use_bf16, eps=1e-5):
    """One ConvModule: conv3x3 (no bias) + BatchNorm2d(train) + ReLU, NHWC."""
    N, H, W, Cin = x_nhwc.shape
    Cout = w_hwio.shape[-1]
    p, d = padding, dilation
    Ho = H + 2 * p - 2 * d
    Wo = W + 2 * p - 2 * d
    assert Ho > 0 and Wo > 0, "output spatial size must be positive"
    Wp = W + 2 * p

    # --- row-tile geometry: tile_h output rows x full output width per step --
    tile_h = max(1, min(Ho, tile_rows // max(Wo, 1)))
    n_h = pl.cdiv(Ho, tile_h)
    Ho_pad = n_h * tile_h
    num_tiles = N * n_h
    halo_h = tile_h + 2 * d + 1       # +1 slack row keeps corner-tap slices in bounds
    rows_in = halo_h * Wp
    rows_out = tile_h * Wp            # full padded width; wrapped cols masked/cropped

    in_dtype = jnp.bfloat16 if use_bf16 else jnp.float32
    out_dtype = jnp.bfloat16 if use_bf16 else jnp.float32

    # --- channel (K) chunking so the resident weight fits the VMEM budget ----
    limit = _vmem_limit_bytes()
    w_bytes = 9 * Cin * Cout * (2 if use_bf16 else 4)
    if (k_chunk is not None and Cin % k_chunk == 0
            and (k_chunk == Cin or k_chunk % 128 == 0)):
        ck = k_chunk
    elif 2 * w_bytes <= limit // 2:
        ck = Cin                       # whole weight resident, fetched once
    elif Cin % 512 == 0:
        ck = 512
    elif Cin % 256 == 0:
        ck = 256
    elif Cin % 128 == 0:
        ck = 128
    else:
        ck = Cin
    num_k = Cin // ck

    # --- glue: pad + overlapping H-halo tiles, flattened to rows (one fused
    #     XLA pass; the previous layer's affine+ReLU fuses in here too) -------
    xp = jnp.pad(x_nhwc, ((0, 0), (p, p + (Ho_pad - Ho) + 1), (p, p), (0, 0)))
    tiles = jnp.stack(
        [xp[:, t * tile_h:t * tile_h + halo_h] for t in range(n_h)], axis=1)
    tiles = tiles.reshape(num_tiles, rows_in, Cin).astype(in_dtype)
    w9 = w_hwio.reshape(9, Cin, Cout).astype(in_dtype)

    # valid-pixel mask: drops wrapped W columns (j >= Wo) and H rows past Ho
    t_idx = jnp.tile(jnp.arange(n_h, dtype=jnp.int32), N)           # (num_tiles,)
    valid_h = jnp.minimum(tile_h, Ho - t_idx * tile_h)              # (num_tiles,)
    hh = jnp.arange(tile_h, dtype=jnp.int32)[None, :, None]
    jj = jnp.arange(Wp, dtype=jnp.int32)[None, None, :]
    mask = (hh < valid_h[:, None, None]) & (jj < Wo)
    mask = mask.astype(jnp.float32).reshape(num_tiles, rows_out, 1)

    kern = functools.partial(_conv_bn_stats_kernel,
                             dil=d, wp=Wp, rows_out=rows_out)

    y3, tsum, tsq = pl.pallas_call(
        kern,
        grid=(num_tiles, num_k),
        in_specs=[
            pl.BlockSpec((1, rows_in, ck), lambda i, k: (i, 0, k)),
            pl.BlockSpec((9, ck, Cout), lambda i, k: (0, k, 0)),
            pl.BlockSpec((1, rows_out, 1), lambda i, k: (i, 0, 0)),
        ],
        out_specs=(
            pl.BlockSpec((1, rows_out, Cout), lambda i, k: (i, 0, 0)),
            pl.BlockSpec((1, 1, Cout), lambda i, k: (i, 0, 0)),
            pl.BlockSpec((1, 1, Cout), lambda i, k: (i, 0, 0)),
        ),
        out_shape=(
            jax.ShapeDtypeStruct((num_tiles, rows_out, Cout), out_dtype),
            jax.ShapeDtypeStruct((num_tiles, 1, Cout), jnp.float32),
            jax.ShapeDtypeStruct((num_tiles, 1, Cout), jnp.float32),
        ),
        scratch_shapes=[pltpu.VMEM((rows_out, Cout), jnp.float32)],
        compiler_params=pltpu.CompilerParams(
            dimension_semantics=("parallel", "arbitrary"),
            vmem_limit_bytes=_vmem_limit_bytes(),
        ),
    )(tiles, w9, mask)

    # --- exact batch statistics: mean-shifted (Chan-style) combine of the
    #     per-tile partials, all in f32 on tiny vectors ----------------------
    cnt = float(N * Ho * Wo)
    tsum2 = tsum[:, 0, :]
    tsq2 = tsq[:, 0, :]
    n_i = (valid_h * Wo).astype(jnp.float32)[:, None]                # (num_tiles, 1)
    mean_i = tsum2 / n_i
    m2_i = tsq2 - tsum2 * mean_i
    mean = jnp.sum(tsum2, axis=0) / cnt
    m2 = jnp.sum(m2_i, axis=0) + jnp.sum(n_i * (mean_i - mean) ** 2, axis=0)
    var = jnp.maximum(m2 / cnt, 0.0)                                 # biased (training BN)
    scale = gamma * jax.lax.rsqrt(var + eps)
    shift = beta - mean * scale

    # --- crop wrapped columns / padded rows; affine + ReLU are elementwise and
    #     fuse into the next layer's halo glue (or the final transpose) -------
    y = y3.reshape(num_tiles, tile_h, Wp, Cout)[:, :, :Wo, :]
    y = y.reshape(N, Ho_pad, Wo, Cout)[:, :Ho]
    return jnp.maximum(y.astype(jnp.float32) * scale + shift, 0.0)


# ------------------------------- full module --------------------------------
def init_decoder_params(key, in_channels, out_channels):
    """Deterministic synthetic parameters matching the PyTorch module shapes."""
    params = []
    cins = (in_channels, out_channels)
    keys = jax.random.split(key, 2 * len(cins))
    for idx, cin in enumerate(cins):
        kw, kb = keys[2 * idx], keys[2 * idx + 1]
        fan_in = cin * 9
        # Conv2d weight (PyTorch [Cout, Cin, 3, 3]) stored as HWIO [3,3,Cin,Cout].
        w = jax.random.normal(kw, (3, 3, cin, out_channels),
                              dtype=jnp.float32) * (fan_in ** -0.5)
        g1, g2 = jax.random.split(kb)
        gamma = 1.0 + 0.1 * jax.random.normal(g1, (out_channels,), jnp.float32)
        beta = 0.1 * jax.random.normal(g2, (out_channels,), jnp.float32)
        params.append({"w": w, "gamma": gamma, "beta": beta})
    return params


def mmseg_fcn_decoder_forward(x_nchw, params, *, padding, dilation,
                              tile_rows=512, k_chunk=None,
                              use_bf16_operands=None):
    """Full MMSeg_FCN_Decoder forward. Input NCHW (PyTorch layout), output NCHW."""
    x = jnp.transpose(x_nchw, (0, 2, 3, 1)).astype(jnp.float32)   # NCHW -> NHWC
    for prm in params:
        cin = x.shape[-1]
        bf16 = (cin >= 512) if use_bf16_operands is None else use_bf16_operands
        x = _conv_bn_relu_layer(x, prm["w"], prm["gamma"], prm["beta"],
                                padding=padding, dilation=dilation,
                                tile_rows=tile_rows, k_chunk=k_chunk,
                                use_bf16=bf16)
    return jnp.transpose(x, (0, 3, 1, 2))                         # NHWC -> NCHW


# ------------------------------ pure-JAX reference --------------------------
def _ref_conv_module(x_nhwc, w, gamma, beta, *, padding, dilation):
    y = jax.lax.conv_general_dilated(
        x_nhwc, w, window_strides=(1, 1),
        padding=((padding, padding), (padding, padding)),
        rhs_dilation=(dilation, dilation),
        dimension_numbers=("NHWC", "HWIO", "NHWC"))
    mean = jnp.mean(y, axis=(0, 1, 2), keepdims=True)
    var = jnp.mean((y - mean) ** 2, axis=(0, 1, 2), keepdims=True)
    y = (y - mean) * jax.lax.rsqrt(var + 1e-5) * gamma + beta
    return jnp.maximum(y, 0.0)


def _ref_forward(x_nchw, params, *, padding, dilation):
    x = jnp.transpose(x_nchw, (0, 2, 3, 1))
    for p in params:
        x = _ref_conv_module(x, p["w"], p["gamma"], p["beta"],
                             padding=padding, dilation=dilation)
    return jnp.transpose(x, (0, 3, 1, 2))


if __name__ == "__main__":
    # Small cases exercising the main code paths:
    #  0) ragged H tiling (tile_h does not divide Ho -> masked padded rows)
    #  1) dilation=2 / padding=2, whole-image tiles
    #  2) Cin channel-chunked accumulation path (K grid axis, num_k=2)
    cases = [
        # (N, Cin, H, W, Cout, padding, dilation, tile_rows, k_chunk)
        (2, 4, 16, 16, 8, 1, 1, 96, None),
        (2, 4, 16, 16, 8, 2, 2, 512, None),
        (2, 256, 8, 8, 128, 1, 1, 64, 128),
    ]
    for idx, (N, CIN, H, W, COUT, P, D, TR, KC) in enumerate(cases):
        kx, kp = jax.random.split(jax.random.fold_in(jax.random.PRNGKey(0), idx))
        x = jax.random.normal(kx, (N, CIN, H, W), dtype=jnp.float32)
        params = init_decoder_params(kp, CIN, COUT)

        fwd = jax.jit(functools.partial(
            mmseg_fcn_decoder_forward, padding=P, dilation=D,
            tile_rows=TR, k_chunk=KC, use_bf16_operands=False))
        out = jax.block_until_ready(fwd(x, params))

        ref = _ref_forward(x, params, padding=P, dilation=D)
        assert out.shape == ref.shape == (N, COUT, H, W), (out.shape, ref.shape)
        max_err = float(jnp.max(jnp.abs(out - ref)))
        assert jnp.allclose(out, ref, atol=1e-3, rtol=1e-3), (idx, max_err)

    print("KERNEL_OK")
</pallas_src>

<mosaic_0001>
module attributes {stable_mosaic.version = 11 : i64} {
  func.func @_conv_bn_stats_kernel(%arg0: i32, %arg1: i32, %arg2: memref<1x162x4xf32, #tpu.memory_space<vmem>>, %arg3: memref<9x4x8xf32, #tpu.memory_space<vmem>>, %arg4: memref<1x108x1xf32, #tpu.memory_space<vmem>>, %arg5: memref<1x108x8xf32, #tpu.memory_space<vmem>>, %arg6: memref<1x1x8xf32, #tpu.memory_space<vmem>>, %arg7: memref<1x1x8xf32, #tpu.memory_space<vmem>>, %arg8: memref<108x8xf32, #tpu.memory_space<vmem>>) attributes {dimension_semantics = [#tpu.dimension_semantics<parallel>, #tpu.dimension_semantics<arbitrary>], iteration_bounds = array<i64: 6, 1>, scalar_prefetch = 0 : i64, scratch_operands = 1 : i64, tpu.core_type = #tpu.core_type<tc>, window_params = [{transform_indices = @transform_0, window_bounds = array<i64: 1, 162, 4>}, {transform_indices = @transform_1, window_bounds = array<i64: 9, 4, 8>}, {transform_indices = @transform_2, window_bounds = array<i64: 1, 108, 1>}, {transform_indices = @transform_3, window_bounds = array<i64: 1, 108, 8>}, {transform_indices = @transform_4, window_bounds = array<i64: 1, 1, 8>}, {transform_indices = @transform_5, window_bounds = array<i64: 1, 1, 8>}]} {
    %c0_i32 = arith.constant 0 : i32
    %0 = arith.cmpi eq, %arg1, %c0_i32 : i32
    %1 = arith.extui %0 : i1 to i32
    %c0_i32_0 = arith.constant 0 : i32
    %2 = arith.cmpi ne, %1, %c0_i32_0 : i32
    scf.if %2 {
      %cst_54 = arith.constant 0.000000e+00 : f32
      %62 = vector.broadcast %cst_54 : f32 to vector<108x8xf32>
      %c0_55 = arith.constant 0 : index
      %c0_56 = arith.constant 0 : index
      %63 = vector.load %arg8[%c0_55, %c0_56] : memref<108x8xf32, #tpu.memory_space<vmem>>, vector<108x8xf32>
      tpu.vector_store %arg8[%c0_55, %c0_56], %62 {strides = array<i32>} : memref<108x8xf32, #tpu.memory_space<vmem>>, vector<108x8xf32>,
    } else {
    }
    %c0 = arith.constant 0 : index
    %c0_1 = arith.constant 0 : index
    %c0_2 = arith.constant 0 : index
    %3 = vector.load %arg2[%c0, %c0_1, %c0_2] : memref<1x162x4xf32, #tpu.memory_space<vmem>>, vector<1x108x4xf32>
    %4 = vector.shape_cast %3 : vector<1x108x4xf32> to vector<108x4xf32>
    %c0_3 = arith.constant 0 : index
    %c0_4 = arith.constant 0 : index
    %c0_5 = arith.constant 0 : index
    %5 = vector.load %arg3[%c0_3, %c0_4, %c0_5] : memref<9x4x8xf32, #tpu.memory_space<vmem>>, vector<1x4x8xf32>
    %6 = vector.shape_cast %5 : vector<1x4x8xf32> to vector<4x8xf32>
    %cst = arith.constant dense<0.000000e+00> : vector<108x8xf32>
    %7 = tpu.matmul %4, %6, %cst {dimension_numbers = #tpu.dot_dimension_numbers<[1], [0], [0], [1], [0, 0, 1, 1], [], []>} : vector<108x4xf32>, vector<4x8xf32>, vector<108x8xf32> -> vector<108x8xf32>
    %c0_6 = arith.constant 0 : index
    %c1 = arith.constant 1 : index
    %c0_7 = arith.constant 0 : index
    %8 = vector.load %arg2[%c0_6, %c1, %c0_7] : memref<1x162x4xf32, #tpu.memory_space<vmem>>, vector<1x108x4xf32>
    %9 = vector.shape_cast %8 : vector<1x108x4xf32> to vector<108x4xf32>
    %c1_8 = arith.constant 1 : index
    %c0_9 = arith.constant 0 : index
    %c0_10 = arith.constant 0 : index
    %10 = vector.load %arg3[%c1_8, %c0_9, %c0_10] : memref<9x4x8xf32, #tpu.memory_space<vmem>>, vector<1x4x8xf32>
    %11 = vector.shape_cast %10 : vector<1x4x8xf32> to vector<4x8xf32>
    %cst_11 = arith.constant dense<0.000000e+00> : vector<108x8xf32>
    %12 = tpu.matmul %9, %11, %cst_11 {dimension_numbers = #tpu.dot_dimension_numbers<[1], [0], [0], [1], [0, 0, 1, 1], [], []>} : vector<108x4xf32>, vector<4x8xf32>, vector<108x8xf32> -> vector<108x8xf32>
    %13 = arith.addf %7, %12 : vector<108x8xf32>
    %c0_12 = arith.constant 0 : index
    %c2 = arith.constant 2 : index
    %c0_13 = arith.constant 0 : index
    %14 = vector.load %arg2[%c0_12, %c2, %c0_13] : memref<1x162x4xf32, #tpu.memory_space<vmem>>, vector<1x108x4xf32>
    %15 = vector.shape_cast %14 : vector<1x108x4xf32> to vector<108x4xf32>
    %c2_14 = arith.constant 2 : index
    %c0_15 = arith.constant 0 : index
    %c0_16 = arith.constant 0 : index
    %16 = vector.load %arg3[%c2_14, %c0_15, %c0_16] : memref<9x4x8xf32, #tpu.memory_space<vmem>>, vector<1x4x8xf32>
    %17 = vector.shape_cast %16 : vector<1x4x8xf32> to vector<4x8xf32>
    %cst_17 = arith.constant dense<0.000000e+00> : vector<108x8xf32>
    %18 = tpu.matmul %15, %17, %cst_17 {dimension_numbers = #tpu.dot_dimension_numbers<[1], [0], [0], [1], [0, 0, 1, 1], [], []>} : vector<108x4xf32>, vector<4x8xf32>, vector<108x8xf32> -> vector<108x8xf32>
    %19 = arith.addf %13, %18 : vector<108x8xf32>
    %c0_18 = arith.constant 0 : index
    %c18 = arith.constant 18 : index
    %c0_19 = arith.constant 0 : index
    %20 = vector.load %arg2[%c0_18, %c18, %c0_19] : memref<1x162x4xf32, #tpu.memory_space<vmem>>, vector<1x108x4xf32>
    %21 = vector.shape_cast %20 : vector<1x108x4xf32> to vector<108x4xf32>
    %c3 = arith.constant 3 : index
    %c0_20 = arith.constant 0 : index
    %c0_21 = arith.constant 0 : index
    %22 = vector.load %arg3[%c3, %c0_20, %c0_21] : memref<9x4x8xf32, #tpu.memory_space<vmem>>, vector<1x4x8xf32>
    %23 = vector.shape_cast %22 : vector<1x4x8xf32> to vector<4x8xf32>
    %cst_22 = arith.constant dense<0.000000e+00> : vector<108x8xf32>
    %24 = tpu.matmul %21, %23, %cst_22 {dimension_numbers = #tpu.dot_dimension_numbers<[1], [0], [0], [1], [0, 0, 1, 1], [], []>} : vector<108x4xf32>, vector<4x8xf32>, vector<108x8xf32> -> vector<108x8xf32>
    %25 = arith.addf %19, %24 : vector<108x8xf32>
    %c0_23 = arith.constant 0 : index
    %c19 = arith.constant 19 : index
    %c0_24 = arith.constant 0 : index
    %26 = vector.load %arg2[%c0_23, %c19, %c0_24] : memref<1x162x4xf32, #tpu.memory_space<vmem>>, vector<1x108x4xf32>
    %27 = vector.shape_cast %26 : vector<1x108x4xf32> to vector<108x4xf32>
    %c4 = arith.constant 4 : index
    %c0_25 = arith.constant 0 : index
    %c0_26 = arith.constant 0 : index
    %28 = vector.load %arg3[%c4, %c0_25, %c0_26] : memref<9x4x8xf32, #tpu.memory_space<vmem>>, vector<1x4x8xf32>
    %29 = vector.shape_cast %28 : vector<1x4x8xf32> to vector<4x8xf32>
    %cst_27 = arith.constant dense<0.000000e+00> : vector<108x8xf32>
    %30 = tpu.matmul %27, %29, %cst_27 {dimension_numbers = #tpu.dot_dimension_numbers<[1], [0], [0], [1], [0, 0, 1, 1], [], []>} : vector<108x4xf32>, vector<4x8xf32>, vector<108x8xf32> -> vector<108x8xf32>
    %31 = arith.addf %25, %30 : vector<108x8xf32>
    %c0_28 = arith.constant 0 : index
    %c20 = arith.constant 20 : index
    %c0_29 = arith.constant 0 : index
    %32 = vector.load %arg2[%c0_28, %c20, %c0_29] : memref<1x162x4xf32, #tpu.memory_space<vmem>>, vector<1x108x4xf32>
    %33 = vector.shape_cast %32 : vector<1x108x4xf32> to vector<108x4xf32>
    %c5 = arith.constant 5 : index
    %c0_30 = arith.constant 0 : index
    %c0_31 = arith.constant 0 : index
    %34 = vector.load %arg3[%c5, %c0_30, %c0_31] : memref<9x4x8xf32, #tpu.memory_space<vmem>>, vector<1x4x8xf32>
    %35 = vector.shape_cast %34 : vector<1x4x8xf32> to vector<4x8xf32>
    %cst_32 = arith.constant dense<0.000000e+00> : vector<108x8xf32>
    %36 = tpu.matmul %33, %35, %cst_32 {dimension_numbers = #tpu.dot_dimension_numbers<[1], [0], [0], [1], [0, 0, 1, 1], [], []>} : vector<108x4xf32>, vector<4x8xf32>, vector<108x8xf32> -> vector<108x8xf32>
    %37 = arith.addf %31, %36 : vector<108x8xf32>
    %c0_33 = arith.constant 0 : index
    %c36 = arith.constant 36 : index
    %c0_34 = arith.constant 0 : index
    %38 = vector.load %arg2[%c0_33, %c36, %c0_34] : memref<1x162x4xf32, #tpu.memory_space<vmem>>, vector<1x108x4xf32>
    %39 = vector.shape_cast %38 : vector<1x108x4xf32> to vector<108x4xf32>
    %c6 = arith.constant 6 : index
    %c0_35 = arith.constant 0 : index
    %c0_36 = arith.constant 0 : index
    %40 = vector.load %arg3[%c6, %c0_35, %c0_36] : memref<9x4x8xf32, #tpu.memory_space<vmem>>, vector<1x4x8xf32>
    %41 = vector.shape_cast %40 : vector<1x4x8xf32> to vector<4x8xf32>
    %cst_37 = arith.constant dense<0.000000e+00> : vector<108x8xf32>
    %42 = tpu.matmul %39, %41, %cst_37 {dimension_numbers = #tpu.dot_dimension_numbers<[1], [0], [0], [1], [0, 0, 1, 1], [], []>} : vector<108x4xf32>, vector<4x8xf32>, vector<108x8xf32> -> vector<108x8xf32>
    %43 = arith.addf %37, %42 : vector<108x8xf32>
    %c0_38 = arith.constant 0 : index
    %c37 = arith.constant 37 : index
    %c0_39 = arith.constant 0 : index
    %44 = vector.load %arg2[%c0_38, %c37, %c0_39] : memref<1x162x4xf32, #tpu.memory_space<vmem>>, vector<1x108x4xf32>
    %45 = vector.shape_cast %44 : vector<1x108x4xf32> to vector<108x4xf32>
    %c7 = arith.constant 7 : index
    %c0_40 = arith.constant 0 : index
    %c0_41 = arith.constant 0 : index
    %46 = vector.load %arg3[%c7, %c0_40, %c0_41] : memref<9x4x8xf32, #tpu.memory_space<vmem>>, vector<1x4x8xf32>
    %47 = vector.shape_cast %46 : vector<1x4x8xf32> to vector<4x8xf32>
    %cst_42 = arith.constant dense<0.000000e+00> : vector<108x8xf32>
    %48 = tpu.matmul %45, %47, %cst_42 {dimension_numbers = #tpu.dot_dimension_numbers<[1], [0], [0], [1], [0, 0, 1, 1], [], []>} : vector<108x4xf32>, vector<4x8xf32>, vector<108x8xf32> -> vector<108x8xf32>
    %49 = arith.addf %43, %48 : vector<108x8xf32>
    %c0_43 = arith.constant 0 : index
    %c38 = arith.constant 38 : index
    %c0_44 = arith.constant 0 : index
    %50 = vector.load %arg2[%c0_43, %c38, %c0_44] : memref<1x162x4xf32, #tpu.memory_space<vmem>>, vector<1x108x4xf32>
    %51 = vector.shape_cast %50 : vector<1x108x4xf32> to vector<108x4xf32>
    %c8 = arith.constant 8 : index
    %c0_45 = arith.constant 0 : index
    %c0_46 = arith.constant 0 : index
    %52 = vector.load %arg3[%c8, %c0_45, %c0_46] : memref<9x4x8xf32, #tpu.memory_space<vmem>>, vector<1x4x8xf32>
    %53 = vector.shape_cast %52 : vector<1x4x8xf32> to vector<4x8xf32>
    %cst_47 = arith.constant dense<0.000000e+00> : vector<108x8xf32>
    %54 = tpu.matmul %51, %53, %cst_47 {dimension_numbers = #tpu.dot_dimension_numbers<[1], [0], [0], [1], [0, 0, 1, 1], [], []>} : vector<108x4xf32>, vector<4x8xf32>, vector<108x8xf32> -> vector<108x8xf32>
    %55 = arith.addf %49, %54 : vector<108x8xf32>
    %c0_48 = arith.constant 0 : index
    %c0_49 = arith.constant 0 : index
    %56 = vector.load %arg8[%c0_48, %c0_49] : memref<108x8xf32, #tpu.memory_space<vmem>>, vector<108x8xf32>
    %57 = arith.addf %56, %55 : vector<108x8xf32>
    %c0_50 = arith.constant 0 : index
    %c0_51 = arith.constant 0 : index
    %58 = vector.load %arg8[%c0_50, %c0_51] : memref<108x8xf32, #tpu.memory_space<vmem>>, vector<108x8xf32>
    tpu.vector_store %arg8[%c0_50, %c0_51], %57 {strides = array<i32>} : memref<108x8xf32, #tpu.memory_space<vmem>>, vector<108x8xf32>,
    %c0_i32_52 = arith.constant 0 : i32
    %59 = arith.cmpi eq, %arg1, %c0_i32_52 : i32
    %60 = arith.extui %59 : i1 to i32
    %c0_i32_53 = arith.constant 0 : i32
    %61 = arith.cmpi ne, %60, %c0_i32_53 : i32
    scf.if %61 {
      %c0_54 = arith.constant 0 : index
      %c0_55 = arith.constant 0 : index
      %62 = vector.load %arg8[%c0_54, %c0_55] : memref<108x8xf32, #tpu.memory_space<vmem>>, vector<108x8xf32>
      %63 = vector.shape_cast %62 : vector<108x8xf32> to vector<1x108x8xf32>
      %c0_56 = arith.constant 0 : index
      %c0_57 = arith.constant 0 : index
      %c0_58 = arith.constant 0 : index
      %64 = vector.load %arg5[%c0_56, %c0_57, %c0_58] : memref<1x108x8xf32, #tpu.memory_space<vmem>>, vector<1x108x8xf32>
      tpu.vector_store %arg5[%c0_56, %c0_57, %c0_58], %63 {strides = array<i32>} : memref<1x108x8xf32, #tpu.memory_space<vmem>>, vector<1x108x8xf32>,
      %c0_59 = arith.constant 0 : index
      %c0_60 = arith.constant 0 : index
      %c0_61 = arith.constant 0 : index
      %65 = vector.load %arg4[%c0_59, %c0_60, %c0_61] : memref<1x108x1xf32, #tpu.memory_space<vmem>>, vector<1x108x1xf32>
      %66 = vector.shape_cast %65 : vector<1x108x1xf32> to vector<108x1xf32>
      %67 = vector.broadcast %66 : vector<108x1xf32> to vector<108x8xf32>
      %68 = arith.mulf %62, %67 : vector<108x8xf32>
      %cst_62 = arith.constant dense<0.000000e+00> : vector<8xf32>
      %69 = vector.multi_reduction <add>, %68, %cst_62 [0] : vector<108x8xf32> to vector<8xf32>
      %70 = vector.shape_cast %69 : vector<8xf32> to vector<1x8xf32>
      %71 = vector.shape_cast %70 : vector<1x8xf32> to vector<1x1x8xf32>
      %c0_63 = arith.constant 0 : index
      %c0_64 = arith.constant 0 : index
      %c0_65 = arith.constant 0 : index
      %72 = vector.load %arg6[%c0_63, %c0_64, %c0_65] : memref<1x1x8xf32, #tpu.memory_space<vmem>>, vector<1x1x8xf32>
      tpu.vector_store %arg6[%c0_63, %c0_64, %c0_65], %71 {strides = array<i32>} : memref<1x1x8xf32, #tpu.memory_space<vmem>>, vector<1x1x8xf32>,
      %73 = arith.mulf %68, %62 : vector<108x8xf32>
      %cst_66 = arith.constant dense<0.000000e+00> : vector<8xf32>
      %74 = vector.multi_reduction <add>, %73, %cst_66 [0] : vector<108x8xf32> to vector<8xf32>
      %75 = vector.shape_cast %74 : vector<8xf32> to vector<1x8xf32>
      %76 = vector.shape_cast %75 : vector<1x8xf32> to vector<1x1x8xf32>
      %c0_67 = arith.constant 0 : index
      %c0_68 = arith.constant 0 : index
      %c0_69 = arith.constant 0 : index
      %77 = vector.load %arg7[%c0_67, %c0_68, %c0_69] : memref<1x1x8xf32, #tpu.memory_space<vmem>>, vector<1x1x8xf32>
      tpu.vector_store %arg7[%c0_67, %c0_68, %c0_69], %76 {strides = array<i32>} : memref<1x1x8xf32, #tpu.memory_space<vmem>>, vector<1x1x8xf32>,
    } else {
    }
    return
  }
  func.func @transform_0(%arg0: i32, %arg1: i32) -> (i32, i32, i32) {
    %c0_i32 = arith.constant 0 : i32
    %c0_i32_0 = arith.constant 0 : i32
    return %arg0, %c0_i32, %arg1 : i32, i32, i32
  }
  func.func @transform_1(%arg0: i32, %arg1: i32) -> (i32, i32, i32) {
    %c0_i32 = arith.constant 0 : i32
    %c0_i32_0 = arith.constant 0 : i32
    %c0_i32_1 = arith.constant 0 : i32
    return %c0_i32, %arg1, %c0_i32_0 : i32, i32, i32
  }
  func.func @transform_2(%arg0: i32, %arg1: i32) -> (i32, i32, i32) {
    %c0_i32 = arith.constant 0 : i32
    %c0_i32_0 = arith.constant 0 : i32
    %c0_i32_1 = arith.constant 0 : i32
    return %arg0, %c0_i32, %c0_i32_0 : i32, i32, i32
  }
  func.func @transform_3(%arg0: i32, %arg1: i32) -> (i32, i32, i32) {
    %c0_i32 = arith.constant 0 : i32
    %c0_i32_0 = arith.constant 0 : i32
    %c0_i32_1 = arith.constant 0 : i32
    return %arg0, %c0_i32, %c0_i32_0 : i32, i32, i32
  }
  func.func @transform_4(%arg0: i32, %arg1: i32) -> (i32, i32, i32) {
    %c0_i32 = arith.constant 0 : i32
    %c0_i32_0 = arith.constant 0 : i32
    %c0_i32_1 = arith.constant 0 : i32
    return %arg0, %c0_i32, %c0_i32_0 : i32, i32, i32
  }
  func.func @transform_5(%arg0: i32, %arg1: i32) -> (i32, i32, i32) {
    %c0_i32 = arith.constant 0 : i32
    %c0_i32_0 = arith.constant 0 : i32
    %c0_i32_1 = arith.constant 0 : i32
    return %arg0, %c0_i32, %c0_i32_0 : i32, i32, i32
  }
}

module attributes {stable_mosaic.version = 11 : i64} {
  func.func @_conv_bn_stats_kernel(%arg0: i32, %arg1: i32, %arg2: memref<1x162x8xf32, #tpu.memory_space<vmem>>, %arg3: memref<9x8x8xf32, #tpu.memory_space<vmem>>, %arg4: memref<1x108x1xf32, #tpu.memory_space<vmem>>, %arg5: memref<1x108x8xf32, #tpu.memory_space<vmem>>, %arg6: memref<1x1x8xf32, #tpu.memory_space<vmem>>, %arg7: memref<1x1x8xf32, #tpu.memory_space<vmem>>, %arg8: memref<108x8xf32, #tpu.memory_space<vmem>>) attributes {dimension_semantics = [#tpu.dimension_semantics<parallel>, #tpu.dimension_semantics<arbitrary>], iteration_bounds = array<i64: 6, 1>, scalar_prefetch = 0 : i64, scratch_operands = 1 : i64, tpu.core_type = #tpu.core_type<tc>, window_params = [{transform_indices = @transform_0, window_bounds = array<i64: 1, 162, 8>}, {transform_indices = @transform_1, window_bounds = array<i64: 9, 8, 8>}, {transform_indices = @transform_2, window_bounds = array<i64: 1, 108, 1>}, {transform_indices = @transform_3, window_bounds = array<i64: 1, 108, 8>}, {transform_indices = @transform_4, window_bounds = array<i64: 1, 1, 8>}, {transform_indices = @transform_5, window_bounds = array<i64: 1, 1, 8>}]} {
    %c0_i32 = arith.constant 0 : i32
    %0 = arith.cmpi eq, %arg1, %c0_i32 : i32
    %1 = arith.extui %0 : i1 to i32
    %c0_i32_0 = arith.constant 0 : i32
    %2 = arith.cmpi ne, %1, %c0_i32_0 : i32
    scf.if %2 {
      %cst_54 = arith.constant 0.000000e+00 : f32
      %62 = vector.broadcast %cst_54 : f32 to vector<108x8xf32>
      %c0_55 = arith.constant 0 : index
      %c0_56 = arith.constant 0 : index
      %63 = vector.load %arg8[%c0_55, %c0_56] : memref<108x8xf32, #tpu.memory_space<vmem>>, vector<108x8xf32>
      tpu.vector_store %arg8[%c0_55, %c0_56], %62 {strides = array<i32>} : memref<108x8xf32, #tpu.memory_space<vmem>>, vector<108x8xf32>,
    } else {
    }
    %c0 = arith.constant 0 : index
    %c0_1 = arith.constant 0 : index
    %c0_2 = arith.constant 0 : index
    %3 = vector.load %arg2[%c0, %c0_1, %c0_2] : memref<1x162x8xf32, #tpu.memory_space<vmem>>, vector<1x108x8xf32>
    %4 = vector.shape_cast %3 : vector<1x108x8xf32> to vector<108x8xf32>
    %c0_3 = arith.constant 0 : index
    %c0_4 = arith.constant 0 : index
    %c0_5 = arith.constant 0 : index
    %5 = vector.load %arg3[%c0_3, %c0_4, %c0_5] : memref<9x8x8xf32, #tpu.memory_space<vmem>>, vector<1x8x8xf32>
    %6 = vector.shape_cast %5 : vector<1x8x8xf32> to vector<8x8xf32>
    %cst = arith.constant dense<0.000000e+00> : vector<108x8xf32>
    %7 = tpu.matmul %4, %6, %cst {dimension_numbers = #tpu.dot_dimension_numbers<[1], [0], [0], [1], [0, 0, 1, 1], [], []>} : vector<108x8xf32>, vector<8x8xf32>, vector<108x8xf32> -> vector<108x8xf32>
    %c0_6 = arith.constant 0 : index
    %c1 = arith.constant 1 : index
    %c0_7 = arith.constant 0 : index
    %8 = vector.load %arg2[%c0_6, %c1, %c0_7] : memref<1x162x8xf32, #tpu.memory_space<vmem>>, vector<1x108x8xf32>
    %9 = vector.shape_cast %8 : vector<1x108x8xf32> to vector<108x8xf32>
    %c1_8 = arith.constant 1 : index
    %c0_9 = arith.constant 0 : index
    %c0_10 = arith.constant 0 : index
    %10 = vector.load %arg3[%c1_8, %c0_9, %c0_10] : memref<9x8x8xf32, #tpu.memory_space<vmem>>, vector<1x8x8xf32>
    %11 = vector.shape_cast %10 : vector<1x8x8xf32> to vector<8x8xf32>
    %cst_11 = arith.constant dense<0.000000e+00> : vector<108x8xf32>
    %12 = tpu.matmul %9, %11, %cst_11 {dimension_numbers = #tpu.dot_dimension_numbers<[1], [0], [0], [1], [0, 0, 1, 1], [], []>} : vector<108x8xf32>, vector<8x8xf32>, vector<108x8xf32> -> vector<108x8xf32>
    %13 = arith.addf %7, %12 : vector<108x8xf32>
    %c0_12 = arith.constant 0 : index
    %c2 = arith.constant 2 : index
    %c0_13 = arith.constant 0 : index
    %14 = vector.load %arg2[%c0_12, %c2, %c0_13] : memref<1x162x8xf32, #tpu.memory_space<vmem>>, vector<1x108x8xf32>
    %15 = vector.shape_cast %14 : vector<1x108x8xf32> to vector<108x8xf32>
    %c2_14 = arith.constant 2 : index
    %c0_15 = arith.constant 0 : index
    %c0_16 = arith.constant 0 : index
    %16 = vector.load %arg3[%c2_14, %c0_15, %c0_16] : memref<9x8x8xf32, #tpu.memory_space<vmem>>, vector<1x8x8xf32>
    %17 = vector.shape_cast %16 : vector<1x8x8xf32> to vector<8x8xf32>
    %cst_17 = arith.constant dense<0.000000e+00> : vector<108x8xf32>
    %18 = tpu.matmul %15, %17, %cst_17 {dimension_numbers = #tpu.dot_dimension_numbers<[1], [0], [0], [1], [0, 0, 1, 1], [], []>} : vector<108x8xf32>, vector<8x8xf32>, vector<108x8xf32> -> vector<108x8xf32>
    %19 = arith.addf %13, %18 : vector<108x8xf32>
    %c0_18 = arith.constant 0 : index
    %c18 = arith.constant 18 : index
    %c0_19 = arith.constant 0 : index
    %20 = vector.load %arg2[%c0_18, %c18, %c0_19] : memref<1x162x8xf32, #tpu.memory_space<vmem>>, vector<1x108x8xf32>
    %21 = vector.shape_cast %20 : vector<1x108x8xf32> to vector<108x8xf32>
    %c3 = arith.constant 3 : index
    %c0_20 = arith.constant 0 : index
    %c0_21 = arith.constant 0 : index
    %22 = vector.load %arg3[%c3, %c0_20, %c0_21] : memref<9x8x8xf32, #tpu.memory_space<vmem>>, vector<1x8x8xf32>
    %23 = vector.shape_cast %22 : vector<1x8x8xf32> to vector<8x8xf32>
    %cst_22 = arith.constant dense<0.000000e+00> : vector<108x8xf32>
    %24 = tpu.matmul %21, %23, %cst_22 {dimension_numbers = #tpu.dot_dimension_numbers<[1], [0], [0], [1], [0, 0, 1, 1], [], []>} : vector<108x8xf32>, vector<8x8xf32>, vector<108x8xf32> -> vector<108x8xf32>
    %25 = arith.addf %19, %24 : vector<108x8xf32>
    %c0_23 = arith.constant 0 : index
    %c19 = arith.constant 19 : index
    %c0_24 = arith.constant 0 : index
    %26 = vector.load %arg2[%c0_23, %c19, %c0_24] : memref<1x162x8xf32, #tpu.memory_space<vmem>>, vector<1x108x8xf32>
    %27 = vector.shape_cast %26 : vector<1x108x8xf32> to vector<108x8xf32>
    %c4 = arith.constant 4 : index
    %c0_25 = arith.constant 0 : index
    %c0_26 = arith.constant 0 : index
    %28 = vector.load %arg3[%c4, %c0_25, %c0_26] : memref<9x8x8xf32, #tpu.memory_space<vmem>>, vector<1x8x8xf32>
    %29 = vector.shape_cast %28 : vector<1x8x8xf32> to vector<8x8xf32>
    %cst_27 = arith.constant dense<0.000000e+00> : vector<108x8xf32>
    %30 = tpu.matmul %27, %29, %cst_27 {dimension_numbers = #tpu.dot_dimension_numbers<[1], [0], [0], [1], [0, 0, 1, 1], [], []>} : vector<108x8xf32>, vector<8x8xf32>, vector<108x8xf32> -> vector<108x8xf32>
    %31 = arith.addf %25, %30 : vector<108x8xf32>
    %c0_28 = arith.constant 0 : index
    %c20 = arith.constant 20 : index
    %c0_29 = arith.constant 0 : index
    %32 = vector.load %arg2[%c0_28, %c20, %c0_29] : memref<1x162x8xf32, #tpu.memory_space<vmem>>, vector<1x108x8xf32>
    %33 = vector.shape_cast %32 : vector<1x108x8xf32> to vector<108x8xf32>
    %c5 = arith.constant 5 : index
    %c0_30 = arith.constant 0 : index
    %c0_31 = arith.constant 0 : index
    %34 = vector.load %arg3[%c5, %c0_30, %c0_31] : memref<9x8x8xf32, #tpu.memory_space<vmem>>, vector<1x8x8xf32>
    %35 = vector.shape_cast %34 : vector<1x8x8xf32> to vector<8x8xf32>
    %cst_32 = arith.constant dense<0.000000e+00> : vector<108x8xf32>
    %36 = tpu.matmul %33, %35, %cst_32 {dimension_numbers = #tpu.dot_dimension_numbers<[1], [0], [0], [1], [0, 0, 1, 1], [], []>} : vector<108x8xf32>, vector<8x8xf32>, vector<108x8xf32> -> vector<108x8xf32>
    %37 = arith.addf %31, %36 : vector<108x8xf32>
    %c0_33 = arith.constant 0 : index
    %c36 = arith.constant 36 : index
    %c0_34 = arith.constant 0 : index
    %38 = vector.load %arg2[%c0_33, %c36, %c0_34] : memref<1x162x8xf32, #tpu.memory_space<vmem>>, vector<1x108x8xf32>
    %39 = vector.shape_cast %38 : vector<1x108x8xf32> to vector<108x8xf32>
    %c6 = arith.constant 6 : index
    %c0_35 = arith.constant 0 : index
    %c0_36 = arith.constant 0 : index
    %40 = vector.load %arg3[%c6, %c0_35, %c0_36] : memref<9x8x8xf32, #tpu.memory_space<vmem>>, vector<1x8x8xf32>
    %41 = vector.shape_cast %40 : vector<1x8x8xf32> to vector<8x8xf32>
    %cst_37 = arith.constant dense<0.000000e+00> : vector<108x8xf32>
    %42 = tpu.matmul %39, %41, %cst_37 {dimension_numbers = #tpu.dot_dimension_numbers<[1], [0], [0], [1], [0, 0, 1, 1], [], []>} : vector<108x8xf32>, vector<8x8xf32>, vector<108x8xf32> -> vector<108x8xf32>
    %43 = arith.addf %37, %42 : vector<108x8xf32>
    %c0_38 = arith.constant 0 : index
    %c37 = arith.constant 37 : index
    %c0_39 = arith.constant 0 : index
    %44 = vector.load %arg2[%c0_38, %c37, %c0_39] : memref<1x162x8xf32, #tpu.memory_space<vmem>>, vector<1x108x8xf32>
    %45 = vector.shape_cast %44 : vector<1x108x8xf32> to vector<108x8xf32>
    %c7 = arith.constant 7 : index
    %c0_40 = arith.constant 0 : index
    %c0_41 = arith.constant 0 : index
    %46 = vector.load %arg3[%c7, %c0_40, %c0_41] : memref<9x8x8xf32, #tpu.memory_space<vmem>>, vector<1x8x8xf32>
    %47 = vector.shape_cast %46 : vector<1x8x8xf32> to vector<8x8xf32>
    %cst_42 = arith.constant dense<0.000000e+00> : vector<108x8xf32>
    %48 = tpu.matmul %45, %47, %cst_42 {dimension_numbers = #tpu.dot_dimension_numbers<[1], [0], [0], [1], [0, 0, 1, 1], [], []>} : vector<108x8xf32>, vector<8x8xf32>, vector<108x8xf32> -> vector<108x8xf32>
    %49 = arith.addf %43, %48 : vector<108x8xf32>
    %c0_43 = arith.constant 0 : index
    %c38 = arith.constant 38 : index
    %c0_44 = arith.constant 0 : index
    %50 = vector.load %arg2[%c0_43, %c38, %c0_44] : memref<1x162x8xf32, #tpu.memory_space<vmem>>, vector<1x108x8xf32>
    %51 = vector.shape_cast %50 : vector<1x108x8xf32> to vector<108x8xf32>
    %c8 = arith.constant 8 : index
    %c0_45 = arith.constant 0 : index
    %c0_46 = arith.constant 0 : index
    %52 = vector.load %arg3[%c8, %c0_45, %c0_46] : memref<9x8x8xf32, #tpu.memory_space<vmem>>, vector<1x8x8xf32>
    %53 = vector.shape_cast %52 : vector<1x8x8xf32> to vector<8x8xf32>
    %cst_47 = arith.constant dense<0.000000e+00> : vector<108x8xf32>
    %54 = tpu.matmul %51, %53, %cst_47 {dimension_numbers = #tpu.dot_dimension_numbers<[1], [0], [0], [1], [0, 0, 1, 1], [], []>} : vector<108x8xf32>, vector<8x8xf32>, vector<108x8xf32> -> vector<108x8xf32>
    %55 = arith.addf %49, %54 : vector<108x8xf32>
    %c0_48 = arith.constant 0 : index
    %c0_49 = arith.constant 0 : index
    %56 = vector.load %arg8[%c0_48, %c0_49] : memref<108x8xf32, #tpu.memory_space<vmem>>, vector<108x8xf32>
    %57 = arith.addf %56, %55 : vector<108x8xf32>
    %c0_50 = arith.constant 0 : index
    %c0_51 = arith.constant 0 : index
    %58 = vector.load %arg8[%c0_50, %c0_51] : memref<108x8xf32, #tpu.memory_space<vmem>>, vector<108x8xf32>
    tpu.vector_store %arg8[%c0_50, %c0_51], %57 {strides = array<i32>} : memref<108x8xf32, #tpu.memory_space<vmem>>, vector<108x8xf32>,
    %c0_i32_52 = arith.constant 0 : i32
    %59 = arith.cmpi eq, %arg1, %c0_i32_52 : i32
    %60 = arith.extui %59 : i1 to i32
    %c0_i32_53 = arith.constant 0 : i32
    %61 = arith.cmpi ne, %60, %c0_i32_53 : i32
    scf.if %61 {
      %c0_54 = arith.constant 0 : index
      %c0_55 = arith.constant 0 : index
      %62 = vector.load %arg8[%c0_54, %c0_55] : memref<108x8xf32, #tpu.memory_space<vmem>>, vector<108x8xf32>
      %63 = vector.shape_cast %62 : vector<108x8xf32> to vector<1x108x8xf32>
      %c0_56 = arith.constant 0 : index
      %c0_57 = arith.constant 0 : index
      %c0_58 = arith.constant 0 : index
      %64 = vector.load %arg5[%c0_56, %c0_57, %c0_58] : memref<1x108x8xf32, #tpu.memory_space<vmem>>, vector<1x108x8xf32>
      tpu.vector_store %arg5[%c0_56, %c0_57, %c0_58], %63 {strides = array<i32>} : memref<1x108x8xf32, #tpu.memory_space<vmem>>, vector<1x108x8xf32>,
      %c0_59 = arith.constant 0 : index
      %c0_60 = arith.constant 0 : index
      %c0_61 = arith.constant 0 : index
      %65 = vector.load %arg4[%c0_59, %c0_60, %c0_61] : memref<1x108x1xf32, #tpu.memory_space<vmem>>, vector<1x108x1xf32>
      %66 = vector.shape_cast %65 : vector<1x108x1xf32> to vector<108x1xf32>
      %67 = vector.broadcast %66 : vector<108x1xf32> to vector<108x8xf32>
      %68 = arith.mulf %62, %67 : vector<108x8xf32>
      %cst_62 = arith.constant dense<0.000000e+00> : vector<8xf32>
      %69 = vector.multi_reduction <add>, %68, %cst_62 [0] : vector<108x8xf32> to vector<8xf32>
      %70 = vector.shape_cast %69 : vector<8xf32> to vector<1x8xf32>
      %71 = vector.shape_cast %70 : vector<1x8xf32> to vector<1x1x8xf32>
      %c0_63 = arith.constant 0 : index
      %c0_64 = arith.constant 0 : index
      %c0_65 = arith.constant 0 : index
      %72 = vector.load %arg6[%c0_63, %c0_64, %c0_65] : memref<1x1x8xf32, #tpu.memory_space<vmem>>, vector<1x1x8xf32>
      tpu.vector_store %arg6[%c0_63, %c0_64, %c0_65], %71 {strides = array<i32>} : memref<1x1x8xf32, #tpu.memory_space<vmem>>, vector<1x1x8xf32>,
      %73 = arith.mulf %68, %62 : vector<108x8xf32>
      %cst_66 = arith.constant dense<0.000000e+00> : vector<8xf32>
      %74 = vector.multi_reduction <add>, %73, %cst_66 [0] : vector<108x8xf32> to vector<8xf32>
      %75 = vector.shape_cast %74 : vector<8xf32> to vector<1x8xf32>
      %76 = vector.shape_cast %75 : vector<1x8xf32> to vector<1x1x8xf32>
      %c0_67 = arith.constant 0 : index
      %c0_68 = arith.constant 0 : index
      %c0_69 = arith.constant 0 : index
      %77 = vector.load %arg7[%c0_67, %c0_68, %c0_69] : memref<1x1x8xf32, #tpu.memory_space<vmem>>, vector<1x1x8xf32>
      tpu.vector_store %arg7[%c0_67, %c0_68, %c0_69], %76 {strides = array<i32>} : memref<1x1x8xf32, #tpu.memory_space<vmem>>, vector<1x1x8xf32>,
    } else {
    }
    return
  }
  func.func @transform_0(%arg0: i32, %arg1: i32) -> (i32, i32, i32) {
    %c0_i32 = arith.constant 0 : i32
    %c0_i32_0 = arith.constant 0 : i32
    return %arg0, %c0_i32, %arg1 : i32, i32, i32
  }
  func.func @transform_1(%arg0: i32, %arg1: i32) -> (i32, i32, i32) {
    %c0_i32 = arith.constant 0 : i32
    %c0_i32_0 = arith.constant 0 : i32
    %c0_i32_1 = arith.constant 0 : i32
    return %c0_i32, %arg1, %c0_i32_0 : i32, i32, i32
  }
  func.func @transform_2(%arg0: i32, %arg1: i32) -> (i32, i32, i32) {
    %c0_i32 = arith.constant 0 : i32
    %c0_i32_0 = arith.constant 0 : i32
    %c0_i32_1 = arith.constant 0 : i32
    return %arg0, %c0_i32, %c0_i32_0 : i32, i32, i32
  }
  func.func @transform_3(%arg0: i32, %arg1: i32) -> (i32, i32, i32) {
    %c0_i32 = arith.constant 0 : i32
    %c0_i32_0 = arith.constant 0 : i32
    %c0_i32_1 = arith.constant 0 : i32
    return %arg0, %c0_i32, %c0_i32_0 : i32, i32, i32
  }
  func.func @transform_4(%arg0: i32, %arg1: i32) -> (i32, i32, i32) {
    %c0_i32 = arith.constant 0 : i32
    %c0_i32_0 = arith.constant 0 : i32
    %c0_i32_1 = arith.constant 0 : i32
    return %arg0, %c0_i32, %c0_i32_0 : i32, i32, i32
  }
  func.func @transform_5(%arg0: i32, %arg1: i32) -> (i32, i32, i32) {
    %c0_i32 = arith.constant 0 : i32
    %c0_i32_0 = arith.constant 0 : i32
    %c0_i32_1 = arith.constant 0 : i32
    return %arg0, %c0_i32, %c0_i32_0 : i32, i32, i32
  }
}

</mosaic_0001>

<llo_original>
// kernel: mmseg_fcn_decoder_forward.3
$region0: #{mmseg_fcn_decoder_forward.3}
  #allocation0 [shape = 'u32[]', space=smem, size = 0x4, offset = 0x4, fixed_abs, tag = 'smem constant byte address 0x4 - core index']
  #allocation1 [shape = 'u32[144,128]{1,0:T(1,128)}', space=vmem, size = 0x12000, scoped, tag = 'internal scratch']
  #allocation2 [shape = 'f32[108,8]{1,0:T(8,128)}', space=vmem, size = 0xe000, scoped, tag = 'scratch operand']
  %s0 = inlined_call_operand.hbm [shape: f32[6,162,8], index: 0, kind: input, shape index: {}]
  %s1 = inlined_call_operand.hbm [shape: f32[9,8,8], index: 1, kind: input, shape index: {}]
  %s2 = inlined_call_operand.hbm [shape: f32[6,108,1], index: 2, kind: input, shape index: {}]
  %s3 = inlined_call_operand.hbm [shape: f32[6,108,8], index: 3, kind: output, shape index: {0}]
  %s4 = inlined_call_operand.hbm [shape: f32[6,1,8], index: 4, kind: output, shape index: {1}]
  %s5 = inlined_call_operand.hbm [shape: f32[6,1,8], index: 5, kind: output, shape index: {2}]
  %6 = xla_tuple %s3, %s4, %s5
  %s7 = sld [smem:[#allocation0]]
  $region81: #{mmseg_fcn_decoder_forward.3} parent=0
    _
  %s9 = ssub.s32 1, %s7
  %s10 = scalar_select 0, %s9, %s7
  $region1: #{mmseg_fcn_decoder_forward.3} parent=0
    #allocation3 [shape = 'u8[172032]{0}', space=vmem, size = 0x2a000, scoped, tag = 'input window, operand 0']
    #allocation4 [shape = 's32[2]{0}', space=sflag, size = 0x8, scoped, tag = 'scoped memory for mmseg_fcn_decoder_forward.3']
    #allocation5 [shape = 's32[2]{0}', space=sflag, size = 0x8, scoped, tag = 'scoped memory for mmseg_fcn_decoder_forward.3']
    #allocation6 [shape = 'u8[36864]{0}', space=vmem, size = 0x9000, scoped, tag = 'input window, operand 1, single buffered']
    #allocation7 [shape = 's32[1]{0}', space=sflag, size = 0x4, scoped, tag = 'scoped memory for mmseg_fcn_decoder_forward.3']
    #allocation8 [shape = 'u8[114688]{0}', space=vmem, size = 0x1c000, scoped, tag = 'input window, operand 2']
    #allocation9 [shape = 'u8[114688]{0}', space=vmem, size = 0x1c000, scoped, tag = 'output window, operand 0']
    #allocation10 [shape = 'u8[1024]{0}', space=vmem, size = 0x400, scoped, tag = 'output window, operand 1']
    #allocation11 [shape = 's32[2]{0}', space=sflag, size = 0x8, scoped, tag = 'scoped memory for mmseg_fcn_decoder_forward.3']
    #allocation12 [shape = 'u8[1024]{0}', space=vmem, size = 0x400, scoped, tag = 'output window, operand 2']
    %11 = vsyncpa [#allocation4], 0
    %s12 = scalar_lea.sflag [#allocation4], 1
    %13 = vsyncpa %s12, 0
    %14 = vsyncpa [#allocation7], 0
    %15 = vsyncpa [#allocation5], 0
    %s16 = scalar_lea.sflag [#allocation5], 1
    %17 = vsyncpa %s16, 0
    %18 = vsyncpa [#allocation11], 0
    %s19 = scalar_lea.sflag [#allocation11], 1
    %20 = vsyncpa %s19, 0
    loop: start=0, step=1, limit=8
    $region2: #{mmseg_fcn_decoder_forward.3} parent=1 // loop_pre_header
      _
    $region3: #{mmseg_fcn_decoder_forward.3} parent=1 // loop_header
      %s22 = sphi 0, %s26
      %p23 = scmp.ge.s32.totalorder %s22, 8
      %s29 = sphi 0, %s41
      %s30 = sphi 0, %s37
      %s31 = sphi 0, %s29
      %s32 = sphi 0, %s30
      %s33 = sphi 0, %s31
      %s34 = sphi 0, %s32
      %s46 = sphi 0, %s48
      %s49 = sphi 0, %s46
      %s50 = sphi 0, %s49
      %s66 = sphi 0, %s50
      %s72 = sphi 0, %s74
      %s75 = sphi 0, %s72
      %s76 = sphi 0, %s75
      %s92 = sphi 0, %s76
      %s98 = sphi 0, %s100
      %s101 = sphi 0, %s98
      %s102 = sphi 0, %s101
      %s118 = sphi 0, %s102
      %s124 = sphi 0, %s126
      %s127 = sphi 0, %s124
      %s128 = sphi 0, %s127
      %s144 = sphi 0, %s128
      %s150 = sphi 0, %s152
      %s153 = sphi 0, %s150
      %s154 = sphi 0, %s153
      %s170 = sphi 0, %s154
      %s176 = sphi 0, %s178
      %s179 = sphi 0, %s176
      %s180 = sphi 0, %s179
      %s196 = sphi 0, %s180
    $region4: #{mmseg_fcn_decoder_forward.3} parent=1 // loop_header_branch
      %25 = sbr.rel (%p23) target = $region8
    $region5: #{mmseg_fcn_decoder_forward.3} parent=1 // loop_body
      %s27 = ssub.s32 %s22, 1
      %s28 = ssub.s32 %s22, 2
      %s35 = sadd.s32 1, %s30
      %p36 = scmp.ge.s32.totalorder %s35, 1
      %s37 = scalar_select %p36, 0, %s35
      %s38 = sadd.s32 1, %s29
      %s39 = scalar_select %p36, %s38, %s29
      %p40 = scmp.ge.s32.totalorder %s39, 6
      %s41 = scalar_select %p40, 0, %s39
      %s42 = ssub.s32 %s29, %s41
      %s43 = ssub.s32 %s30, %s37
      %s44 = sor.u32 %s42, %s43
      %p45 = scmp.eq.s32.totalorder %s44, 0
      %s47 = sadd.s32 %s46, 1
      %s48 = scalar_select %p45, %s46, %s47
      %p51 = pneg %p45
      %p52 = scmp.eq.s32.totalorder %s22, 5
      %p53 = por %p51, %p52
      %p54 = scmp.ne.s32.totalorder %s46, %s49
      %p55 = scmp.eq.s32.totalorder %s22, 0
      %p56 = por %p54, %p55
      %p57 = scmp.ne.s32.totalorder %s46, %s49
      %p58 = scmp.eq.s32.totalorder %s27, 5
      %p59 = por %p57, %p58
      %p60 = scmp.ne.s32.totalorder %s49, %s50
      %p61 = scmp.eq.s32.totalorder %s27, 0
      %p62 = por %p60, %p61
      %p63 = scmp.ne.s32.totalorder %s49, %s50
      %p64 = scmp.eq.s32.totalorder %s28, 5
      %p65 = por %p63, %p64
      %p67 = scmp.ne.s32.totalorder %s50, %s66
      %p68 = scmp.eq.s32.totalorder %s28, 0
      %p69 = por %p67, %p68
      %s70 = ssub.s32 %s30, %s37
      %p71 = scmp.eq.s32.totalorder %s70, 0
      %s73 = sadd.s32 %s72, 1
      %s74 = scalar_select %p71, %s72, %s73
      %p77 = pneg %p71
      %p78 = scmp.eq.s32.totalorder %s22, 5
      %p79 = por %p77, %p78
      %p80 = scmp.ne.s32.totalorder %s72, %s75
      %p81 = scmp.eq.s32.totalorder %s22, 0
      %p82 = por %p80, %p81
      %p83 = scmp.ne.s32.totalorder %s72, %s75
      %p84 = scmp.eq.s32.totalorder %s27, 5
      %p85 = por %p83, %p84
      %p86 = scmp.ne.s32.totalorder %s75, %s76
      %p87 = scmp.eq.s32.totalorder %s27, 0
      %p88 = por %p86, %p87
      %p89 = scmp.ne.s32.totalorder %s75, %s76
      %p90 = scmp.eq.s32.totalorder %s28, 5
      %p91 = por %p89, %p90
      %p93 = scmp.ne.s32.totalorder %s76, %s92
      %p94 = scmp.eq.s32.totalorder %s28, 0
      %p95 = por %p93, %p94
      %s96 = ssub.s32 %s29, %s41
      %p97 = scmp.eq.s32.totalorder %s96, 0
      %s99 = sadd.s32 %s98, 1
      %s100 = scalar_select %p97, %s98, %s99
      %p103 = pneg %p97
      %p104 = scmp.eq.s32.totalorder %s22, 5
      %p105 = por %p103, %p104
      %p106 = scmp.ne.s32.totalorder %s98, %s101
      %p107 = scmp.eq.s32.totalorder %s22, 0
      %p108 = por %p106, %p107
      %p109 = scmp.ne.s32.totalorder %s98, %s101
      %p110 = scmp.eq.s32.totalorder %s27, 5
      %p111 = por %p109, %p110
      %p112 = scmp.ne.s32.totalorder %s101, %s102
      %p113 = scmp.eq.s32.totalorder %s27, 0
      %p114 = por %p112, %p113
      %p115 = scmp.ne.s32.totalorder %s101, %s102
      %p116 = scmp.eq.s32.totalorder %s28, 5
      %p117 = por %p115, %p116
      %p119 = scmp.ne.s32.totalorder %s102, %s118
      %p120 = scmp.eq.s32.totalorder %s28, 0
      %p121 = por %p119, %p120
      %s122 = ssub.s32 %s29, %s41
      %p123 = scmp.eq.s32.totalorder %s122, 0
      %s125 = sadd.s32 %s124, 1
      %s126 = scalar_select %p123, %s124, %s125
      %p129 = pneg %p123
      %p130 = scmp.eq.s32.totalorder %s22, 5
      %p131 = por %p129, %p130
      %p132 = scmp.ne.s32.totalorder %s124, %s127
      %p133 = scmp.eq.s32.totalorder %s22, 0
      %p134 = por %p132, %p133
      %p135 = scmp.ne.s32.totalorder %s124, %s127
      %p136 = scmp.eq.s32.totalorder %s27, 5
      %p137 = por %p135, %p136
      %p138 = scmp.ne.s32.totalorder %s127, %s128
      %p139 = scmp.eq.s32.totalorder %s27, 0
      %p140 = por %p138, %p139
      %p141 = scmp.ne.s32.totalorder %s127, %s128
      %p142 = scmp.eq.s32.totalorder %s28, 5
      %p143 = por %p141, %p142
      %p145 = scmp.ne.s32.totalorder %s128, %s144
      %p146 = scmp.eq.s32.totalorder %s28, 0
      %p147 = por %p145, %p146
      %s148 = ssub.s32 %s29, %s41
      %p149 = scmp.eq.s32.totalorder %s148, 0
      %s151 = sadd.s32 %s150, 1
      %s152 = scalar_select %p149, %s150, %s151
      %p155 = pneg %p149
      %p156 = scmp.eq.s32.totalorder %s22, 5
      %p157 = por %p155, %p156
      %p158 = scmp.ne.s32.totalorder %s150, %s153
      %p159 = scmp.eq.s32.totalorder %s22, 0
      %p160 = por %p158, %p159
      %p161 = scmp.ne.s32.totalorder %s150, %s153
      %p162 = scmp.eq.s32.totalorder %s27, 5
      %p163 = por %p161, %p162
      %p164 = scmp.ne.s32.totalorder %s153, %s154
      %p165 = scmp.eq.s32.totalorder %s27, 0
      %p166 = por %p164, %p165
      %p167 = scmp.ne.s32.totalorder %s153, %s154
      %p168 = scmp.eq.s32.totalorder %s28, 5
      %p169 = por %p167, %p168
      %p171 = scmp.ne.s32.totalorder %s154, %s170
      %p172 = scmp.eq.s32.totalorder %s28, 0
      %p173 = por %p171, %p172
      %s174 = ssub.s32 %s29, %s41
      %p175 = scmp.eq.s32.totalorder %s174, 0
      %s177 = sadd.s32 %s176, 1
      %s178 = scalar_select %p175, %s176, %s177
      %p181 = pneg %p175
      %p182 = scmp.eq.s32.totalorder %s22, 5
      %p183 = por %p181, %p182
      %p184 = scmp.ne.s32.totalorder %s176, %s179
      %p185 = scmp.eq.s32.totalorder %s22, 0
      %p186 = por %p184, %p185
      %p187 = scmp.ne.s32.totalorder %s176, %s179
      %p188 = scmp.eq.s32.totalorder %s27, 5
      %p189 = por %p187, %p188
      %p190 = scmp.ne.s32.totalorder %s179, %s180
      %p191 = scmp.eq.s32.totalorder %s27, 0
      %p192 = por %p190, %p191
      %p193 = scmp.ne.s32.totalorder %s179, %s180
      %p194 = scmp.eq.s32.totalorder %s28, 5
      %p195 = por %p193, %p194
      %p197 = scmp.ne.s32.totalorder %s180, %s196
      %p198 = scmp.eq.s32.totalorder %s28, 0
      %p199 = por %p197, %p198
      %p200 = scmp.le.s32.totalorder 1, %s22
      %p201 = scmp.lt.s32.totalorder %s22, 7
      %p202 = pnand %p200, %p201
      %p203 = pneg %p202
      // Predicated region
      $region9: #{mmseg_fcn_decoder_forward.3} parent=5 // pred_check
        _
      $region10: #{mmseg_fcn_decoder_forward.3} parent=5 // pred_check_branch
        %205 = sbr.rel (%p202) target = $region12
      $region11: #{mmseg_fcn_decoder_forward.3} parent=5 // pred_region
        %s206 = ssub.s32 %s22, 1
        // Predicated region
        $region13: #{mmseg_fcn_decoder_forward.3} parent=11 // pred_check
          %p207 = pneg %p88
        $region14: #{mmseg_fcn_decoder_forward.3} parent=11 // pred_check_branch
          %209 = sbr.rel (%p207) target = $region16
        $region15: #{mmseg_fcn_decoder_forward.3} parent=11 // pred_region
          %s211 = ssub.s32 1152, 1152
          %212 = vsyncadd [#allocation7], %s211
          %s213 = smul.addr %s32, 128
          %s214 = scalar_lea.hbm %s1, %s213
          %s215 = sshll.u32 [#allocation6], 4
          %s216 = int_to_ptr.vmem [resolvable:$true] %s215
          %221 = dma.hbm_to_vmem [thread:$0]  %s214, 1152, %s216, [#allocation7], 128, 128, 8
        $region16: #{mmseg_fcn_decoder_forward.3} parent=11 // pred_fallthru
          _
      $region12: #{mmseg_fcn_decoder_forward.3} parent=5 // pred_fallthru
        _
      %p222 = scmp.lt.s32.totalorder %s22, 6
      // Predicated region
      $region17: #{mmseg_fcn_decoder_forward.3} parent=5 // pred_check
        %p223 = pneg %p222
      $region18: #{mmseg_fcn_decoder_forward.3} parent=5 // pred_check_branch
        %225 = sbr.rel (%p223) target = $region20
      $region19: #{mmseg_fcn_decoder_forward.3} parent=5 // pred_region
        // Predicated region
        $region21: #{mmseg_fcn_decoder_forward.3} parent=19 // pred_check
          %p226 = pneg %p56
        $region22: #{mmseg_fcn_decoder_forward.3} parent=19 // pred_check_branch
          %228 = sbr.rel (%p226) target = $region24
        $region23: #{mmseg_fcn_decoder_forward.3} parent=19 // pred_region
          %s229 = sand.u32 %s22, 1
          %s230 = scalar_lea.sflag [#allocation4], %s229
          %s231 = sand.u32 %s46, 1
          %s232 = smul.addr %s231, 168
          %s233 = scalar_lea.vmem [#allocation3], %s232
          %s235 = ssub.s32 2688, 2688
          %236 = vsyncadd %s230, %s235
          %s237 = smul.addr %s29, 21
          %s238 = sadd.s32 %s30, %s237
          %s239 = smul.addr %s238, 128
          %s240 = scalar_lea.hbm %s0, %s239
          %s241 = sshll.u32 %s233, 4
          %s242 = int_to_ptr.vmem [resolvable:$true] %s241
          %247 = dma.hbm_to_vmem [thread:$0]  %s240, 2688, %s242, %s230, 128, 128, 8
        $region24: #{mmseg_fcn_decoder_forward.3} parent=19 // pred_fallthru
          _
        // Predicated region
        $region25: #{mmseg_fcn_decoder_forward.3} parent=19 // pred_check
          %p248 = pneg %p108
        $region26: #{mmseg_fcn_decoder_forward.3} parent=19 // pred_check_branch
          %250 = sbr.rel (%p248) target = $region28
        $region27: #{mmseg_fcn_decoder_forward.3} parent=19 // pred_region
          %s251 = sand.u32 %s22, 1
          %s252 = scalar_lea.sflag [#allocation4], %s251
          %s253 = sand.u32 %s98, 1
          %s254 = smul.addr %s253, 112
          %s255 = scalar_lea.vmem [#allocation8], %s254
          %s257 = ssub.s32 1792, 1792
          %258 = vsyncadd %s252, %s257
          %s259 = smul.addr %s29, 14
          %s260 = smul.addr %s259, 128
          %s261 = scalar_lea.hbm %s2, %s260
          %s262 = sshll.u32 %s255, 4
          %s263 = int_to_ptr.vmem [resolvable:$true] %s262
          %268 = dma.hbm_to_vmem [thread:$0]  %s261, 1792, %s263, %s252, 128, 128, 8
        $region28: #{mmseg_fcn_decoder_forward.3} parent=19 // pred_fallthru
          _
      $region20: #{mmseg_fcn_decoder_forward.3} parent=5 // pred_fallthru
        _
      %p269 = scmp.le.s32.totalorder 1, %s22
      %p270 = scmp.lt.s32.totalorder %s22, 7
      %p271 = pnand %p269, %p270
      %p272 = pneg %p271
      // Predicated region
      $region29: #{mmseg_fcn_decoder_forward.3} parent=5 // pred_check
        _
      $region30: #{mmseg_fcn_decoder_forward.3} parent=5 // pred_check_branch
        %274 = sbr.rel (%p271) target = $region32
      $region31: #{mmseg_fcn_decoder_forward.3} parent=5 // pred_region
        %s275 = ssub.s32 %s22, 1
        %s276 = sand.u32 %s27, 1
        %s277 = scalar_lea.sflag [#allocation4], %s276
        %s278 = sand.u32 %s49, 1
        %s279 = smul.addr %s278, 168
        %s280 = scalar_lea.vmem [#allocation3], %s279
        // Predicated region
        $region33: #{mmseg_fcn_decoder_forward.3} parent=31 // pred_check
          %p281 = pneg %p62
        $region34: #{mmseg_fcn_decoder_forward.3} parent=31 // pred_check_branch
          %283 = sbr.rel (%p281) target = $region36
        $region35: #{mmseg_fcn_decoder_forward.3} parent=31 // pred_region
          %284 = dma.done %s277, 2688
        $region36: #{mmseg_fcn_decoder_forward.3} parent=31 // pred_fallthru
          _
        // Predicated region
        $region37: #{mmseg_fcn_decoder_forward.3} parent=31 // pred_check
          %p285 = pneg %p88
        $region38: #{mmseg_fcn_decoder_forward.3} parent=31 // pred_check_branch
          %287 = sbr.rel (%p285) target = $region40
        $region39: #{mmseg_fcn_decoder_forward.3} parent=31 // pred_region
          %288 = dma.done [#allocation7], 1152
        $region40: #{mmseg_fcn_decoder_forward.3} parent=31 // pred_fallthru
          _
        %s289 = sand.u32 %s27, 1
        %s290 = scalar_lea.sflag [#allocation4], %s289
        %s291 = sand.u32 %s101, 1
        %s292 = smul.addr %s291, 112
        %s293 = scalar_lea.vmem [#allocation8], %s292
        // Predicated region
        $region41: #{mmseg_fcn_decoder_forward.3} parent=31 // pred_check
          %p294 = pneg %p114
        $region42: #{mmseg_fcn_decoder_forward.3} parent=31 // pred_check_branch
          %296 = sbr.rel (%p294) target = $region44
        $region43: #{mmseg_fcn_decoder_forward.3} parent=31 // pred_region
          %297 = dma.done %s290, 1792
        $region44: #{mmseg_fcn_decoder_forward.3} parent=31 // pred_fallthru
          _
        %s298 = sand.u32 %s27, 1
        %s299 = scalar_lea.sflag [#allocation4], %s298
        %s300 = sand.u32 %s49, 1
        %s301 = smul.addr %s300, 168
        %s302 = scalar_lea.vmem [#allocation3], %s301
        %p303 = pneg %p62
        %p304 = pneg %p59
        %p305 = pneg %p88
        %p306 = pneg %p85
        %s307 = sand.u32 %s27, 1
        %s308 = scalar_lea.sflag [#allocation4], %s307
        %s309 = sand.u32 %s101, 1
        %s310 = smul.addr %s309, 112
        %s311 = scalar_lea.vmem [#allocation8], %s310
        %p312 = pneg %p114
        %p313 = pneg %p111
        %p314 = pneg %p140
        %p315 = pneg %p137
        %s316 = sand.u32 %s127, 1
        %s317 = scalar_lea.sflag [#allocation5], %s316
        %s318 = sand.u32 %s127, 1
        %s319 = smul.addr %s318, 112
        %s320 = scalar_lea.vmem [#allocation9], %s319
        %p321 = pneg %p166
        %p322 = pneg %p163
        %s323 = sand.u32 %s27, 1
        %s324 = scalar_lea.sflag [#allocation11], %s323
        %s325 = sand.u32 %s153, 1
        %s326 = scalar_lea.vmem [#allocation10], %s325
        %p327 = pneg %p192
        %p328 = pneg %p189
        %s329 = sand.u32 %s27, 1
        %s330 = scalar_lea.sflag [#allocation11], %s329
        %s331 = sand.u32 %s179, 1
        %s332 = scalar_lea.vmem [#allocation12], %s331
        %p333 = scmp.eq.s32.totalorder %s32, 0
        // Predicated region
        $region45: #{mmseg_fcn_decoder_forward.3} parent=31 // pred_check
          %p334 = pneg %p333
        $region46: #{mmseg_fcn_decoder_forward.3} parent=31 // pred_check_branch
          %336 = sbr.rel (%p334) target = $region48
        $region47: #{mmseg_fcn_decoder_forward.3} parent=31 // pred_region
          %vm337 = vcmask 64512
          %338 = vst.msk [vmem:[#allocation2] sm:$0xff] %vm337, 0.0
          %339 = vst.msk [vmem:[#allocation2 + $0x8] sm:$0xff] %vm337, 0.0
          %340 = vst.msk [vmem:[#allocation2 + $0x10] sm:$0xff] %vm337, 0.0
          %341 = vst.msk [vmem:[#allocation2 + $0x18] sm:$0xff] %vm337, 0.0
          %342 = vst.msk [vmem:[#allocation2 + $0x20] sm:$0xff] %vm337, 0.0
          %343 = vst.msk [vmem:[#allocation2 + $0x28] sm:$0xff] %vm337, 0.0
          %344 = vst.msk [vmem:[#allocation2 + $0x30] sm:$0xff] %vm337, 0.0
          %345 = vst.msk [vmem:[#allocation2 + $0x38] sm:$0xff] %vm337, 0.0
          %346 = vst.msk [vmem:[#allocation2 + $0x40] sm:$0xff] %vm337, 0.0
          %347 = vst.msk [vmem:[#allocation2 + $0x48] sm:$0xff] %vm337, 0.0
          %348 = vst.msk [vmem:[#allocation2 + $0x50] sm:$0xff] %vm337, 0.0
          %349 = vst.msk [vmem:[#allocation2 + $0x58] sm:$0xff] %vm337, 0.0
          %350 = vst.msk [vmem:[#allocation2 + $0x60] sm:$0xff] %vm337, 0.0
          %vm351 = vcmask 60416
          %352 = vst.msk [vmem:[#allocation2 + $0x68] sm:$0xf] %vm351, 0.0
        $region48: #{mmseg_fcn_decoder_forward.3} parent=31 // pred_fallthru
          _
        %v353 = vld [vmem:[%s280] sm:$0xff]
        %v354 = vld [vmem:[%s280 + $0x8] sm:$0xff]
        %v355 = vld [vmem:[%s280 + $0x10] sm:$0xff]
        %v356 = vld [vmem:[%s280 + $0x18] sm:$0xff]
        %v357 = vld [vmem:[%s280 + $0x20] sm:$0xff]
        %v358 = vld [vmem:[%s280 + $0x28] sm:$0xff]
        %v359 = vld [vmem:[%s280 + $0x30] sm:$0xff]
        %v360 = vld [vmem:[%s280 + $0x38] sm:$0xff]
        %v361 = vld [vmem:[%s280 + $0x40] sm:$0xff]
        %v362 = vld [vmem:[%s280 + $0x48] sm:$0xff]
        %v363 = vld [vmem:[%s280 + $0x50] sm:$0xff]
        %v364 = vld [vmem:[%s280 + $0x58] sm:$0xff]
        %v365 = vld [vmem:[%s280 + $0x60] sm:$0xff]
        %v366 = vld [vmem:[%s280 + $0x68] sm:$0xf]
        %v367 = vld [vmem:[#allocation6] sm:$0xff]
        %v368 = vld [vmem:[%s280 + $0x1] sm:$0xff]
        %v369 = vld [vmem:[%s280 + $0x9] sm:$0xff]
        %v370 = vld [vmem:[%s280 + $0x11] sm:$0xff]
        %v371 = vld [vmem:[%s280 + $0x19] sm:$0xff]
        %v372 = vld [vmem:[%s280 + $0x21] sm:$0xff]
        %v373 = vld [vmem:[%s280 + $0x29] sm:$0xff]
        %v374 = vld [vmem:[%s280 + $0x31] sm:$0xff]
        %v375 = vld [vmem:[%s280 + $0x39] sm:$0xff]
        %v376 = vld [vmem:[%s280 + $0x41] sm:$0xff]
        %v377 = vld [vmem:[%s280 + $0x49] sm:$0xff]
        %v378 = vld [vmem:[%s280 + $0x51] sm:$0xff]
        %v379 = vld [vmem:[%s280 + $0x59] sm:$0xff]
        %v380 = vld [vmem:[%s280 + $0x61] sm:$0xff]
        %v381 = vld [vmem:[%s280 + $0x69] sm:$0xf]
        %s382 = scalar_lea.vmem [#allocation6], 8
        %v383 = vld [vmem:[%s382] sm:$0xff]
        %vm384 = vcmask 64512
        %v386 = vsel %vm384, %v368, 0
        %v389 = vsel %vm384, %v369, 0
        %v392 = vsel %vm384, %v370, 0
        %v395 = vsel %vm384, %v371, 0
        %v398 = vsel %vm384, %v372, 0
        %v401 = vsel %vm384, %v373, 0
        %v404 = vsel %vm384, %v374, 0
        %v407 = vsel %vm384, %v375, 0
        %v410 = vsel %vm384, %v376, 0
        %v413 = vsel %vm384, %v377, 0
        %v416 = vsel %vm384, %v378, 0
        %v419 = vsel %vm384, %v379, 0
        %v422 = vsel %vm384, %v380, 0
        %v425 = vsel %vm384, %v381, 0
        %427 = vmatprep.subr.mxu0 0.0
        %428 = vmatpush1.msra.mxu0 %v383
        %429 = vmatprep.subr.mxu0 0.0
        %430 = vmatpush1.msra.mxu0 0.0
        %431 = vmatprep.subr.mxu0 0.0
        %432 = vmatpush1.msra.mxu0 0.0
        %433 = vmatprep.subr.mxu0 0.0
        %434 = vmatpush1.msra.mxu0 0.0
        %435 = vmatprep.subr.mxu0 0.0
        %436 = vmatpush1.msra.mxu0 0.0
        %437 = vmatprep.subr.mxu0 0.0
        %438 = vmatpush1.msra.mxu0 0.0
        %439 = vmatprep.subr.mxu0 0.0
        %440 = vmatpush1.msra.mxu0 0.0
        %441 = vmatprep.subr.mxu0 0.0
        %442 = vmatpush1.msra.mxu0 0.0
        %443 = vmatprep.subr.mxu0 0.0
        %444 = vmatpush1.msra.mxu0 0.0
        %445 = vmatprep.subr.mxu0 0.0
        %446 = vmatpush1.msra.mxu0 0.0
        %447 = vmatprep.subr.mxu0 0.0
        %448 = vmatpush1.msra.mxu0 0.0
        %449 = vmatprep.subr.mxu0 0.0
        %450 = vmatpush1.msra.mxu0 0.0
        %451 = vmatprep.subr.mxu0 0.0
        %452 = vmatpush1.msra.mxu0 0.0
        %453 = vmatprep.subr.mxu0 0.0
        %454 = vmatpush1.msra.mxu0 0.0
        %455 = vmatprep.subr.mxu0 0.0
        %456 = vmatpush1.msra.mxu0 0.0
        %457 = vmatprep.subr.mxu0 0.0
        %458 = vmatpush1.msra.mxu0 0.0
        %459 = vmatprep.subr.mxu0 0.0
        %460 = vmatpush1.msra.mxu0 0.0
        %461 = vmatprep.subr.mxu0 0.0
        %462 = vmatpush1.msra.mxu0 0.0
        %463 = vmatprep.subr.mxu0 0.0
        %464 = vmatpush1.msra.mxu0 0.0
        %465 = vmatprep.subr.mxu0 0.0
        %466 = vmatpush1.msra.mxu0 0.0
        %467 = vmatprep.subr.mxu0 0.0
        %468 = vmatpush1.msra.mxu0 0.0
        %469 = vmatprep.subr.mxu0 0.0
        %470 = vmatpush1.msra.mxu0 0.0
        %471 = vmatprep.subr.mxu0 0.0
        %472 = vmatpush1.msra.mxu0 0.0
        %473 = vmatprep.subr.mxu0 0.0
        %474 = vmatpush1.msra.mxu0 0.0
        %475 = vmatprep.subr.mxu0 0.0
        %476 = vmatpush1.msra.mxu0 0.0
        %477 = vmatprep.subr.mxu0 0.0
        %478 = vmatpush1.msra.mxu0 0.0
        %479 = vmatprep.subr.mxu0 0.0
        %480 = vmatpush1.msra.mxu0 0.0
        %481 = vmatprep.subr.mxu0 0.0
        %482 = vmatpush1.msra.mxu0 0.0
        %483 = vmatprep.subr.mxu0 0.0
        %484 = vmatpush1.msra.mxu0 0.0
        %485 = vmatprep.subr.mxu0 0.0
        %486 = vmatpush1.msra.mxu0 0.0
        %487 = vmatprep.subr.mxu0 0.0
        %488 = vmatpush1.msra.mxu0 0.0
        %489 = vmatprep.subr.mxu0 0.0
        %490 = vmatpush1.msra.mxu0 0.0
        %491 = vmatprep.mubr.f32.mxu0 0.0
        %492 = vmatmul.mubr.f32.gmra.mrb[0].mxu0 %v386
        %v493 = vpop.f32.mrb[0].mxu0
        %v494 = vadd.f32 0.0, %v493
        %v495 = vpop.f32.mrb[0].mxu0
        %496 = vmatprep.mubr.f32.mxu0 0.0
        %497 = vmatmul.mubr.f32.gmra.mrb[0].mxu0 %v389
        %v498 = vpop.f32.mrb[0].mxu0
        %v499 = vadd.f32 0.0, %v498
        %v500 = vpop.f32.mrb[0].mxu0
        %501 = vmatprep.mubr.f32.mxu0 0.0
        %502 = vmatmul.mubr.f32.gmra.mrb[0].mxu0 %v392
        %v503 = vpop.f32.mrb[0].mxu0
        %v504 = vadd.f32 0.0, %v503
        %v505 = vpop.f32.mrb[0].mxu0
        %506 = vmatprep.mubr.f32.mxu0 0.0
        %507 = vmatmul.mubr.f32.gmra.mrb[0].mxu0 %v395
        %v508 = vpop.f32.mrb[0].mxu0
        %v509 = vadd.f32 0.0, %v508
        %v510 = vpop.f32.mrb[0].mxu0
        %511 = vmatprep.mubr.f32.mxu0 0.0
        %512 = vmatmul.mubr.f32.gmra.mrb[0].mxu0 %v398
        %v513 = vpop.f32.mrb[0].mxu0
        %v514 = vadd.f32 0.0, %v513
        %v515 = vpop.f32.mrb[0].mxu0
        %516 = vmatprep.mubr.f32.mxu0 0.0
        %517 = vmatmul.mubr.f32.gmra.mrb[0].mxu0 %v401
        %v518 = vpop.f32.mrb[0].mxu0
        %v519 = vadd.f32 0.0, %v518
        %v520 = vpop.f32.mrb[0].mxu0
        %521 = vmatprep.mubr.f32.mxu0 0.0
        %522 = vmatmul.mubr.f32.gmra.mrb[0].mxu0 %v404
        %v523 = vpop.f32.mrb[0].mxu0
        %v524 = vadd.f32 0.0, %v523
        %v525 = vpop.f32.mrb[0].mxu0
        %526 = vmatprep.mubr.f32.mxu0 0.0
        %527 = vmatmul.mubr.f32.gmra.mrb[0].mxu0 %v407
        %v528 = vpop.f32.mrb[0].mxu0
        %v529 = vadd.f32 0.0, %v528
        %v530 = vpop.f32.mrb[0].mxu0
        %531 = vmatprep.mubr.f32.mxu0 0.0
        %532 = vmatmul.mubr.f32.gmra.mrb[0].mxu0 %v410
        %v533 = vpop.f32.mrb[0].mxu0
        %v534 = vadd.f32 0.0, %v533
        %v535 = vpop.f32.mrb[0].mxu0
        %536 = vmatprep.mubr.f32.mxu0 0.0
        %537 = vmatmul.mubr.f32.gmra.mrb[0].mxu0 %v413
        %v538 = vpop.f32.mrb[0].mxu0
        %v539 = vadd.f32 0.0, %v538
        %v540 = vpop.f32.mrb[0].mxu0
        %541 = vmatprep.mubr.f32.mxu0 0.0
        %542 = vmatmul.mubr.f32.gmra.mrb[0].mxu0 %v416
        %v543 = vpop.f32.mrb[0].mxu0
        %v544 = vadd.f32 0.0, %v543
        %v545 = vpop.f32.mrb[0].mxu0
        %546 = vmatprep.mubr.f32.mxu0 0.0
        %547 = vmatmul.mubr.f32.gmra.mrb[0].mxu0 %v419
        %v548 = vpop.f32.mrb[0].mxu0
        %v549 = vadd.f32 0.0, %v548
        %v550 = vpop.f32.mrb[0].mxu0
        %551 = vmatprep.mubr.f32.mxu0 0.0
        %552 = vmatmul.mubr.f32.gmra.mrb[0].mxu0 %v422
        %v553 = vpop.f32.mrb[0].mxu0
        %v554 = vadd.f32 0.0, %v553
        %v555 = vpop.f32.mrb[0].mxu0
        %556 = vmatprep.mubr.f32.mxu0 0.0
        %557 = vmatmul.mubr.f32.gmra.mrb[0].mxu0 %v425
        %v558 = vpop.f32.mrb[0].mxu0
        %v559 = vadd.f32 0.0, %v558
        %v560 = vpop.f32.mrb[0].mxu0
        %561 = vdwg.mxu0
        %v563 = vsel %vm384, %v353, 0
        %v566 = vsel %vm384, %v354, 0
        %v569 = vsel %vm384, %v355, 0
        %v572 = vsel %vm384, %v356, 0
        %v575 = vsel %vm384, %v357, 0
        %v578 = vsel %vm384, %v358, 0
        %v581 = vsel %vm384, %v359, 0
        %v584 = vsel %vm384, %v360, 0
        %v587 = vsel %vm384, %v361, 0
        %v590 = vsel %vm384, %v362, 0
        %v593 = vsel %vm384, %v363, 0
        %v596 = vsel %vm384, %v364, 0
        %v599 = vsel %vm384, %v365, 0
        %v602 = vsel %vm384, %v366, 0
        %604 = vmatprep.subr.mxu0 0.0
        %605 = vmatpush1.msra.mxu0 %v367
        %606 = vmatprep.subr.mxu0 0.0
        %607 = vmatpush1.msra.mxu0 0.0
        %608 = vmatprep.subr.mxu0 0.0
        %609 = vmatpush1.msra.mxu0 0.0
        %610 = vmatprep.subr.mxu0 0.0
        %611 = vmatpush1.msra.mxu0 0.0
        %612 = vmatprep.subr.mxu0 0.0
        %613 = vmatpush1.msra.mxu0 0.0
        %614 = vmatprep.subr.mxu0 0.0
        %615 = vmatpush1.msra.mxu0 0.0
        %616 = vmatprep.subr.mxu0 0.0
        %617 = vmatpush1.msra.mxu0 0.0
        %618 = vmatprep.subr.mxu0 0.0
        %619 = vmatpush1.msra.mxu0 0.0
        %620 = vmatprep.subr.mxu0 0.0
        %621 = vmatpush1.msra.mxu0 0.0
        %622 = vmatprep.subr.mxu0 0.0
        %623 = vmatpush1.msra.mxu0 0.0
        %624 = vmatprep.subr.mxu0 0.0
        %625 = vmatpush1.msra.mxu0 0.0
        %626 = vmatprep.subr.mxu0 0.0
        %627 = vmatpush1.msra.mxu0 0.0
        %628 = vmatprep.subr.mxu0 0.0
        %629 = vmatpush1.msra.mxu0 0.0
        %630 = vmatprep.subr.mxu0 0.0
        %631 = vmatpush1.msra.mxu0 0.0
        %632 = vmatprep.subr.mxu0 0.0
        %633 = vmatpush1.msra.mxu0 0.0
        %634 = vmatprep.subr.mxu0 0.0
        %635 = vmatpush1.msra.mxu0 0.0
        %636 = vmatprep.subr.mxu0 0.0
        %637 = vmatpush1.msra.mxu0 0.0
        %638 = vmatprep.subr.mxu0 0.0
        %639 = vmatpush1.msra.mxu0 0.0
        %640 = vmatprep.subr.mxu0 0.0
        %641 = vmatpush1.msra.mxu0 0.0
        %642 = vmatprep.subr.mxu0 0.0
        %643 = vmatpush1.msra.mxu0 0.0
        %644 = vmatprep.subr.mxu0 0.0
        %645 = vmatpush1.msra.mxu0 0.0
        %646 = vmatprep.subr.mxu0 0.0
        %647 = vmatpush1.msra.mxu0 0.0
        %648 = vmatprep.subr.mxu0 0.0
        %649 = vmatpush1.msra.mxu0 0.0
        %650 = vmatprep.subr.mxu0 0.0
        %651 = vmatpush1.msra.mxu0 0.0
        %652 = vmatprep.subr.mxu0 0.0
        %653 = vmatpush1.msra.mxu0 0.0
        %654 = vmatprep.subr.mxu0 0.0
        %655 = vmatpush1.msra.mxu0 0.0
        %656 = vmatprep.subr.mxu0 0.0
        %657 = vmatpush1.msra.mxu0 0.0
        %658 = vmatprep.subr.mxu0 0.0
        %659 = vmatpush1.msra.mxu0 0.0
        %660 = vmatprep.subr.mxu0 0.0
        %661 = vmatpush1.msra.mxu0 0.0
        %662 = vmatprep.subr.mxu0 0.0
        %663 = vmatpush1.msra.mxu0 0.0
        %664 = vmatprep.subr.mxu0 0.0
        %665 = vmatpush1.msra.mxu0 0.0
        %666 = vmatprep.subr.mxu0 0.0
        %667 = vmatpush1.msra.mxu0 0.0
        %668 = vmatprep.mubr.f32.mxu0 0.0
        %669 = vmatmul.mubr.f32.gmra.mrb[0].mxu0 %v563
        %v670 = vpop.f32.mrb[0].mxu0
        %v671 = vadd.f32 %v494, %v670
        %v672 = vpop.f32.mrb[0].mxu0
        %673 = vmatprep.mubr.f32.mxu0 0.0
        %674 = vmatmul.mubr.f32.gmra.mrb[0].mxu0 %v566
        %v675 = vpop.f32.mrb[0].mxu0
        %v676 = vadd.f32 %v499, %v675
        %v677 = vpop.f32.mrb[0].mxu0
        %678 = vmatprep.mubr.f32.mxu0 0.0
        %679 = vmatmul.mubr.f32.gmra.mrb[0].mxu0 %v569
        %v680 = vpop.f32.mrb[0].mxu0
        %v681 = vadd.f32 %v504, %v680
        %v682 = vpop.f32.mrb[0].mxu0
        %683 = vmatprep.mubr.f32.mxu0 0.0
        %684 = vmatmul.mubr.f32.gmra.mrb[0].mxu0 %v572
        %v685 = vpop.f32.mrb[0].mxu0
        %v686 = vadd.f32 %v509, %v685
        %v687 = vpop.f32.mrb[0].mxu0
        %688 = vmatprep.mubr.f32.mxu0 0.0
        %689 = vmatmul.mubr.f32.gmra.mrb[0].mxu0 %v575
        %v690 = vpop.f32.mrb[0].mxu0
        %v691 = vadd.f32 %v514, %v690
        %v692 = vpop.f32.mrb[0].mxu0
        %693 = vmatprep.mubr.f32.mxu0 0.0
        %694 = vmatmul.mubr.f32.gmra.mrb[0].mxu0 %v578
        %v695 = vpop.f32.mrb[0].mxu0
        %v696 = vadd.f32 %v519, %v695
        %v697 = vpop.f32.mrb[0].mxu0
        %698 = vmatprep.mubr.f32.mxu0 0.0
        %699 = vmatmul.mubr.f32.gmra.mrb[0].mxu0 %v581
        %v700 = vpop.f32.mrb[0].mxu0
        %v701 = vadd.f32 %v524, %v700
        %v702 = vpop.f32.mrb[0].mxu0
        %703 = vmatprep.mubr.f32.mxu0 0.0
        %704 = vmatmul.mubr.f32.gmra.mrb[0].mxu0 %v584
        %v705 = vpop.f32.mrb[0].mxu0
        %v706 = vadd.f32 %v529, %v705
        %v707 = vpop.f32.mrb[0].mxu0
        %708 = vmatprep.mubr.f32.mxu0 0.0
        %709 = vmatmul.mubr.f32.gmra.mrb[0].mxu0 %v587
        %v710 = vpop.f32.mrb[0].mxu0
        %v711 = vadd.f32 %v534, %v710
        %v712 = vpop.f32.mrb[0].mxu0
        %713 = vmatprep.mubr.f32.mxu0 0.0
        %714 = vmatmul.mubr.f32.gmra.mrb[0].mxu0 %v590
        %v715 = vpop.f32.mrb[0].mxu0
        %v716 = vadd.f32 %v539, %v715
        %v717 = vpop.f32.mrb[0].mxu0
        %718 = vmatprep.mubr.f32.mxu0 0.0
        %719 = vmatmul.mubr.f32.gmra.mrb[0].mxu0 %v593
        %v720 = vpop.f32.mrb[0].mxu0
        %v721 = vadd.f32 %v544, %v720
        %v722 = vpop.f32.mrb[0].mxu0
        %723 = vmatprep.mubr.f32.mxu0 0.0
        %724 = vmatmul.mubr.f32.gmra.mrb[0].mxu0 %v596
        %v725 = vpop.f32.mrb[0].mxu0
        %v726 = vadd.f32 %v549, %v725
        %v727 = vpop.f32.mrb[0].mxu0
        %728 = vmatprep.mubr.f32.mxu0 0.0
        %729 = vmatmul.mubr.f32.gmra.mrb[0].mxu0 %v599
        %v730 = vpop.f32.mrb[0].mxu0
        %v731 = vadd.f32 %v554, %v730
        %v732 = vpop.f32.mrb[0].mxu0
        %733 = vmatprep.mubr.f32.mxu0 0.0
        %734 = vmatmul.mubr.f32.gmra.mrb[0].mxu0 %v602
        %v735 = vpop.f32.mrb[0].mxu0
        %v736 = vadd.f32 %v559, %v735
        %v737 = vpop.f32.mrb[0].mxu0
        %738 = vdwg.mxu0
        %v739 = vld [vmem:[%s280 + $0x2] sm:$0xff]
        %v740 = vld [vmem:[%s280 + $0xa] sm:$0xff]
        %v741 = vld [vmem:[%s280 + $0x12] sm:$0xff]
        %v742 = vld [vmem:[%s280 + $0x1a] sm:$0xff]
        %v743 = vld [vmem:[%s280 + $0x22] sm:$0xff]
        %v744 = vld [vmem:[%s280 + $0x2a] sm:$0xff]
        %v745 = vld [vmem:[%s280 + $0x32] sm:$0xff]
        %v746 = vld [vmem:[%s280 + $0x3a] sm:$0xff]
        %v747 = vld [vmem:[%s280 + $0x42] sm:$0xff]
        %v748 = vld [vmem:[%s280 + $0x4a] sm:$0xff]
        %v749 = vld [vmem:[%s280 + $0x52] sm:$0xff]
        %v750 = vld [vmem:[%s280 + $0x5a] sm:$0xff]
        %v751 = vld [vmem:[%s280 + $0x62] sm:$0xff]
        %v752 = vld [vmem:[%s280 + $0x6a] sm:$0xf]
        %s753 = scalar_lea.vmem [#allocation6], 16
        %v754 = vld [vmem:[%s753] sm:$0xff]
        %v756 = vsel %vm384, %v739, 0
        %v759 = vsel %vm384, %v740, 0
        %v762 = vsel %vm384, %v741, 0
        %v765 = vsel %vm384, %v742, 0
        %v768 = vsel %vm384, %v743, 0
        %v771 = vsel %vm384, %v744, 0
        %v774 = vsel %vm384, %v745, 0
        %v777 = vsel %vm384, %v746, 0
        %v780 = vsel %vm384, %v747, 0
        %v783 = vsel %vm384, %v748, 0
        %v786 = vsel %vm384, %v749, 0
        %v789 = vsel %vm384, %v750, 0
        %v792 = vsel %vm384, %v751, 0
        %v795 = vsel %vm384, %v752, 0
        %797 = vmatprep.subr.mxu0 0.0
        %798 = vmatpush1.msra.mxu0 %v754
        %799 = vmatprep.subr.mxu0 0.0
        %800 = vmatpush1.msra.mxu0 0.0
        %801 = vmatprep.subr.mxu0 0.0
        %802 = vmatpush1.msra.mxu0 0.0
        %803 = vmatprep.subr.mxu0 0.0
        %804 = vmatpush1.msra.mxu0 0.0
        %805 = vmatprep.subr.mxu0 0.0
        %806 = vmatpush1.msra.mxu0 0.0
        %807 = vmatprep.subr.mxu0 0.0
        %808 = vmatpush1.msra.mxu0 0.0
        %809 = vmatprep.subr.mxu0 0.0
        %810 = vmatpush1.msra.mxu0 0.0
        %811 = vmatprep.subr.mxu0 0.0
        %812 = vmatpush1.msra.mxu0 0.0
        %813 = vmatprep.subr.mxu0 0.0
        %814 = vmatpush1.msra.mxu0 0.0
        %815 = vmatprep.subr.mxu0 0.0
        %816 = vmatpush1.msra.mxu0 0.0
        %817 = vmatprep.subr.mxu0 0.0
        %818 = vmatpush1.msra.mxu0 0.0
        %819 = vmatprep.subr.mxu0 0.0
        %820 = vmatpush1.msra.mxu0 0.0
        %821 = vmatprep.subr.mxu0 0.0
        %822 = vmatpush1.msra.mxu0 0.0
        %823 = vmatprep.subr.mxu0 0.0
        %824 = vmatpush1.msra.mxu0 0.0
        %825 = vmatprep.subr.mxu0 0.0
        %826 = vmatpush1.msra.mxu0 0.0
        %827 = vmatprep.subr.mxu0 0.0
        %828 = vmatpush1.msra.mxu0 0.0
        %829 = vmatprep.subr.mxu0 0.0
        %830 = vmatpush1.msra.mxu0 0.0
        %831 = vmatprep.subr.mxu0 0.0
        %832 = vmatpush1.msra.mxu0 0.0
        %833 = vmatprep.subr.mxu0 0.0
        %834 = vmatpush1.msra.mxu0 0.0
        %835 = vmatprep.subr.mxu0 0.0
        %836 = vmatpush1.msra.mxu0 0.0
        %837 = vmatprep.subr.mxu0 0.0
        %838 = vmatpush1.msra.mxu0 0.0
        %839 = vmatprep.subr.mxu0 0.0
        %840 = vmatpush1.msra.mxu0 0.0
        %841 = vmatprep.subr.mxu0 0.0
        %842 = vmatpush1.msra.mxu0 0.0
        %843 = vmatprep.subr.mxu0 0.0
        %844 = vmatpush1.msra.mxu0 0.0
        %845 = vmatprep.subr.mxu0 0.0
        %846 = vmatpush1.msra.mxu0 0.0
        %847 = vmatprep.subr.mxu0 0.0
        %848 = vmatpush1.msra.mxu0 0.0
        %849 = vmatprep.subr.mxu0 0.0
        %850 = vmatpush1.msra.mxu0 0.0
        %851 = vmatprep.subr.mxu0 0.0
        %852 = vmatpush1.msra.mxu0 0.0
        %853 = vmatprep.subr.mxu0 0.0
        %854 = vmatpush1.msra.mxu0 0.0
        %855 = vmatprep.subr.mxu0 0.0
        %856 = vmatpush1.msra.mxu0 0.0
        %857 = vmatprep.subr.mxu0 0.0
        %858 = vmatpush1.msra.mxu0 0.0
        %859 = vmatprep.subr.mxu0 0.0
        %860 = vmatpush1.msra.mxu0 0.0
        %861 = vmatprep.mubr.f32.mxu0 0.0
        %862 = vmatmul.mubr.f32.gmra.mrb[0].mxu0 %v756
        %v863 = vpop.f32.mrb[0].mxu0
        %v864 = vadd.f32 0.0, %v863
        %v865 = vpop.f32.mrb[0].mxu0
        %866 = vmatprep.mubr.f32.mxu0 0.0
        %867 = vmatmul.mubr.f32.gmra.mrb[0].mxu0 %v759
        %v868 = vpop.f32.mrb[0].mxu0
        %v869 = vadd.f32 0.0, %v868
        %v870 = vpop.f32.mrb[0].mxu0
        %871 = vmatprep.mubr.f32.mxu0 0.0
        %872 = vmatmul.mubr.f32.gmra.mrb[0].mxu0 %v762
        %v873 = vpop.f32.mrb[0].mxu0
        %v874 = vadd.f32 0.0, %v873
        %v875 = vpop.f32.mrb[0].mxu0
        %876 = vmatprep.mubr.f32.mxu0 0.0
        %877 = vmatmul.mubr.f32.gmra.mrb[0].mxu0 %v765
        %v878 = vpop.f32.mrb[0].mxu0
        %v879 = vadd.f32 0.0, %v878
        %v880 = vpop.f32.mrb[0].mxu0
        %881 = vmatprep.mubr.f32.mxu0 0.0
        %882 = vmatmul.mubr.f32.gmra.mrb[0].mxu0 %v768
        %v883 = vpop.f32.mrb[0].mxu0
        %v884 = vadd.f32 0.0, %v883
        %v885 = vpop.f32.mrb[0].mxu0
        %886 = vmatprep.mubr.f32.mxu0 0.0
        %887 = vmatmul.mubr.f32.gmra.mrb[0].mxu0 %v771
        %v888 = vpop.f32.mrb[0].mxu0
        %v889 = vadd.f32 0.0, %v888
        %v890 = vpop.f32.mrb[0].mxu0
        %891 = vmatprep.mubr.f32.mxu0 0.0
        %892 = vmatmul.mubr.f32.gmra.mrb[0].mxu0 %v774
        %v893 = vpop.f32.mrb[0].mxu0
        %v894 = vadd.f32 0.0, %v893
        %v895 = vpop.f32.mrb[0].mxu0
        %896 = vmatprep.mubr.f32.mxu0 0.0
        %897 = vmatmul.mubr.f32.gmra.mrb[0].mxu0 %v777
        %v898 = vpop.f32.mrb[0].mxu0
        %v899 = vadd.f32 0.0, %v898
        %v900 = vpop.f32.mrb[0].mxu0
        %901 = vmatprep.mubr.f32.mxu0 0.0
        %902 = vmatmul.mubr.f32.gmra.mrb[0].mxu0 %v780
        %v903 = vpop.f32.mrb[0].mxu0
        %v904 = vadd.f32 0.0, %v903
        %v905 = vpop.f32.mrb[0].mxu0
        %906 = vmatprep.mubr.f32.mxu0 0.0
        %907 = vmatmul.mubr.f32.gmra.mrb[0].mxu0 %v783
        %v908 = vpop.f32.mrb[0].mxu0
        %v909 = vadd.f32 0.0, %v908
        %v910 = vpop.f32.mrb[0].mxu0
        %911 = vmatprep.mubr.f32.mxu0 0.0
        %912 = vmatmul.mubr.f32.gmra.mrb[0].mxu0 %v786
        %v913 = vpop.f32.mrb[0].mxu0
        %v914 = vadd.f32 0.0, %v913
        %v915 = vpop.f32.mrb[0].mxu0
        %916 = vmatprep.mubr.f32.mxu0 0.0
        %917 = vmatmul.mubr.f32.gmra.mrb[0].mxu0 %v789
        %v918 = vpop.f32.mrb[0].mxu0
        %v919 = vadd.f32 0.0, %v918
        %v920 = vpop.f32.mrb[0].mxu0
        %921 = vmatprep.mubr.f32.mxu0 0.0
        %922 = vmatmul.mubr.f32.gmra.mrb[0].mxu0 %v792
        %v923 = vpop.f32.mrb[0].mxu0
        %v924 = vadd.f32 0.0, %v923
        %v925 = vpop.f32.mrb[0].mxu0
        %926 = vmatprep.mubr.f32.mxu0 0.0
        %927 = vmatmul.mubr.f32.gmra.mrb[0].mxu0 %v795
        %v928 = vpop.f32.mrb[0].mxu0
        %v929 = vadd.f32 0.0, %v928
        %v930 = vpop.f32.mrb[0].mxu0
        %931 = vdwg.mxu0
        %v932 = vadd.f32 %v671, %v864
        %v933 = vadd.f32 %v676, %v869
        %v934 = vadd.f32 %v681, %v874
        %v935 = vadd.f32 %v686, %v879
        %v936 = vadd.f32 %v691, %v884
        %v937 = vadd.f32 %v696, %v889
        %v938 = vadd.f32 %v701, %v894
        %v939 = vadd.f32 %v706, %v899
        %v940 = vadd.f32 %v711, %v904
        %v941 = vadd.f32 %v716, %v909
        %v942 = vadd.f32 %v721, %v914
        %v943 = vadd.f32 %v726, %v919
        %v944 = vadd.f32 %v731, %v924
        %v945 = vadd.f32 %v736, %v929
        %v946 = vld [vmem:[%s280 + $0x12] sm:$0xff]
        %v947 = vld [vmem:[%s280 + $0x1a] sm:$0xff]
        %v948 = vld [vmem:[%s280 + $0x22] sm:$0xff]
        %v949 = vld [vmem:[%s280 + $0x2a] sm:$0xff]
        %v950 = vld [vmem:[%s280 + $0x32] sm:$0xff]
        %v951 = vld [vmem:[%s280 + $0x3a] sm:$0xff]
        %v952 = vld [vmem:[%s280 + $0x42] sm:$0xff]
        %v953 = vld [vmem:[%s280 + $0x4a] sm:$0xff]
        %v954 = vld [vmem:[%s280 + $0x52] sm:$0xff]
        %v955 = vld [vmem:[%s280 + $0x5a] sm:$0xff]
        %v956 = vld [vmem:[%s280 + $0x62] sm:$0xff]
        %v957 = vld [vmem:[%s280 + $0x6a] sm:$0xff]
        %v958 = vld [vmem:[%s280 + $0x72] sm:$0xff]
        %v959 = vld [vmem:[%s280 + $0x7a] sm:$0xf]
        %s960 = scalar_lea.vmem [#allocation6], 24
        %v961 = vld [vmem:[%s960] sm:$0xff]
        %v963 = vsel %vm384, %v946, 0
        %v966 = vsel %vm384, %v947, 0
        %v969 = vsel %vm384, %v948, 0
        %v972 = vsel %vm384, %v949, 0
        %v975 = vsel %vm384, %v950, 0
        %v978 = vsel %vm384, %v951, 0
        %v981 = vsel %vm384, %v952, 0
        %v984 = vsel %vm384, %v953, 0
        %v987 = vsel %vm384, %v954, 0
        %v990 = vsel %vm384, %v955, 0
        %v993 = vsel %vm384, %v956, 0
        %v996 = vsel %vm384, %v957, 0
        %v999 = vsel %vm384, %v958, 0
        %v1002 = vsel %vm384, %v959, 0
        %1004 = vmatprep.subr.mxu0 0.0
        %1005 = vmatpush1.msra.mxu0 %v961
        %1006 = vmatprep.subr.mxu0 0.0
        %1007 = vmatpush1.msra.mxu0 0.0
        %1008 = vmatprep.subr.mxu0 0.0
        %1009 = vmatpush1.msra.mxu0 0.0
        %1010 = vmatprep.subr.mxu0 0.0
        %1011 = vmatpush1.msra.mxu0 0.0
        %1012 = vmatprep.subr.mxu0 0.0
        %1013 = vmatpush1.msra.mxu0 0.0
        %1014 = vmatprep.subr.mxu0 0.0
        %1015 = vmatpush1.msra.mxu0 0.0
        %1016 = vmatprep.subr.mxu0 0.0
        %1017 = vmatpush1.msra.mxu0 0.0
        %1018 = vmatprep.subr.mxu0 0.0
        %1019 = vmatpush1.msra.mxu0 0.0
        %1020 = vmatprep.subr.mxu0 0.0
        %1021 = vmatpush1.msra.mxu0 0.0
        %1022 = vmatprep.subr.mxu0 0.0
        %1023 = vmatpush1.msra.mxu0 0.0
        %1024 = vmatprep.subr.mxu0 0.0
        %1025 = vmatpush1.msra.mxu0 0.0
        %1026 = vmatprep.subr.mxu0 0.0
        %1027 = vmatpush1.msra.mxu0 0.0
        %1028 = vmatprep.subr.mxu0 0.0
        %1029 = vmatpush1.msra.mxu0 0.0
        %1030 = vmatprep.subr.mxu0 0.0
        %1031 = vmatpush1.msra.mxu0 0.0
        %1032 = vmatprep.subr.mxu0 0.0
        %1033 = vmatpush1.msra.mxu0 0.0
        %1034 = vmatprep.subr.mxu0 0.0
        %1035 = vmatpush1.msra.mxu0 0.0
        %1036 = vmatprep.subr.mxu0 0.0
        %1037 = vmatpush1.msra.mxu0 0.0
        %1038 = vmatprep.subr.mxu0 0.0
        %1039 = vmatpush1.msra.mxu0 0.0
        %1040 = vmatprep.subr.mxu0 0.0
        %1041 = vmatpush1.msra.mxu0 0.0
        %1042 = vmatprep.subr.mxu0 0.0
        %1043 = vmatpush1.msra.mxu0 0.0
        %1044 = vmatprep.subr.mxu0 0.0
        %1045 = vmatpush1.msra.mxu0 0.0
        %1046 = vmatprep.subr.mxu0 0.0
        %1047 = vmatpush1.msra.mxu0 0.0
        %1048 = vmatprep.subr.mxu0 0.0
        %1049 = vmatpush1.msra.mxu0 0.0
        %1050 = vmatprep.subr.mxu0 0.0
        %1051 = vmatpush1.msra.mxu0 0.0
        %1052 = vmatprep.subr.mxu0 0.0
        %1053 = vmatpush1.msra.mxu0 0.0
        %1054 = vmatprep.subr.mxu0 0.0
        %1055 = vmatpush1.msra.mxu0 0.0
        %1056 = vmatprep.subr.mxu0 0.0
        %1057 = vmatpush1.msra.mxu0 0.0
        %1058 = vmatprep.subr.mxu0 0.0
        %1059 = vmatpush1.msra.mxu0 0.0
        %1060 = vmatprep.subr.mxu0 0.0
        %1061 = vmatpush1.msra.mxu0 0.0
        %1062 = vmatprep.subr.mxu0 0.0
        %1063 = vmatpush1.msra.mxu0 0.0
        %1064 = vmatprep.subr.mxu0 0.0
        %1065 = vmatpush1.msra.mxu0 0.0
        %1066 = vmatprep.subr.mxu0 0.0
        %1067 = vmatpush1.msra.mxu0 0.0
        %1068 = vmatprep.mubr.f32.mxu0 0.0
        %1069 = vmatmul.mubr.f32.gmra.mrb[0].mxu0 %v963
        %v1070 = vpop.f32.mrb[0].mxu0
        %v1071 = vadd.f32 0.0, %v1070
        %v1072 = vpop.f32.mrb[0].mxu0
        %1073 = vmatprep.mubr.f32.mxu0 0.0
        %1074 = vmatmul.mubr.f32.gmra.mrb[0].mxu0 %v966
        %v1075 = vpop.f32.mrb[0].mxu0
        %v1076 = vadd.f32 0.0, %v1075
        %v1077 = vpop.f32.mrb[0].mxu0
        %1078 = vmatprep.mubr.f32.mxu0 0.0
        %1079 = vmatmul.mubr.f32.gmra.mrb[0].mxu0 %v969
        %v1080 = vpop.f32.mrb[0].mxu0
        %v1081 = vadd.f32 0.0, %v1080
        %v1082 = vpop.f32.mrb[0].mxu0
        %1083 = vmatprep.mubr.f32.mxu0 0.0
        %1084 = vmatmul.mubr.f32.gmra.mrb[0].mxu0 %v972
        %v1085 = vpop.f32.mrb[0].mxu0
        %v1086 = vadd.f32 0.0, %v1085
        %v1087 = vpop.f32.mrb[0].mxu0
        %1088 = vmatprep.mubr.f32.mxu0 0.0
        %1089 = vmatmul.mubr.f32.gmra.mrb[0].mxu0 %v975
        %v1090 = vpop.f32.mrb[0].mxu0
        %v1091 = vadd.f32 0.0, %v1090
        %v1092 = vpop.f32.mrb[0].mxu0
        %1093 = vmatprep.mubr.f32.mxu0 0.0
        %1094 = vmatmul.mubr.f32.gmra.mrb[0].mxu0 %v978
        %v1095 = vpop.f32.mrb[0].mxu0
        %v1096 = vadd.f32 0.0, %v1095
        %v1097 = vpop.f32.mrb[0].mxu0
        %1098 = vmatprep.mubr.f32.mxu0 0.0
        %1099 = vmatmul.mubr.f32.gmra.mrb[0].mxu0 %v981
        %v1100 = vpop.f32.mrb[0].mxu0
        %v1101 = vadd.f32 0.0, %v1100
        %v1102 = vpop.f32.mrb[0].mxu0
        %1103 = vmatprep.mubr.f32.mxu0 0.0
        %1104 = vmatmul.mubr.f32.gmra.mrb[0].mxu0 %v984
        %v1105 = vpop.f32.mrb[0].mxu0
        %v1106 = vadd.f32 0.0, %v1105
        %v1107 = vpop.f32.mrb[0].mxu0
        %1108 = vmatprep.mubr.f32.mxu0 0.0
        %1109 = vmatmul.mubr.f32.gmra.mrb[0].mxu0 %v987
        %v1110 = vpop.f32.mrb[0].mxu0
        %v1111 = vadd.f32 0.0, %v1110
        %v1112 = vpop.f32.mrb[0].mxu0
        %1113 = vmatprep.mubr.f32.mxu0 0.0
        %1114 = vmatmul.mubr.f32.gmra.mrb[0].mxu0 %v990
        %v1115 = vpop.f32.mrb[0].mxu0
        %v1116 = vadd.f32 0.0, %v1115
        %v1117 = vpop.f32.mrb[0].mxu0
        %1118 = vmatprep.mubr.f32.mxu0 0.0
        %1119 = vmatmul.mubr.f32.gmra.mrb[0].mxu0 %v993
        %v1120 = vpop.f32.mrb[0].mxu0
        %v1121 = vadd.f32 0.0, %v1120
        %v1122 = vpop.f32.mrb[0].mxu0
        %1123 = vmatprep.mubr.f32.mxu0 0.0
        %1124 = vmatmul.mubr.f32.gmra.mrb[0].mxu0 %v996
        %v1125 = vpop.f32.mrb[0].mxu0
        %v1126 = vadd.f32 0.0, %v1125
        %v1127 = vpop.f32.mrb[0].mxu0
        %1128 = vmatprep.mubr.f32.mxu0 0.0
        %1129 = vmatmul.mubr.f32.gmra.mrb[0].mxu0 %v999
        %v1130 = vpop.f32.mrb[0].mxu0
        %v1131 = vadd.f32 0.0, %v1130
        %v1132 = vpop.f32.mrb[0].mxu0
        %1133 = vmatprep.mubr.f32.mxu0 0.0
        %1134 = vmatmul.mubr.f32.gmra.mrb[0].mxu0 %v1002
        %v1135 = vpop.f32.mrb[0].mxu0
        %v1136 = vadd.f32 0.0, %v1135
        %v1137 = vpop.f32.mrb[0].mxu0
        %1138 = vdwg.mxu0
        %v1139 = vadd.f32 %v932, %v1071
        %v1140 = vadd.f32 %v933, %v1076
        %v1141 = vadd.f32 %v934, %v1081
        %v1142 = vadd.f32 %v935, %v1086
        %v1143 = vadd.f32 %v936, %v1091
        %v1144 = vadd.f32 %v937, %v1096
        %v1145 = vadd.f32 %v938, %v1101
        %v1146 = vadd.f32 %v939, %v1106
        %v1147 = vadd.f32 %v940, %v1111
        %v1148 = vadd.f32 %v941, %v1116
        %v1149 = vadd.f32 %v942, %v1121
        %v1150 = vadd.f32 %v943, %v1126
        %v1151 = vadd.f32 %v944, %v1131
        %v1152 = vadd.f32 %v945, %v1136
        %v1153 = vld [vmem:[%s280 + $0x13] sm:$0xff]
        %v1154 = vld [vmem:[%s280 + $0x1b] sm:$0xff]
        %v1155 = vld [vmem:[%s280 + $0x23] sm:$0xff]
        %v1156 = vld [vmem:[%s280 + $0x2b] sm:$0xff]
        %v1157 = vld [vmem:[%s280 + $0x33] sm:$0xff]
        %v1158 = vld [vmem:[%s280 + $0x3b] sm:$0xff]
        %v1159 = vld [vmem:[%s280 + $0x43] sm:$0xff]
        %v1160 = vld [vmem:[%s280 + $0x4b] sm:$0xff]
        %v1161 = vld [vmem:[%s280 + $0x53] sm:$0xff]
        %v1162 = vld [vmem:[%s280 + $0x5b] sm:$0xff]
        %v1163 = vld [vmem:[%s280 + $0x63] sm:$0xff]
        %v1164 = vld [vmem:[%s280 + $0x6b] sm:$0xff]
        %v1165 = vld [vmem:[%s280 + $0x73] sm:$0xff]
        %v1166 = vld [vmem:[%s280 + $0x7b] sm:$0xf]
        %s1167 = scalar_lea.vmem [#allocation6], 32
        %v1168 = vld [vmem:[%s1167] sm:$0xff]
        %v1170 = vsel %vm384, %v1153, 0
        %v1173 = vsel %vm384, %v1154, 0
        %v1176 = vsel %vm384, %v1155, 0
        %v1179 = vsel %vm384, %v1156, 0
        %v1182 = vsel %vm384, %v1157, 0
        %v1185 = vsel %vm384, %v1158, 0
        %v1188 = vsel %vm384, %v1159, 0
        %v1191 = vsel %vm384, %v1160, 0
        %v1194 = vsel %vm384, %v1161, 0
        %v1197 = vsel %vm384, %v1162, 0
        %v1200 = vsel %vm384, %v1163, 0
        %v1203 = vsel %vm384, %v1164, 0
        %v1206 = vsel %vm384, %v1165, 0
        %v1209 = vsel %vm384, %v1166, 0
        %1211 = vmatprep.subr.mxu0 0.0
        %1212 = vmatpush1.msra.mxu0 %v1168
        %1213 = vmatprep.subr.mxu0 0.0
        %1214 = vmatpush1.msra.mxu0 0.0
        %1215 = vmatprep.subr.mxu0 0.0
        %1216 = vmatpush1.msra.mxu0 0.0
        %1217 = vmatprep.subr.mxu0 0.0
        %1218 = vmatpush1.msra.mxu0 0.0
        %1219 = vmatprep.subr.mxu0 0.0
        %1220 = vmatpush1.msra.mxu0 0.0
        %1221 = vmatprep.subr.mxu0 0.0
        %1222 = vmatpush1.msra.mxu0 0.0
        %1223 = vmatprep.subr.mxu0 0.0
        %1224 = vmatpush1.msra.mxu0 0.0
        %1225 = vmatprep.subr.mxu0 0.0
        %1226 = vmatpush1.msra.mxu0 0.0
        %1227 = vmatprep.subr.mxu0 0.0
        %1228 = vmatpush1.msra.mxu0 0.0
        %1229 = vmatprep.subr.mxu0 0.0
        %1230 = vmatpush1.msra.mxu0 0.0
        %1231 = vmatprep.subr.mxu0 0.0
        %1232 = vmatpush1.msra.mxu0 0.0
        %1233 = vmatprep.subr.mxu0 0.0
        %1234 = vmatpush1.msra.mxu0 0.0
        %1235 = vmatprep.subr.mxu0 0.0
        %1236 = vmatpush1.msra.mxu0 0.0
        %1237 = vmatprep.subr.mxu0 0.0
        %1238 = vmatpush1.msra.mxu0 0.0
        %1239 = vmatprep.subr.mxu0 0.0
        %1240 = vmatpush1.msra.mxu0 0.0
        %1241 = vmatprep.subr.mxu0 0.0
        %1242 = vmatpush1.msra.mxu0 0.0
        %1243 = vmatprep.subr.mxu0 0.0
        %1244 = vmatpush1.msra.mxu0 0.0
        %1245 = vmatprep.subr.mxu0 0.0
        %1246 = vmatpush1.msra.mxu0 0.0
        %1247 = vmatprep.subr.mxu0 0.0
        %1248 = vmatpush1.msra.mxu0 0.0
        %1249 = vmatprep.subr.mxu0 0.0
        %1250 = vmatpush1.msra.mxu0 0.0
        %1251 = vmatprep.subr.mxu0 0.0
        %1252 = vmatpush1.msra.mxu0 0.0
        %1253 = vmatprep.subr.mxu0 0.0
        %1254 = vmatpush1.msra.mxu0 0.0
        %1255 = vmatprep.subr.mxu0 0.0
        %1256 = vmatpush1.msra.mxu0 0.0
        %1257 = vmatprep.subr.mxu0 0.0
        %1258 = vmatpush1.msra.mxu0 0.0
        %1259 = vmatprep.subr.mxu0 0.0
        %1260 = vmatpush1.msra.mxu0 0.0
        %1261 = vmatprep.subr.mxu0 0.0
        %1262 = vmatpush1.msra.mxu0 0.0
        %1263 = vmatprep.subr.mxu0 0.0
        %1264 = vmatpush1.msra.mxu0 0.0
        %1265 = vmatprep.subr.mxu0 0.0
        %1266 = vmatpush1.msra.mxu0 0.0
        %1267 = vmatprep.subr.mxu0 0.0
        %1268 = vmatpush1.msra.mxu0 0.0
        %1269 = vmatprep.subr.mxu0 0.0
        %1270 = vmatpush1.msra.mxu0 0.0
        %1271 = vmatprep.subr.mxu0 0.0
        %1272 = vmatpush1.msra.mxu0 0.0
        %1273 = vmatprep.subr.mxu0 0.0
        %1274 = vmatpush1.msra.mxu0 0.0
        %1275 = vmatprep.mubr.f32.mxu0 0.0
        %1276 = vmatmul.mubr.f32.gmra.mrb[0].mxu0 %v1170
        %v1277 = vpop.f32.mrb[0].mxu0
        %v1278 = vadd.f32 0.0, %v1277
        %v1279 = vpop.f32.mrb[0].mxu0
        %1280 = vmatprep.mubr.f32.mxu0 0.0
        %1281 = vmatmul.mubr.f32.gmra.mrb[0].mxu0 %v1173
        %v1282 = vpop.f32.mrb[0].mxu0
        %v1283 = vadd.f32 0.0, %v1282
        %v1284 = vpop.f32.mrb[0].mxu0
        %1285 = vmatprep.mubr.f32.mxu0 0.0
        %1286 = vmatmul.mubr.f32.gmra.mrb[0].mxu0 %v1176
        %v1287 = vpop.f32.mrb[0].mxu0
        %v1288 = vadd.f32 0.0, %v1287
        %v1289 = vpop.f32.mrb[0].mxu0
        %1290 = vmatprep.mubr.f32.mxu0 0.0
        %1291 = vmatmul.mubr.f32.gmra.mrb[0].mxu0 %v1179
        %v1292 = vpop.f32.mrb[0].mxu0
        %v1293 = vadd.f32 0.0, %v1292
        %v1294 = vpop.f32.mrb[0].mxu0
        %1295 = vmatprep.mubr.f32.mxu0 0.0
        %1296 = vmatmul.mubr.f32.gmra.mrb[0].mxu0 %v1182
        %v1297 = vpop.f32.mrb[0].mxu0
        %v1298 = vadd.f32 0.0, %v1297
        %v1299 = vpop.f32.mrb[0].mxu0
        %1300 = vmatprep.mubr.f32.mxu0 0.0
        %1301 = vmatmul.mubr.f32.gmra.mrb[0].mxu0 %v1185
        %v1302 = vpop.f32.mrb[0].mxu0
        %v1303 = vadd.f32 0.0, %v1302
        %v1304 = vpop.f32.mrb[0].mxu0
        %1305 = vmatprep.mubr.f32.mxu0 0.0
        %1306 = vmatmul.mubr.f32.gmra.mrb[0].mxu0 %v1188
        %v1307 = vpop.f32.mrb[0].mxu0
        %v1308 = vadd.f32 0.0, %v1307
        %v1309 = vpop.f32.mrb[0].mxu0
        %1310 = vmatprep.mubr.f32.mxu0 0.0
        %1311 = vmatmul.mubr.f32.gmra.mrb[0].mxu0 %v1191
        %v1312 = vpop.f32.mrb[0].mxu0
        %v1313 = vadd.f32 0.0, %v1312
        %v1314 = vpop.f32.mrb[0].mxu0
        %1315 = vmatprep.mubr.f32.mxu0 0.0
        %1316 = vmatmul.mubr.f32.gmra.mrb[0].mxu0 %v1194
        %v1317 = vpop.f32.mrb[0].mxu0
        %v1318 = vadd.f32 0.0, %v1317
        %v1319 = vpop.f32.mrb[0].mxu0
        %1320 = vmatprep.mubr.f32.mxu0 0.0
        %1321 = vmatmul.mubr.f32.gmra.mrb[0].mxu0 %v1197
        %v1322 = vpop.f32.mrb[0].mxu0
        %v1323 = vadd.f32 0.0, %v1322
        %v1324 = vpop.f32.mrb[0].mxu0
        %1325 = vmatprep.mubr.f32.mxu0 0.0
        %1326 = vmatmul.mubr.f32.gmra.mrb[0].mxu0 %v1200
        %v1327 = vpop.f32.mrb[0].mxu0
        %v1328 = vadd.f32 0.0, %v1327
        %v1329 = vpop.f32.mrb[0].mxu0
        %1330 = vmatprep.mubr.f32.mxu0 0.0
        %1331 = vmatmul.mubr.f32.gmra.mrb[0].mxu0 %v1203
        %v1332 = vpop.f32.mrb[0].mxu0
        %v1333 = vadd.f32 0.0, %v1332
        %v1334 = vpop.f32.mrb[0].mxu0
        %1335 = vmatprep.mubr.f32.mxu0 0.0
        %1336 = vmatmul.mubr.f32.gmra.mrb[0].mxu0 %v1206
        %v1337 = vpop.f32.mrb[0].mxu0
        %v1338 = vadd.f32 0.0, %v1337
        %v1339 = vpop.f32.mrb[0].mxu0
        %1340 = vmatprep.mubr.f32.mxu0 0.0
        %1341 = vmatmul.mubr.f32.gmra.mrb[0].mxu0 %v1209
        %v1342 = vpop.f32.mrb[0].mxu0
        %v1343 = vadd.f32 0.0, %v1342
        %v1344 = vpop.f32.mrb[0].mxu0
        %1345 = vdwg.mxu0
        %v1346 = vadd.f32 %v1139, %v1278
        %v1347 = vadd.f32 %v1140, %v1283
        %v1348 = vadd.f32 %v1141, %v1288
        %v1349 = vadd.f32 %v1142, %v1293
        %v1350 = vadd.f32 %v1143, %v1298
        %v1351 = vadd.f32 %v1144, %v1303
        %v1352 = vadd.f32 %v1145, %v1308
        %v1353 = vadd.f32 %v1146, %v1313
        %v1354 = vadd.f32 %v1147, %v1318
        %v1355 = vadd.f32 %v1148, %v1323
        %v1356 = vadd.f32 %v1149, %v1328
        %v1357 = vadd.f32 %v1150, %v1333
        %v1358 = vadd.f32 %v1151, %v1338
        %v1359 = vadd.f32 %v1152, %v1343
        %v1360 = vld [vmem:[%s280 + $0x14] sm:$0xff]
        %v1361 = vld [vmem:[%s280 + $0x1c] sm:$0xff]
        %v1362 = vld [vmem:[%s280 + $0x24] sm:$0xff]
        %v1363 = vld [vmem:[%s280 + $0x2c] sm:$0xff]
        %v1364 = vld [vmem:[%s280 + $0x34] sm:$0xff]
        %v1365 = vld [vmem:[%s280 + $0x3c] sm:$0xff]
        %v1366 = vld [vmem:[%s280 + $0x44] sm:$0xff]
        %v1367 = vld [vmem:[%s280 + $0x4c] sm:$0xff]
        %v1368 = vld [vmem:[%s280 + $0x54] sm:$0xff]
        %v1369 = vld [vmem:[%s280 + $0x5c] sm:$0xff]
        %v1370 = vld [vmem:[%s280 + $0x64] sm:$0xff]
        %v1371 = vld [vmem:[%s280 + $0x6c] sm:$0xff]
        %v1372 = vld [vmem:[%s280 + $0x74] sm:$0xff]
        %v1373 = vld [vmem:[%s280 + $0x7c] sm:$0xf]
        %s1374 = scalar_lea.vmem [#allocation6], 40
        %v1375 = vld [vmem:[%s1374] sm:$0xff]
        %v1377 = vsel %vm384, %v1360, 0
        %v1380 = vsel %vm384, %v1361, 0
        %v1383 = vsel %vm384, %v1362, 0
        %v1386 = vsel %vm384, %v1363, 0
        %v1389 = vsel %vm384, %v1364, 0
        %v1392 = vsel %vm384, %v1365, 0
        %v1395 = vsel %vm384, %v1366, 0
        %v1398 = vsel %vm384, %v1367, 0
        %v1401 = vsel %vm384, %v1368, 0
        %v1404 = vsel %vm384, %v1369, 0
        %v1407 = vsel %vm384, %v1370, 0
        %v1410 = vsel %vm384, %v1371, 0
        %v1413 = vsel %vm384, %v1372, 0
        %v1416 = vsel %vm384, %v1373, 0
        %1418 = vmatprep.subr.mxu0 0.0
        %1419 = vmatpush1.msra.mxu0 %v1375
        %1420 = vmatprep.subr.mxu0 0.0
        %1421 = vmatpush1.msra.mxu0 0.0
        %1422 = vmatprep.subr.mxu0 0.0
        %1423 = vmatpush1.msra.mxu0 0.0
        %1424 = vmatprep.subr.mxu0 0.0
        %1425 = vmatpush1.msra.mxu0 0.0
        %1426 = vmatprep.subr.mxu0 0.0
        %1427 = vmatpush1.msra.mxu0 0.0
        %1428 = vmatprep.subr.mxu0 0.0
        %1429 = vmatpush1.msra.mxu0 0.0
        %1430 = vmatprep.subr.mxu0 0.0
        %1431 = vmatpush1.msra.mxu0 0.0
        %1432 = vmatprep.subr.mxu0 0.0
        %1433 = vmatpush1.msra.mxu0 0.0
        %1434 = vmatprep.subr.mxu0 0.0
        %1435 = vmatpush1.msra.mxu0 0.0
        %1436 = vmatprep.subr.mxu0 0.0
        %1437 = vmatpush1.msra.mxu0 0.0
        %1438 = vmatprep.subr.mxu0 0.0
        %1439 = vmatpush1.msra.mxu0 0.0
        %1440 = vmatprep.subr.mxu0 0.0
        %1441 = vmatpush1.msra.mxu0 0.0
        %1442 = vmatprep.subr.mxu0 0.0
        %1443 = vmatpush1.msra.mxu0 0.0
        %1444 = vmatprep.subr.mxu0 0.0
        %1445 = vmatpush1.msra.mxu0 0.0
        %1446 = vmatprep.subr.mxu0 0.0
        %1447 = vmatpush1.msra.mxu0 0.0
        %1448 = vmatprep.subr.mxu0 0.0
        %1449 = vmatpush1.msra.mxu0 0.0
        %1450 = vmatprep.subr.mxu0 0.0
        %1451 = vmatpush1.msra.mxu0 0.0
        %1452 = vmatprep.subr.mxu0 0.0
        %1453 = vmatpush1.msra.mxu0 0.0
        %1454 = vmatprep.subr.mxu0 0.0
        %1455 = vmatpush1.msra.mxu0 0.0
        %1456 = vmatprep.subr.mxu0 0.0
        %1457 = vmatpush1.msra.mxu0 0.0
        %1458 = vmatprep.subr.mxu0 0.0
        %1459 = vmatpush1.msra.mxu0 0.0
        %1460 = vmatprep.subr.mxu0 0.0
        %1461 = vmatpush1.msra.mxu0 0.0
        %1462 = vmatprep.subr.mxu0 0.0
        %1463 = vmatpush1.msra.mxu0 0.0
        %1464 = vmatprep.subr.mxu0 0.0
        %1465 = vmatpush1.msra.mxu0 0.0
        %1466 = vmatprep.subr.mxu0 0.0
        %1467 = vmatpush1.msra.mxu0 0.0
        %1468 = vmatprep.subr.mxu0 0.0
        %1469 = vmatpush1.msra.mxu0 0.0
        %1470 = vmatprep.subr.mxu0 0.0
        %1471 = vmatpush1.msra.mxu0 0.0
        %1472 = vmatprep.subr.mxu0 0.0
        %1473 = vmatpush1.msra.mxu0 0.0
        %1474 = vmatprep.subr.mxu0 0.0
        %1475 = vmatpush1.msra.mxu0 0.0
        %1476 = vmatprep.subr.mxu0 0.0
        %1477 = vmatpush1.msra.mxu0 0.0
        %1478 = vmatprep.subr.mxu0 0.0
        %1479 = vmatpush1.msra.mxu0 0.0
        %1480 = vmatprep.subr.mxu0 0.0
        %1481 = vmatpush1.msra.mxu0 0.0
        %1482 = vmatprep.mubr.f32.mxu0 0.0
        %1483 = vmatmul.mubr.f32.gmra.mrb[0].mxu0 %v1377
        %v1484 = vpop.f32.mrb[0].mxu0
        %v1485 = vadd.f32 0.0, %v1484
        %v1486 = vpop.f32.mrb[0].mxu0
        %1487 = vmatprep.mubr.f32.mxu0 0.0
        %1488 = vmatmul.mubr.f32.gmra.mrb[0].mxu0 %v1380
        %v1489 = vpop.f32.mrb[0].mxu0
        %v1490 = vadd.f32 0.0, %v1489
        %v1491 = vpop.f32.mrb[0].mxu0
        %1492 = vmatprep.mubr.f32.mxu0 0.0
        %1493 = vmatmul.mubr.f32.gmra.mrb[0].mxu0 %v1383
        %v1494 = vpop.f32.mrb[0].mxu0
        %v1495 = vadd.f32 0.0, %v1494
        %v1496 = vpop.f32.mrb[0].mxu0
        %1497 = vmatprep.mubr.f32.mxu0 0.0
        %1498 = vmatmul.mubr.f32.gmra.mrb[0].mxu0 %v1386
        %v1499 = vpop.f32.mrb[0].mxu0
        %v1500 = vadd.f32 0.0, %v1499
        %v1501 = vpop.f32.mrb[0].mxu0
        %1502 = vmatprep.mubr.f32.mxu0 0.0
        %1503 = vmatmul.mubr.f32.gmra.mrb[0].mxu0 %v1389
        %v1504 = vpop.f32.mrb[0].mxu0
        %v1505 = vadd.f32 0.0, %v1504
        %v1506 = vpop.f32.mrb[0].mxu0
        %1507 = vmatprep.mubr.f32.mxu0 0.0
        %1508 = vmatmul.mubr.f32.gmra.mrb[0].mxu0 %v1392
        %v1509 = vpop.f32.mrb[0].mxu0
        %v1510 = vadd.f32 0.0, %v1509
        %v1511 = vpop.f32.mrb[0].mxu0
        %1512 = vmatprep.mubr.f32.mxu0 0.0
        %1513 = vmatmul.mubr.f32.gmra.mrb[0].mxu0 %v1395
        %v1514 = vpop.f32.mrb[0].mxu0
        %v1515 = vadd.f32 0.0, %v1514
        %v1516 = vpop.f32.mrb[0].mxu0
        %1517 = vmatprep.mubr.f32.mxu0 0.0
        %1518 = vmatmul.mubr.f32.gmra.mrb[0].mxu0 %v1398
        %v1519 = vpop.f32.mrb[0].mxu0
        %v1520 = vadd.f32 0.0, %v1519
        %v1521 = vpop.f32.mrb[0].mxu0
        %1522 = vmatprep.mubr.f32.mxu0 0.0
        %1523 = vmatmul.mubr.f32.gmra.mrb[0].mxu0 %v1401
        %v1524 = vpop.f32.mrb[0].mxu0
        %v1525 = vadd.f32 0.0, %v1524
        %v1526 = vpop.f32.mrb[0].mxu0
        %1527 = vmatprep.mubr.f32.mxu0 0.0
        %1528 = vmatmul.mubr.f32.gmra.mrb[0].mxu0 %v1404
        %v1529 = vpop.f32.mrb[0].mxu0
        %v1530 = vadd.f32 0.0, %v1529
        %v1531 = vpop.f32.mrb[0].mxu0
        %1532 = vmatprep.mubr.f32.mxu0 0.0
        %1533 = vmatmul.mubr.f32.gmra.mrb[0].mxu0 %v1407
        %v1534 = vpop.f32.mrb[0].mxu0
        %v1535 = vadd.f32 0.0, %v1534
        %v1536 = vpop.f32.mrb[0].mxu0
        %1537 = vmatprep.mubr.f32.mxu0 0.0
        %1538 = vmatmul.mubr.f32.gmra.mrb[0].mxu0 %v1410
        %v1539 = vpop.f32.mrb[0].mxu0
        %v1540 = vadd.f32 0.0, %v1539
        %v1541 = vpop.f32.mrb[0].mxu0
        %1542 = vmatprep.mubr.f32.mxu0 0.0
        %1543 = vmatmul.mubr.f32.gmra.mrb[0].mxu0 %v1413
        %v1544 = vpop.f32.mrb[0].mxu0
        %v1545 = vadd.f32 0.0, %v1544
        %v1546 = vpop.f32.mrb[0].mxu0
        %1547 = vmatprep.mubr.f32.mxu0 0.0
        %1548 = vmatmul.mubr.f32.gmra.mrb[0].mxu0 %v1416
        %v1549 = vpop.f32.mrb[0].mxu0
        %v1550 = vadd.f32 0.0, %v1549
        %v1551 = vpop.f32.mrb[0].mxu0
        %1552 = vdwg.mxu0
        %v1553 = vadd.f32 %v1346, %v1485
        %v1554 = vadd.f32 %v1347, %v1490
        %v1555 = vadd.f32 %v1348, %v1495
        %v1556 = vadd.f32 %v1349, %v1500
        %v1557 = vadd.f32 %v1350, %v1505
        %v1558 = vadd.f32 %v1351, %v1510
        %v1559 = vadd.f32 %v1352, %v1515
        %v1560 = vadd.f32 %v1353, %v1520
        %v1561 = vadd.f32 %v1354, %v1525
        %v1562 = vadd.f32 %v1355, %v1530
        %v1563 = vadd.f32 %v1356, %v1535
        %v1564 = vadd.f32 %v1357, %v1540
        %v1565 = vadd.f32 %v1358, %v1545
        %v1566 = vadd.f32 %v1359, %v1550
        %v1567 = vld [vmem:[%s280 + $0x24] sm:$0xff]
        %v1568 = vld [vmem:[%s280 + $0x2c] sm:$0xff]
        %v1569 = vld [vmem:[%s280 + $0x34] sm:$0xff]
        %v1570 = vld [vmem:[%s280 + $0x3c] sm:$0xff]
        %v1571 = vld [vmem:[%s280 + $0x44] sm:$0xff]
        %v1572 = vld [vmem:[%s280 + $0x4c] sm:$0xff]
        %v1573 = vld [vmem:[%s280 + $0x54] sm:$0xff]
        %v1574 = vld [vmem:[%s280 + $0x5c] sm:$0xff]
        %v1575 = vld [vmem:[%s280 + $0x64] sm:$0xff]
        %v1576 = vld [vmem:[%s280 + $0x6c] sm:$0xff]
        %v1577 = vld [vmem:[%s280 + $0x74] sm:$0xff]
        %v1578 = vld [vmem:[%s280 + $0x7c] sm:$0xff]
        %v1579 = vld [vmem:[%s280 + $0x84] sm:$0xff]
        %v1580 = vld [vmem:[%s280 + $0x8c] sm:$0xf]
        %s1581 = scalar_lea.vmem [#allocation6], 48
        %v1582 = vld [vmem:[%s1581] sm:$0xff]
        %v1584 = vsel %vm384, %v1567, 0
        %v1587 = vsel %vm384, %v1568, 0
        %v1590 = vsel %vm384, %v1569, 0
        %v1593 = vsel %vm384, %v1570, 0
        %v1596 = vsel %vm384, %v1571, 0
        %v1599 = vsel %vm384, %v1572, 0
        %v1602 = vsel %vm384, %v1573, 0
        %v1605 = vsel %vm384, %v1574, 0
        %v1608 = vsel %vm384, %v1575, 0
        %v1611 = vsel %vm384, %v1576, 0
        %v1614 = vsel %vm384, %v1577, 0
        %v1617 = vsel %vm384, %v1578, 0
        %v1620 = vsel %vm384, %v1579, 0
        %v1623 = vsel %vm384, %v1580, 0
        %1625 = vmatprep.subr.mxu0 0.0
        %1626 = vmatpush1.msra.mxu0 %v1582
        %1627 = vmatprep.subr.mxu0 0.0
        %1628 = vmatpush1.msra.mxu0 0.0
        %1629 = vmatprep.subr.mxu0 0.0
        %1630 = vmatpush1.msra.mxu0 0.0
        %1631 = vmatprep.subr.mxu0 0.0
        %1632 = vmatpush1.msra.mxu0 0.0
        %1633 = vmatprep.subr.mxu0 0.0
        %1634 = vmatpush1.msra.mxu0 0.0
        %1635 = vmatprep.subr.mxu0 0.0
        %1636 = vmatpush1.msra.mxu0 0.0
        %1637 = vmatprep.subr.mxu0 0.0
        %1638 = vmatpush1.msra.mxu0 0.0
        %1639 = vmatprep.subr.mxu0 0.0
        %1640 = vmatpush1.msra.mxu0 0.0
        %1641 = vmatprep.subr.mxu0 0.0
        %1642 = vmatpush1.msra.mxu0 0.0
        %1643 = vmatprep.subr.mxu0 0.0
        %1644 = vmatpush1.msra.mxu0 0.0
        %1645 = vmatprep.subr.mxu0 0.0
        %1646 = vmatpush1.msra.mxu0 0.0
        %1647 = vmatprep.subr.mxu0 0.0
        %1648 = vmatpush1.msra.mxu0 0.0
        %1649 = vmatprep.subr.mxu0 0.0
        %1650 = vmatpush1.msra.mxu0 0.0
        %1651 = vmatprep.subr.mxu0 0.0
        %1652 = vmatpush1.msra.mxu0 0.0
        %1653 = vmatprep.subr.mxu0 0.0
        %1654 = vmatpush1.msra.mxu0 0.0
        %1655 = vmatprep.subr.mxu0 0.0
        %1656 = vmatpush1.msra.mxu0 0.0
        %1657 = vmatprep.subr.mxu0 0.0
        %1658 = vmatpush1.msra.mxu0 0.0
        %1659 = vmatprep.subr.mxu0 0.0
        %1660 = vmatpush1.msra.mxu0 0.0
        %1661 = vmatprep.subr.mxu0 0.0
        %1662 = vmatpush1.msra.mxu0 0.0
        %1663 = vmatprep.subr.mxu0 0.0
        %1664 = vmatpush1.msra.mxu0 0.0
        %1665 = vmatprep.subr.mxu0 0.0
        %1666 = vmatpush1.msra.mxu0 0.0
        %1667 = vmatprep.subr.mxu0 0.0
        %1668 = vmatpush1.msra.mxu0 0.0
        %1669 = vmatprep.subr.mxu0 0.0
        %1670 = vmatpush1.msra.mxu0 0.0
        %1671 = vmatprep.subr.mxu0 0.0
        %1672 = vmatpush1.msra.mxu0 0.0
        %1673 = vmatprep.subr.mxu0 0.0
        %1674 = vmatpush1.msra.mxu0 0.0
        %1675 = vmatprep.subr.mxu0 0.0
        %1676 = vmatpush1.msra.mxu0 0.0
        %1677 = vmatprep.subr.mxu0 0.0
        %1678 = vmatpush1.msra.mxu0 0.0
        %1679 = vmatprep.subr.mxu0 0.0
        %1680 = vmatpush1.msra.mxu0 0.0
        %1681 = vmatprep.subr.mxu0 0.0
        %1682 = vmatpush1.msra.mxu0 0.0
        %1683 = vmatprep.subr.mxu0 0.0
        %1684 = vmatpush1.msra.mxu0 0.0
        %1685 = vmatprep.subr.mxu0 0.0
        %1686 = vmatpush1.msra.mxu0 0.0
        %1687 = vmatprep.subr.mxu0 0.0
        %1688 = vmatpush1.msra.mxu0 0.0
        %1689 = vmatprep.mubr.f32.mxu0 0.0
        %1690 = vmatmul.mubr.f32.gmra.mrb[0].mxu0 %v1584
        %v1691 = vpop.f32.mrb[0].mxu0
        %v1692 = vadd.f32 0.0, %v1691
        %v1693 = vpop.f32.mrb[0].mxu0
        %1694 = vmatprep.mubr.f32.mxu0 0.0
        %1695 = vmatmul.mubr.f32.gmra.mrb[0].mxu0 %v1587
        %v1696 = vpop.f32.mrb[0].mxu0
        %v1697 = vadd.f32 0.0, %v1696
        %v1698 = vpop.f32.mrb[0].mxu0
        %1699 = vmatprep.mubr.f32.mxu0 0.0
        %1700 = vmatmul.mubr.f32.gmra.mrb[0].mxu0 %v1590
        %v1701 = vpop.f32.mrb[0].mxu0
        %v1702 = vadd.f32 0.0, %v1701
        %v1703 = vpop.f32.mrb[0].mxu0
        %1704 = vmatprep.mubr.f32.mxu0 0.0
        %1705 = vmatmul.mubr.f32.gmra.mrb[0].mxu0 %v1593
        %v1706 = vpop.f32.mrb[0].mxu0
        %v1707 = vadd.f32 0.0, %v1706
        %v1708 = vpop.f32.mrb[0].mxu0
        %1709 = vmatprep.mubr.f32.mxu0 0.0
        %1710 = vmatmul.mubr.f32.gmra.mrb[0].mxu0 %v1596
        %v1711 = vpop.f32.mrb[0].mxu0
        %v1712 = vadd.f32 0.0, %v1711
        %v1713 = vpop.f32.mrb[0].mxu0
        %1714 = vmatprep.mubr.f32.mxu0 0.0
        %1715 = vmatmul.mubr.f32.gmra.mrb[0].mxu0 %v1599
        %v1716 = vpop.f32.mrb[0].mxu0
        %v1717 = vadd.f32 0.0, %v1716
        %v1718 = vpop.f32.mrb[0].mxu0
        %1719 = vmatprep.mubr.f32.mxu0 0.0
        %1720 = vmatmul.mubr.f32.gmra.mrb[0].mxu0 %v1602
        %v1721 = vpop.f32.mrb[0].mxu0
        %v1722 = vadd.f32 0.0, %v1721
        %v1723 = vpop.f32.mrb[0].mxu0
        %1724 = vmatprep.mubr.f32.mxu0 0.0
        %1725 = vmatmul.mubr.f32.gmra.mrb[0].mxu0 %v1605
        %v1726 = vpop.f32.mrb[0].mxu0
        %v1727 = vadd.f32 0.0, %v1726
        %v1728 = vpop.f32.mrb[0].mxu0
        %1729 = vmatprep.mubr.f32.mxu0 0.0
        %1730 = vmatmul.mubr.f32.gmra.mrb[0].mxu0 %v1608
        %v1731 = vpop.f32.mrb[0].mxu0
        %v1732 = vadd.f32 0.0, %v1731
        %v1733 = vpop.f32.mrb[0].mxu0
        %1734 = vmatprep.mubr.f32.mxu0 0.0
        %1735 = vmatmul.mubr.f32.gmra.mrb[0].mxu0 %v1611
        %v1736 = vpop.f32.mrb[0].mxu0
        %v1737 = vadd.f32 0.0, %v1736
        %v1738 = vpop.f32.mrb[0].mxu0
        %1739 = vmatprep.mubr.f32.mxu0 0.0
        %1740 = vmatmul.mubr.f32.gmra.mrb[0].mxu0 %v1614
        %v1741 = vpop.f32.mrb[0].mxu0
        %v1742 = vadd.f32 0.0, %v1741
        %v1743 = vpop.f32.mrb[0].mxu0
        %1744 = vmatprep.mubr.f32.mxu0 0.0
        %1745 = vmatmul.mubr.f32.gmra.mrb[0].mxu0 %v1617
        %v1746 = vpop.f32.mrb[0].mxu0
        %v1747 = vadd.f32 0.0, %v1746
        %v1748 = vpop.f32.mrb[0].mxu0
        %1749 = vmatprep.mubr.f32.mxu0 0.0
        %1750 = vmatmul.mubr.f32.gmra.mrb[0].mxu0 %v1620
        %v1751 = vpop.f32.mrb[0].mxu0
        %v1752 = vadd.f32 0.0, %v1751
        %v1753 = vpop.f32.mrb[0].mxu0
        %1754 = vmatprep.mubr.f32.mxu0 0.0
        %1755 = vmatmul.mubr.f32.gmra.mrb[0].mxu0 %v1623
        %v1756 = vpop.f32.mrb[0].mxu0
        %v1757 = vadd.f32 0.0, %v1756
        %v1758 = vpop.f32.mrb[0].mxu0
        %1759 = vdwg.mxu0
        %v1760 = vadd.f32 %v1553, %v1692
        %v1761 = vadd.f32 %v1554, %v1697
        %v1762 = vadd.f32 %v1555, %v1702
        %v1763 = vadd.f32 %v1556, %v1707
        %v1764 = vadd.f32 %v1557, %v1712
        %v1765 = vadd.f32 %v1558, %v1717
        %v1766 = vadd.f32 %v1559, %v1722
        %v1767 = vadd.f32 %v1560, %v1727
        %v1768 = vadd.f32 %v1561, %v1732
        %v1769 = vadd.f32 %v1562, %v1737
        %v1770 = vadd.f32 %v1563, %v1742
        %v1771 = vadd.f32 %v1564, %v1747
        %v1772 = vadd.f32 %v1565, %v1752
        %v1773 = vadd.f32 %v1566, %v1757
        %v1774 = vld [vmem:[%s280 + $0x25] sm:$0xff]
        %v1775 = vld [vmem:[%s280 + $0x2d] sm:$0xff]
        %v1776 = vld [vmem:[%s280 + $0x35] sm:$0xff]
        %v1777 = vld [vmem:[%s280 + $0x3d] sm:$0xff]
        %v1778 = vld [vmem:[%s280 + $0x45] sm:$0xff]
        %v1779 = vld [vmem:[%s280 + $0x4d] sm:$0xff]
        %v1780 = vld [vmem:[%s280 + $0x55] sm:$0xff]
        %v1781 = vld [vmem:[%s280 + $0x5d] sm:$0xff]
        %v1782 = vld [vmem:[%s280 + $0x65] sm:$0xff]
        %v1783 = vld [vmem:[%s280 + $0x6d] sm:$0xff]
        %v1784 = vld [vmem:[%s280 + $0x75] sm:$0xff]
        %v1785 = vld [vmem:[%s280 + $0x7d] sm:$0xff]
        %v1786 = vld [vmem:[%s280 + $0x85] sm:$0xff]
        %v1787 = vld [vmem:[%s280 + $0x8d] sm:$0xf]
        %s1788 = scalar_lea.vmem [#allocation6], 56
        %v1789 = vld [vmem:[%s1788] sm:$0xff]
        %v1791 = vsel %vm384, %v1774, 0
        %v1794 = vsel %vm384, %v1775, 0
        %v1797 = vsel %vm384, %v1776, 0
        %v1800 = vsel %vm384, %v1777, 0
        %v1803 = vsel %vm384, %v1778, 0
        %v1806 = vsel %vm384, %v1779, 0
        %v1809 = vsel %vm384, %v1780, 0
        %v1812 = vsel %vm384, %v1781, 0
        %v1815 = vsel %vm384, %v1782, 0
        %v1818 = vsel %vm384, %v1783, 0
        %v1821 = vsel %vm384, %v1784, 0
        %v1824 = vsel %vm384, %v1785, 0
        %v1827 = vsel %vm384, %v1786, 0
        %v1830 = vsel %vm384, %v1787, 0
        %1832 = vmatprep.subr.mxu0 0.0
        %1833 = vmatpush1.msra.mxu0 %v1789
        %1834 = vmatprep.subr.mxu0 0.0
        %1835 = vmatpush1.msra.mxu0 0.0
        %1836 = vmatprep.subr.mxu0 0.0
        %1837 = vmatpush1.msra.mxu0 0.0
        %1838 = vmatprep.subr.mxu0 0.0
        %1839 = vmatpush1.msra.mxu0 0.0
        %1840 = vmatprep.subr.mxu0 0.0
        %1841 = vmatpush1.msra.mxu0 0.0
        %1842 = vmatprep.subr.mxu0 0.0
        %1843 = vmatpush1.msra.mxu0 0.0
        %1844 = vmatprep.subr.mxu0 0.0
        %1845 = vmatpush1.msra.mxu0 0.0
        %1846 = vmatprep.subr.mxu0 0.0
        %1847 = vmatpush1.msra.mxu0 0.0
        %1848 = vmatprep.subr.mxu0 0.0
        %1849 = vmatpush1.msra.mxu0 0.0
        %1850 = vmatprep.subr.mxu0 0.0
        %1851 = vmatpush1.msra.mxu0 0.0
        %1852 = vmatprep.subr.mxu0 0.0
        %1853 = vmatpush1.msra.mxu0 0.0
        %1854 = vmatprep.subr.mxu0 0.0
        %1855 = vmatpush1.msra.mxu0 0.0
        %1856 = vmatprep.subr.mxu0 0.0
        %1857 = vmatpush1.msra.mxu0 0.0
        %1858 = vmatprep.subr.mxu0 0.0
        %1859 = vmatpush1.msra.mxu0 0.0
        %1860 = vmatprep.subr.mxu0 0.0
        %1861 = vmatpush1.msra.mxu0 0.0
        %1862 = vmatprep.subr.mxu0 0.0
        %1863 = vmatpush1.msra.mxu0 0.0
        %1864 = vmatprep.subr.mxu0 0.0
        %1865 = vmatpush1.msra.mxu0 0.0
        %1866 = vmatprep.subr.mxu0 0.0
        %1867 = vmatpush1.msra.mxu0 0.0
        %1868 = vmatprep.subr.mxu0 0.0
        %1869 = vmatpush1.msra.mxu0 0.0
        %1870 = vmatprep.subr.mxu0 0.0
        %1871 = vmatpush1.msra.mxu0 0.0
        %1872 = vmatprep.subr.mxu0 0.0
        %1873 = vmatpush1.msra.mxu0 0.0
        %1874 = vmatprep.subr.mxu0 0.0
        %1875 = vmatpush1.msra.mxu0 0.0
        %1876 = vmatprep.subr.mxu0 0.0
        %1877 = vmatpush1.msra.mxu0 0.0
        %1878 = vmatprep.subr.mxu0 0.0
        %1879 = vmatpush1.msra.mxu0 0.0
        %1880 = vmatprep.subr.mxu0 0.0
        %1881 = vmatpush1.msra.mxu0 0.0
        %1882 = vmatprep.subr.mxu0 0.0
        %1883 = vmatpush1.msra.mxu0 0.0
        %1884 = vmatprep.subr.mxu0 0.0
        %1885 = vmatpush1.msra.mxu0 0.0
        %1886 = vmatprep.subr.mxu0 0.0
        %1887 = vmatpush1.msra.mxu0 0.0
        %1888 = vmatprep.subr.mxu0 0.0
        %1889 = vmatpush1.msra.mxu0 0.0
        %1890 = vmatprep.subr.mxu0 0.0
        %1891 = vmatpush1.msra.mxu0 0.0
        %1892 = vmatprep.subr.mxu0 0.0
        %1893 = vmatpush1.msra.mxu0 0.0
        %1894 = vmatprep.subr.mxu0 0.0
        %1895 = vmatpush1.msra.mxu0 0.0
        %1896 = vmatprep.mubr.f32.mxu0 0.0
        %1897 = vmatmul.mubr.f32.gmra.mrb[0].mxu0 %v1791
        %v1898 = vpop.f32.mrb[0].mxu0
        %v1899 = vadd.f32 0.0, %v1898
        %v1900 = vpop.f32.mrb[0].mxu0
        %1901 = vmatprep.mubr.f32.mxu0 0.0
        %1902 = vmatmul.mubr.f32.gmra.mrb[0].mxu0 %v1794
        %v1903 = vpop.f32.mrb[0].mxu0
        %v1904 = vadd.f32 0.0, %v1903
        %v1905 = vpop.f32.mrb[0].mxu0
        %1906 = vmatprep.mubr.f32.mxu0 0.0
        %1907 = vmatmul.mubr.f32.gmra.mrb[0].mxu0 %v1797
        %v1908 = vpop.f32.mrb[0].mxu0
        %v1909 = vadd.f32 0.0, %v1908
        %v1910 = vpop.f32.mrb[0].mxu0
        %1911 = vmatprep.mubr.f32.mxu0 0.0
        %1912 = vmatmul.mubr.f32.gmra.mrb[0].mxu0 %v1800
        %v1913 = vpop.f32.mrb[0].mxu0
        %v1914 = vadd.f32 0.0, %v1913
        %v1915 = vpop.f32.mrb[0].mxu0
        %1916 = vmatprep.mubr.f32.mxu0 0.0
        %1917 = vmatmul.mubr.f32.gmra.mrb[0].mxu0 %v1803
        %v1918 = vpop.f32.mrb[0].mxu0
        %v1919 = vadd.f32 0.0, %v1918
        %v1920 = vpop.f32.mrb[0].mxu0
        %1921 = vmatprep.mubr.f32.mxu0 0.0
        %1922 = vmatmul.mubr.f32.gmra.mrb[0].mxu0 %v1806
        %v1923 = vpop.f32.mrb[0].mxu0
        %v1924 = vadd.f32 0.0, %v1923
        %v1925 = vpop.f32.mrb[0].mxu0
        %1926 = vmatprep.mubr.f32.mxu0 0.0
        %1927 = vmatmul.mubr.f32.gmra.mrb[0].mxu0 %v1809
        %v1928 = vpop.f32.mrb[0].mxu0
        %v1929 = vadd.f32 0.0, %v1928
        %v1930 = vpop.f32.mrb[0].mxu0
        %1931 = vmatprep.mubr.f32.mxu0 0.0
        %1932 = vmatmul.mubr.f32.gmra.mrb[0].mxu0 %v1812
        %v1933 = vpop.f32.mrb[0].mxu0
        %v1934 = vadd.f32 0.0, %v1933
        %v1935 = vpop.f32.mrb[0].mxu0
        %1936 = vmatprep.mubr.f32.mxu0 0.0
        %1937 = vmatmul.mubr.f32.gmra.mrb[0].mxu0 %v1815
        %v1938 = vpop.f32.mrb[0].mxu0
        %v1939 = vadd.f32 0.0, %v1938
        %v1940 = vpop.f32.mrb[0].mxu0
        %1941 = vmatprep.mubr.f32.mxu0 0.0
        %1942 = vmatmul.mubr.f32.gmra.mrb[0].mxu0 %v1818
        %v1943 = vpop.f32.mrb[0].mxu0
        %v1944 = vadd.f32 0.0, %v1943
        %v1945 = vpop.f32.mrb[0].mxu0
        %1946 = vmatprep.mubr.f32.mxu0 0.0
        %1947 = vmatmul.mubr.f32.gmra.mrb[0].mxu0 %v1821
        %v1948 = vpop.f32.mrb[0].mxu0
        %v1949 = vadd.f32 0.0, %v1948
        %v1950 = vpop.f32.mrb[0].mxu0
        %1951 = vmatprep.mubr.f32.mxu0 0.0
        %1952 = vmatmul.mubr.f32.gmra.mrb[0].mxu0 %v1824
        %v1953 = vpop.f32.mrb[0].mxu0
        %v1954 = vadd.f32 0.0, %v1953
        %v1955 = vpop.f32.mrb[0].mxu0
        %1956 = vmatprep.mubr.f32.mxu0 0.0
        %1957 = vmatmul.mubr.f32.gmra.mrb[0].mxu0 %v1827
        %v1958 = vpop.f32.mrb[0].mxu0
        %v1959 = vadd.f32 0.0, %v1958
        %v1960 = vpop.f32.mrb[0].mxu0
        %1961 = vmatprep.mubr.f32.mxu0 0.0
        %1962 = vmatmul.mubr.f32.gmra.mrb[0].mxu0 %v1830
        %v1963 = vpop.f32.mrb[0].mxu0
        %v1964 = vadd.f32 0.0, %v1963
        %v1965 = vpop.f32.mrb[0].mxu0
        %1966 = vdwg.mxu0
        %v1967 = vadd.f32 %v1760, %v1899
        %v1968 = vadd.f32 %v1761, %v1904
        %v1969 = vadd.f32 %v1762, %v1909
        %v1970 = vadd.f32 %v1763, %v1914
        %v1971 = vadd.f32 %v1764, %v1919
        %v1972 = vadd.f32 %v1765, %v1924
        %v1973 = vadd.f32 %v1766, %v1929
        %v1974 = vadd.f32 %v1767, %v1934
        %v1975 = vadd.f32 %v1768, %v1939
        %v1976 = vadd.f32 %v1769, %v1944
        %v1977 = vadd.f32 %v1770, %v1949
        %v1978 = vadd.f32 %v1771, %v1954
        %v1979 = vadd.f32 %v1772, %v1959
        %v1980 = vadd.f32 %v1773, %v1964
        %v1981 = vld [vmem:[%s280 + $0x26] sm:$0xff]
        %v1982 = vld [vmem:[%s280 + $0x2e] sm:$0xff]
        %v1983 = vld [vmem:[%s280 + $0x36] sm:$0xff]
        %v1984 = vld [vmem:[%s280 + $0x3e] sm:$0xff]
        %v1985 = vld [vmem:[%s280 + $0x46] sm:$0xff]
        %v1986 = vld [vmem:[%s280 + $0x4e] sm:$0xff]
        %v1987 = vld [vmem:[%s280 + $0x56] sm:$0xff]
        %v1988 = vld [vmem:[%s280 + $0x5e] sm:$0xff]
        %v1989 = vld [vmem:[%s280 + $0x66] sm:$0xff]
        %v1990 = vld [vmem:[%s280 + $0x6e] sm:$0xff]
        %v1991 = vld [vmem:[%s280 + $0x76] sm:$0xff]
        %v1992 = vld [vmem:[%s280 + $0x7e] sm:$0xff]
        %v1993 = vld [vmem:[%s280 + $0x86] sm:$0xff]
        %v1994 = vld [vmem:[%s280 + $0x8e] sm:$0xf]
        %s1995 = scalar_lea.vmem [#allocation6], 64
        %v1996 = vld [vmem:[%s1995] sm:$0xff]
        %v1998 = vsel %vm384, %v1981, 0
        %v2001 = vsel %vm384, %v1982, 0
        %v2004 = vsel %vm384, %v1983, 0
        %v2007 = vsel %vm384, %v1984, 0
        %v2010 = vsel %vm384, %v1985, 0
        %v2013 = vsel %vm384, %v1986, 0
        %v2016 = vsel %vm384, %v1987, 0
        %v2019 = vsel %vm384, %v1988, 0
        %v2022 = vsel %vm384, %v1989, 0
        %v2025 = vsel %vm384, %v1990, 0
        %v2028 = vsel %vm384, %v1991, 0
        %v2031 = vsel %vm384, %v1992, 0
        %v2034 = vsel %vm384, %v1993, 0
        %v2037 = vsel %vm384, %v1994, 0
        %2039 = vmatprep.subr.mxu0 0.0
        %2040 = vmatpush1.msra.mxu0 %v1996
        %2041 = vmatprep.subr.mxu0 0.0
        %2042 = vmatpush1.msra.mxu0 0.0
        %2043 = vmatprep.subr.mxu0 0.0
        %2044 = vmatpush1.msra.mxu0 0.0
        %2045 = vmatprep.subr.mxu0 0.0
        %2046 = vmatpush1.msra.mxu0 0.0
        %2047 = vmatprep.subr.mxu0 0.0
        %2048 = vmatpush1.msra.mxu0 0.0
        %2049 = vmatprep.subr.mxu0 0.0
        %2050 = vmatpush1.msra.mxu0 0.0
        %2051 = vmatprep.subr.mxu0 0.0
        %2052 = vmatpush1.msra.mxu0 0.0
        %2053 = vmatprep.subr.mxu0 0.0
        %2054 = vmatpush1.msra.mxu0 0.0
        %2055 = vmatprep.subr.mxu0 0.0
        %2056 = vmatpush1.msra.mxu0 0.0
        %2057 = vmatprep.subr.mxu0 0.0
        %2058 = vmatpush1.msra.mxu0 0.0
        %2059 = vmatprep.subr.mxu0 0.0
        %2060 = vmatpush1.msra.mxu0 0.0
        %2061 = vmatprep.subr.mxu0 0.0
        %2062 = vmatpush1.msra.mxu0 0.0
        %2063 = vmatprep.subr.mxu0 0.0
        %2064 = vmatpush1.msra.mxu0 0.0
        %2065 = vmatprep.subr.mxu0 0.0
        %2066 = vmatpush1.msra.mxu0 0.0
        %2067 = vmatprep.subr.mxu0 0.0
        %2068 = vmatpush1.msra.mxu0 0.0
        %2069 = vmatprep.subr.mxu0 0.0
        %2070 = vmatpush1.msra.mxu0 0.0
        %2071 = vmatprep.subr.mxu0 0.0
        %2072 = vmatpush1.msra.mxu0 0.0
        %2073 = vmatprep.subr.mxu0 0.0
        %2074 = vmatpush1.msra.mxu0 0.0
        %2075 = vmatprep.subr.mxu0 0.0
        %2076 = vmatpush1.msra.mxu0 0.0
        %2077 = vmatprep.subr.mxu0 0.0
        %2078 = vmatpush1.msra.mxu0 0.0
        %2079 = vmatprep.subr.mxu0 0.0
        %2080 = vmatpush1.msra.mxu0 0.0
        %2081 = vmatprep.subr.mxu0 0.0
        %2082 = vmatpush1.msra.mxu0 0.0
        %2083 = vmatprep.subr.mxu0 0.0
        %2084 = vmatpush1.msra.mxu0 0.0
        %2085 = vmatprep.subr.mxu0 0.0
        %2086 = vmatpush1.msra.mxu0 0.0
        %2087 = vmatprep.subr.mxu0 0.0
        %2088 = vmatpush1.msra.mxu0 0.0
        %2089 = vmatprep.subr.mxu0 0.0
        %2090 = vmatpush1.msra.mxu0 0.0
        %2091 = vmatprep.subr.mxu0 0.0
        %2092 = vmatpush1.msra.mxu0 0.0
        %2093 = vmatprep.subr.mxu0 0.0
        %2094 = vmatpush1.msra.mxu0 0.0
        %2095 = vmatprep.subr.mxu0 0.0
        %2096 = vmatpush1.msra.mxu0 0.0
        %2097 = vmatprep.subr.mxu0 0.0
        %2098 = vmatpush1.msra.mxu0 0.0
        %2099 = vmatprep.subr.mxu0 0.0
        %2100 = vmatpush1.msra.mxu0 0.0
        %2101 = vmatprep.subr.mxu0 0.0
        %2102 = vmatpush1.msra.mxu0 0.0
        %2103 = vmatprep.mubr.f32.mxu0 0.0
        %2104 = vmatmul.mubr.f32.gmra.mrb[0].mxu0 %v1998
        %v2105 = vpop.f32.mrb[0].mxu0
        %v2106 = vadd.f32 0.0, %v2105
        %v2107 = vpop.f32.mrb[0].mxu0
        %2108 = vmatprep.mubr.f32.mxu0 0.0
        %2109 = vmatmul.mubr.f32.gmra.mrb[0].mxu0 %v2001
        %v2110 = vpop.f32.mrb[0].mxu0
        %v2111 = vadd.f32 0.0, %v2110
        %v2112 = vpop.f32.mrb[0].mxu0
        %2113 = vmatprep.mubr.f32.mxu0 0.0
        %2114 = vmatmul.mubr.f32.gmra.mrb[0].mxu0 %v2004
        %v2115 = vpop.f32.mrb[0].mxu0
        %v2116 = vadd.f32 0.0, %v2115
        %v2117 = vpop.f32.mrb[0].mxu0
        %2118 = vmatprep.mubr.f32.mxu0 0.0
        %2119 = vmatmul.mubr.f32.gmra.mrb[0].mxu0 %v2007
        %v2120 = vpop.f32.mrb[0].mxu0
        %v2121 = vadd.f32 0.0, %v2120
        %v2122 = vpop.f32.mrb[0].mxu0
        %2123 = vmatprep.mubr.f32.mxu0 0.0
        %2124 = vmatmul.mubr.f32.gmra.mrb[0].mxu0 %v2010
        %v2125 = vpop.f32.mrb[0].mxu0
        %v2126 = vadd.f32 0.0, %v2125
        %v2127 = vpop.f32.mrb[0].mxu0
        %2128 = vmatprep.mubr.f32.mxu0 0.0
        %2129 = vmatmul.mubr.f32.gmra.mrb[0].mxu0 %v2013
        %v2130 = vpop.f32.mrb[0].mxu0
        %v2131 = vadd.f32 0.0, %v2130
        %v2132 = vpop.f32.mrb[0].mxu0
        %2133 = vmatprep.mubr.f32.mxu0 0.0
        %2134 = vmatmul.mubr.f32.gmra.mrb[0].mxu0 %v2016
        %v2135 = vpop.f32.mrb[0].mxu0
        %v2136 = vadd.f32 0.0, %v2135
        %v2137 = vpop.f32.mrb[0].mxu0
        %2138 = vmatprep.mubr.f32.mxu0 0.0
        %2139 = vmatmul.mubr.f32.gmra.mrb[0].mxu0 %v2019
        %v2140 = vpop.f32.mrb[0].mxu0
        %v2141 = vadd.f32 0.0, %v2140
        %v2142 = vpop.f32.mrb[0].mxu0
        %2143 = vmatprep.mubr.f32.mxu0 0.0
        %2144 = vmatmul.mubr.f32.gmra.mrb[0].mxu0 %v2022
        %v2145 = vpop.f32.mrb[0].mxu0
        %v2146 = vadd.f32 0.0, %v2145
        %v2147 = vpop.f32.mrb[0].mxu0
        %2148 = vmatprep.mubr.f32.mxu0 0.0
        %2149 = vmatmul.mubr.f32.gmra.mrb[0].mxu0 %v2025
        %v2150 = vpop.f32.mrb[0].mxu0
        %v2151 = vadd.f32 0.0, %v2150
        %v2152 = vpop.f32.mrb[0].mxu0
        %2153 = vmatprep.mubr.f32.mxu0 0.0
        %2154 = vmatmul.mubr.f32.gmra.mrb[0].mxu0 %v2028
        %v2155 = vpop.f32.mrb[0].mxu0
        %v2156 = vadd.f32 0.0, %v2155
        %v2157 = vpop.f32.mrb[0].mxu0
        %2158 = vmatprep.mubr.f32.mxu0 0.0
        %2159 = vmatmul.mubr.f32.gmra.mrb[0].mxu0 %v2031
        %v2160 = vpop.f32.mrb[0].mxu0
        %v2161 = vadd.f32 0.0, %v2160
        %v2162 = vpop.f32.mrb[0].mxu0
        %2163 = vmatprep.mubr.f32.mxu0 0.0
        %2164 = vmatmul.mubr.f32.gmra.mrb[0].mxu0 %v2034
        %v2165 = vpop.f32.mrb[0].mxu0
        %v2166 = vadd.f32 0.0, %v2165
        %v2167 = vpop.f32.mrb[0].mxu0
        %2168 = vmatprep.mubr.f32.mxu0 0.0
        %2169 = vmatmul.mubr.f32.gmra.mrb[0].mxu0 %v2037
        %v2170 = vpop.f32.mrb[0].mxu0
        %v2171 = vadd.f32 0.0, %v2170
        %v2172 = vpop.f32.mrb[0].mxu0
        %2173 = vdwg.mxu0
        %v2174 = vadd.f32 %v1967, %v2106
        %v2175 = vadd.f32 %v1968, %v2111
        %v2176 = vadd.f32 %v1969, %v2116
        %v2177 = vadd.f32 %v1970, %v2121
        %v2178 = vadd.f32 %v1971, %v2126
        %v2179 = vadd.f32 %v1972, %v2131
        %v2180 = vadd.f32 %v1973, %v2136
        %v2181 = vadd.f32 %v1974, %v2141
        %v2182 = vadd.f32 %v1975, %v2146
        %v2183 = vadd.f32 %v1976, %v2151
        %v2184 = vadd.f32 %v1977, %v2156
        %v2185 = vadd.f32 %v1978, %v2161
        %v2186 = vadd.f32 %v1979, %v2166
        %v2187 = vadd.f32 %v1980, %v2171
        %v2188 = vld [vmem:[#allocation2] sm:$0xff]
        %v2189 = vld [vmem:[#allocation2 + $0x8] sm:$0xff]
        %v2190 = vld [vmem:[#allocation2 + $0x10] sm:$0xff]
        %v2191 = vld [vmem:[#allocation2 + $0x18] sm:$0xff]
        %v2192 = vld [vmem:[#allocation2 + $0x20] sm:$0xff]
        %v2193 = vld [vmem:[#allocation2 + $0x28] sm:$0xff]
        %v2194 = vld [vmem:[#allocation2 + $0x30] sm:$0xff]
        %v2195 = vld [vmem:[#allocation2 + $0x38] sm:$0xff]
        %v2196 = vld [vmem:[#allocation2 + $0x40] sm:$0xff]
        %v2197 = vld [vmem:[#allocation2 + $0x48] sm:$0xff]
        %v2198 = vld [vmem:[#allocation2 + $0x50] sm:$0xff]
        %v2199 = vld [vmem:[#allocation2 + $0x58] sm:$0xff]
        %v2200 = vld [vmem:[#allocation2 + $0x60] sm:$0xff]
        %v2201 = vld [vmem:[#allocation2 + $0x68] sm:$0xf]
        %v2202 = vadd.f32 %v2188, %v2174
        %v2203 = vadd.f32 %v2189, %v2175
        %v2204 = vadd.f32 %v2190, %v2176
        %v2205 = vadd.f32 %v2191, %v2177
        %v2206 = vadd.f32 %v2192, %v2178
        %v2207 = vadd.f32 %v2193, %v2179
        %v2208 = vadd.f32 %v2194, %v2180
        %v2209 = vadd.f32 %v2195, %v2181
        %v2210 = vadd.f32 %v2196, %v2182
        %v2211 = vadd.f32 %v2197, %v2183
        %v2212 = vadd.f32 %v2198, %v2184
        %v2213 = vadd.f32 %v2199, %v2185
        %v2214 = vadd.f32 %v2200, %v2186
        %v2215 = vadd.f32 %v2201, %v2187
        %2216 = vst.msk [vmem:[#allocation2] sm:$0xff] %vm384, %v2202
        %2217 = vst.msk [vmem:[#allocation2 + $0x8] sm:$0xff] %vm384, %v2203
        %2218 = vst.msk [vmem:[#allocation2 + $0x10] sm:$0xff] %vm384, %v2204
        %2219 = vst.msk [vmem:[#allocation2 + $0x18] sm:$0xff] %vm384, %v2205
        %2220 = vst.msk [vmem:[#allocation2 + $0x20] sm:$0xff] %vm384, %v2206
        %2221 = vst.msk [vmem:[#allocation2 + $0x28] sm:$0xff] %vm384, %v2207
        %2222 = vst.msk [vmem:[#allocation2 + $0x30] sm:$0xff] %vm384, %v2208
        %2223 = vst.msk [vmem:[#allocation2 + $0x38] sm:$0xff] %vm384, %v2209
        %2224 = vst.msk [vmem:[#allocation2 + $0x40] sm:$0xff] %vm384, %v2210
        %2225 = vst.msk [vmem:[#allocation2 + $0x48] sm:$0xff] %vm384, %v2211
        %2226 = vst.msk [vmem:[#allocation2 + $0x50] sm:$0xff] %vm384, %v2212
        %2227 = vst.msk [vmem:[#allocation2 + $0x58] sm:$0xff] %vm384, %v2213
        %2228 = vst.msk [vmem:[#allocation2 + $0x60] sm:$0xff] %vm384, %v2214
        %vm2229 = vcmask 60416
        %2230 = vst.msk [vmem:[#allocation2 + $0x68] sm:$0xf] %vm2229, %v2215
        // Predicated region
        $region49: #{mmseg_fcn_decoder_forward.3} parent=31 // pred_check
          %p2231 = pneg %p333
        $region50: #{mmseg_fcn_decoder_forward.3} parent=31 // pred_check_branch
          %2233 = sbr.rel (%p2231) target = $region52
        $region51: #{mmseg_fcn_decoder_forward.3} parent=31 // pred_region
          %v2234 = vld [vmem:[#allocation2] sm:$0xff]
          %v2235 = vld [vmem:[#allocation2 + $0x8] sm:$0xff]
          %v2236 = vld [vmem:[#allocation2 + $0x10] sm:$0xff]
          %v2237 = vld [vmem:[#allocation2 + $0x18] sm:$0xff]
          %v2238 = vld [vmem:[#allocation2 + $0x20] sm:$0xff]
          %v2239 = vld [vmem:[#allocation2 + $0x28] sm:$0xff]
          %v2240 = vld [vmem:[#allocation2 + $0x30] sm:$0xff]
          %v2241 = vld [vmem:[#allocation2 + $0x38] sm:$0xff]
          %v2242 = vld [vmem:[#allocation2 + $0x40] sm:$0xff]
          %v2243 = vld [vmem:[#allocation2 + $0x48] sm:$0xff]
          %v2244 = vld [vmem:[#allocation2 + $0x50] sm:$0xff]
          %v2245 = vld [vmem:[#allocation2 + $0x58] sm:$0xff]
          %v2246 = vld [vmem:[#allocation2 + $0x60] sm:$0xff]
          %v2247 = vld [vmem:[#allocation2 + $0x68] sm:$0xf]
          %2248 = vst.msk [vmem:[%s320] sm:$0xff] %vm384, %v2234
          %2249 = vst.msk [vmem:[%s320 + $0x8] sm:$0xff] %vm384, %v2235
          %2250 = vst.msk [vmem:[%s320 + $0x10] sm:$0xff] %vm384, %v2236
          %2251 = vst.msk [vmem:[%s320 + $0x18] sm:$0xff] %vm384, %v2237
          %2252 = vst.msk [vmem:[%s320 + $0x20] sm:$0xff] %vm384, %v2238
          %2253 = vst.msk [vmem:[%s320 + $0x28] sm:$0xff] %vm384, %v2239
          %2254 = vst.msk [vmem:[%s320 + $0x30] sm:$0xff] %vm384, %v2240
          %2255 = vst.msk [vmem:[%s320 + $0x38] sm:$0xff] %vm384, %v2241
          %2256 = vst.msk [vmem:[%s320 + $0x40] sm:$0xff] %vm384, %v2242
          %2257 = vst.msk [vmem:[%s320 + $0x48] sm:$0xff] %vm384, %v2243
          %2258 = vst.msk [vmem:[%s320 + $0x50] sm:$0xff] %vm384, %v2244
          %2259 = vst.msk [vmem:[%s320 + $0x58] sm:$0xff] %vm384, %v2245
          %2260 = vst.msk [vmem:[%s320 + $0x60] sm:$0xff] %vm384, %v2246
          %2261 = vst.msk [vmem:[%s320 + $0x68] sm:$0xf] %vm2229, %v2247
          %v2262 = vld [vmem:[%s293] sm:$0xff]
          %v2263 = vld [vmem:[%s293 + $0x8] sm:$0xff]
          %v2264 = vld [vmem:[%s293 + $0x10] sm:$0xff]
          %v2265 = vld [vmem:[%s293 + $0x18] sm:$0xff]
          %v2266 = vld [vmem:[%s293 + $0x20] sm:$0xff]
          %v2267 = vld [vmem:[%s293 + $0x28] sm:$0xff]
          %v2268 = vld [vmem:[%s293 + $0x30] sm:$0xff]
          %v2269 = vld [vmem:[%s293 + $0x38] sm:$0xff]
          %v2270 = vld [vmem:[%s293 + $0x40] sm:$0xff]
          %v2271 = vld [vmem:[%s293 + $0x48] sm:$0xff]
          %v2272 = vld [vmem:[%s293 + $0x50] sm:$0xff]
          %v2273 = vld [vmem:[%s293 + $0x58] sm:$0xff]
          %v2274 = vld [vmem:[%s293 + $0x60] sm:$0xff]
          %v2275 = vld [vmem:[%s293 + $0x68] sm:$0xf]
          %2277 = vset.pattern.permute.xlu0 0
          %2278 = vperm.xlu0 %2277, %v2262
          %v2279 = vpop.permute.xlu0 %2278
          %2282 = vset.pattern.permute.xlu0 0
          %2283 = vperm.xlu0 %2282, %v2263
          %v2284 = vpop.permute.xlu0 %2283
          %2287 = vset.pattern.permute.xlu0 0
          %2288 = vperm.xlu0 %2287, %v2264
          %v2289 = vpop.permute.xlu0 %2288
          %2292 = vset.pattern.permute.xlu0 0
          %2293 = vperm.xlu0 %2292, %v2265
          %v2294 = vpop.permute.xlu0 %2293
          %2297 = vset.pattern.permute.xlu0 0
          %2298 = vperm.xlu0 %2297, %v2266
          %v2299 = vpop.permute.xlu0 %2298
          %2302 = vset.pattern.permute.xlu0 0
          %2303 = vperm.xlu0 %2302, %v2267
          %v2304 = vpop.permute.xlu0 %2303
          %2307 = vset.pattern.permute.xlu0 0
          %2308 = vperm.xlu0 %2307, %v2268
          %v2309 = vpop.permute.xlu0 %2308
          %2312 = vset.pattern.permute.xlu0 0
          %2313 = vperm.xlu0 %2312, %v2269
          %v2314 = vpop.permute.xlu0 %2313
          %2317 = vset.pattern.permute.xlu0 0
          %2318 = vperm.xlu0 %2317, %v2270
          %v2319 = vpop.permute.xlu0 %2318
          %2322 = vset.pattern.permute.xlu0 0
          %2323 = vperm.xlu0 %2322, %v2271
          %v2324 = vpop.permute.xlu0 %2323
          %2327 = vset.pattern.permute.xlu0 0
          %2328 = vperm.xlu0 %2327, %v2272
          %v2329 = vpop.permute.xlu0 %2328
          %2332 = vset.pattern.permute.xlu0 0
          %2333 = vperm.xlu0 %2332, %v2273
          %v2334 = vpop.permute.xlu0 %2333
          %2337 = vset.pattern.permute.xlu0 0
          %2338 = vperm.xlu0 %2337, %v2274
          %v2339 = vpop.permute.xlu0 %2338
          %2342 = vset.pattern.permute.xlu0 0
          %2343 = vperm.xlu0 %2342, %v2275
          %v2344 = vpop.permute.xlu0 %2343
          %v2346 = vmul.f32 %v2234, %v2279
          %v2347 = vmul.f32 %v2235, %v2284
          %v2348 = vmul.f32 %v2236, %v2289
          %v2349 = vmul.f32 %v2237, %v2294
          %v2350 = vmul.f32 %v2238, %v2299
          %v2351 = vmul.f32 %v2239, %v2304
          %v2352 = vmul.f32 %v2240, %v2309
          %v2353 = vmul.f32 %v2241, %v2314
          %v2354 = vmul.f32 %v2242, %v2319
          %v2355 = vmul.f32 %v2243, %v2324
          %v2356 = vmul.f32 %v2244, %v2329
          %v2357 = vmul.f32 %v2245, %v2334
          %v2358 = vmul.f32 %v2246, %v2339
          %v2359 = vmul.f32 %v2247, %v2344
          %v2360 = vsel %vm384, %v2346, 0.0
          %v2361 = vsel %vm384, %v2347, 0.0
          %v2362 = vadd.f32 %v2360, %v2361
          %v2363 = vsel %vm384, %v2348, 0.0
          %v2364 = vadd.f32 %v2362, %v2363
          %v2365 = vsel %vm384, %v2349, 0.0
          %v2366 = vadd.f32 %v2364, %v2365
          %v2367 = vsel %vm384, %v2350, 0.0
          %v2368 = vadd.f32 %v2366, %v2367
          %v2369 = vsel %vm384, %v2351, 0.0
          %v2370 = vadd.f32 %v2368, %v2369
          %v2371 = vsel %vm384, %v2352, 0.0
          %v2372 = vadd.f32 %v2370, %v2371
          %v2373 = vsel %vm384, %v2353, 0.0
          %v2374 = vadd.f32 %v2372, %v2373
          %v2375 = vsel %vm384, %v2354, 0.0
          %v2376 = vadd.f32 %v2374, %v2375
          %v2377 = vsel %vm384, %v2355, 0.0
          %v2378 = vadd.f32 %v2376, %v2377
          %v2379 = vsel %vm384, %v2356, 0.0
          %v2380 = vadd.f32 %v2378, %v2379
          %v2381 = vsel %vm384, %v2357, 0.0
          %v2382 = vadd.f32 %v2380, %v2381
          %v2383 = vsel %vm384, %v2358, 0.0
          %v2384 = vadd.f32 %v2382, %v2383
          %v2385 = vsel %vm2229, %v2359, 0.0
          %v2386 = vadd.f32 %v2384, %v2385
          %v2387 = vrot.slane %v2386, 4
          %v2388 = vadd.f32 %v2386, %v2387
          %v2389 = vrot.slane %v2388, 2
          %v2390 = vadd.f32 %v2388, %v2389
          %v2391 = vrot.slane %v2390, 1
          %v2392 = vadd.f32 %v2390, %v2391
          %vm2393 = vcmask 57344
          %2394 = vst.msk [vmem:[%s326] sm:$0x1] %vm2393, %v2392
          %v2395 = vmul.f32 %v2346, %v2234
          %v2396 = vmul.f32 %v2347, %v2235
          %v2397 = vmul.f32 %v2348, %v2236
          %v2398 = vmul.f32 %v2349, %v2237
          %v2399 = vmul.f32 %v2350, %v2238
          %v2400 = vmul.f32 %v2351, %v2239
          %v2401 = vmul.f32 %v2352, %v2240
          %v2402 = vmul.f32 %v2353, %v2241
          %v2403 = vmul.f32 %v2354, %v2242
          %v2404 = vmul.f32 %v2355, %v2243
          %v2405 = vmul.f32 %v2356, %v2244
          %v2406 = vmul.f32 %v2357, %v2245
          %v2407 = vmul.f32 %v2358, %v2246
          %v2408 = vmul.f32 %v2359, %v2247
          %v2409 = vsel %vm384, %v2395, 0.0
          %v2410 = vsel %vm384, %v2396, 0.0
          %v2411 = vadd.f32 %v2409, %v2410
          %v2412 = vsel %vm384, %v2397, 0.0
          %v2413 = vadd.f32 %v2411, %v2412
          %v2414 = vsel %vm384, %v2398, 0.0
          %v2415 = vadd.f32 %v2413, %v2414
          %v2416 = vsel %vm384, %v2399, 0.0
          %v2417 = vadd.f32 %v2415, %v2416
          %v2418 = vsel %vm384, %v2400, 0.0
          %v2419 = vadd.f32 %v2417, %v2418
          %v2420 = vsel %vm384, %v2401, 0.0
          %v2421 = vadd.f32 %v2419, %v2420
          %v2422 = vsel %vm384, %v2402, 0.0
          %v2423 = vadd.f32 %v2421, %v2422
          %v2424 = vsel %vm384, %v2403, 0.0
          %v2425 = vadd.f32 %v2423, %v2424
          %v2426 = vsel %vm384, %v2404, 0.0
          %v2427 = vadd.f32 %v2425, %v2426
          %v2428 = vsel %vm384, %v2405, 0.0
          %v2429 = vadd.f32 %v2427, %v2428
          %v2430 = vsel %vm384, %v2406, 0.0
          %v2431 = vadd.f32 %v2429, %v2430
          %v2432 = vsel %vm384, %v2407, 0.0
          %v2433 = vadd.f32 %v2431, %v2432
          %v2434 = vsel %vm2229, %v2408, 0.0
          %v2435 = vadd.f32 %v2433, %v2434
          %v2436 = vrot.slane %v2435, 4
          %v2437 = vadd.f32 %v2435, %v2436
          %v2438 = vrot.slane %v2437, 2
          %v2439 = vadd.f32 %v2437, %v2438
          %v2440 = vrot.slane %v2439, 1
          %v2441 = vadd.f32 %v2439, %v2440
          %2442 = vst.msk [vmem:[%s332] sm:$0x1] %vm2393, %v2441
        $region52: #{mmseg_fcn_decoder_forward.3} parent=31 // pred_fallthru
          _
        %s2443 = sand.u32 %s127, 1
        %s2444 = scalar_lea.sflag [#allocation5], %s2443
        %s2445 = sand.u32 %s127, 1
        %s2446 = smul.addr %s2445, 112
        %s2447 = scalar_lea.vmem [#allocation9], %s2446
        %s2448 = sand.u32 %s27, 1
        %s2449 = scalar_lea.sflag [#allocation11], %s2448
        %s2450 = sand.u32 %s153, 1
        %s2451 = scalar_lea.vmem [#allocation10], %s2450
        %s2452 = sand.u32 %s27, 1
        %s2453 = scalar_lea.sflag [#allocation11], %s2452
        %s2454 = sand.u32 %s179, 1
        %s2455 = scalar_lea.vmem [#allocation12], %s2454
        // Predicated region
        $region53: #{mmseg_fcn_decoder_forward.3} parent=31 // pred_check
          %p2456 = pneg %p137
        $region54: #{mmseg_fcn_decoder_forward.3} parent=31 // pred_check_branch
          %2458 = sbr.rel (%p2456) target = $region56
        $region55: #{mmseg_fcn_decoder_forward.3} parent=31 // pred_region
          %s2460 = ssub.s32 1792, 1792
          %2461 = vsyncadd %s2444, %s2460
          %s2462 = smul.addr %s31, 14
          %s2463 = smul.addr %s2462, 128
          %s2464 = scalar_lea.hbm %s3, %s2463
          %s2465 = sshll.u32 %s2447, 4
          %s2466 = int_to_ptr.vmem [resolvable:$true] %s2465
          %2471 = dma.vmem_to_hbm [thread:$0]  %s2466, 1792, %s2464, %s2444, 128, 128, 8
        $region56: #{mmseg_fcn_decoder_forward.3} parent=31 // pred_fallthru
          _
        // Predicated region
        $region57: #{mmseg_fcn_decoder_forward.3} parent=31 // pred_check
          %p2472 = pneg %p163
        $region58: #{mmseg_fcn_decoder_forward.3} parent=31 // pred_check_branch
          %2474 = sbr.rel (%p2472) target = $region60
        $region59: #{mmseg_fcn_decoder_forward.3} parent=31 // pred_region
          %s2476 = ssub.s32 16, 16
          %2477 = vsyncadd %s2449, %s2476
          %s2478 = smul.addr %s31, 16
          %s2479 = scalar_lea.hbm %s4, %s2478
          %s2481 = sshll.u32 %s2451, 4
          %s2482 = int_to_ptr.vmem [resolvable:$true] %s2481
          %2484 = dma.vmem_to_hbm [thread:$0]  %s2482, 16, %s2479, %s2449
        $region60: #{mmseg_fcn_decoder_forward.3} parent=31 // pred_fallthru
          _
        // Predicated region
        $region61: #{mmseg_fcn_decoder_forward.3} parent=31 // pred_check
          %p2485 = pneg %p189
        $region62: #{mmseg_fcn_decoder_forward.3} parent=31 // pred_check_branch
          %2487 = sbr.rel (%p2485) target = $region64
        $region63: #{mmseg_fcn_decoder_forward.3} parent=31 // pred_region
          %s2489 = ssub.s32 16, 16
          %2490 = vsyncadd %s2453, %s2489
          %s2491 = smul.addr %s31, 16
          %s2492 = scalar_lea.hbm %s5, %s2491
          %s2494 = sshll.u32 %s2455, 4
          %s2495 = int_to_ptr.vmem [resolvable:$true] %s2494
          %2497 = dma.vmem_to_hbm [thread:$0]  %s2495, 16, %s2492, %s2453
        $region64: #{mmseg_fcn_decoder_forward.3} parent=31 // pred_fallthru
          _
      $region32: #{mmseg_fcn_decoder_forward.3} parent=5 // pred_fallthru
        _
      %p2498 = scmp.le.s32.totalorder 2, %s22
      // Predicated region
      $region65: #{mmseg_fcn_decoder_forward.3} parent=5 // pred_check
        %p2499 = pneg %p2498
      $region66: #{mmseg_fcn_decoder_forward.3} parent=5 // pred_check_branch
        %2501 = sbr.rel (%p2499) target = $region68
      $region67: #{mmseg_fcn_decoder_forward.3} parent=5 // pred_region
        %s2502 = ssub.s32 %s22, 2
        // Predicated region
        $region69: #{mmseg_fcn_decoder_forward.3} parent=67 // pred_check
          %p2503 = pneg %p143
        $region70: #{mmseg_fcn_decoder_forward.3} parent=67 // pred_check_branch
          %2505 = sbr.rel (%p2503) target = $region72
        $region71: #{mmseg_fcn_decoder_forward.3} parent=67 // pred_region
          %s2506 = sand.u32 %s128, 1
          %s2507 = scalar_lea.sflag [#allocation5], %s2506
          %s2508 = sand.u32 %s128, 1
          %s2509 = smul.addr %s2508, 112
          %s2510 = scalar_lea.vmem [#allocation9], %s2509
          %2511 = dma.done %s2507, 1792
        $region72: #{mmseg_fcn_decoder_forward.3} parent=67 // pred_fallthru
          _
        // Predicated region
        $region73: #{mmseg_fcn_decoder_forward.3} parent=67 // pred_check
          %p2512 = pneg %p169
        $region74: #{mmseg_fcn_decoder_forward.3} parent=67 // pred_check_branch
          %2514 = sbr.rel (%p2512) target = $region76
        $region75: #{mmseg_fcn_decoder_forward.3} parent=67 // pred_region
          %s2515 = sand.u32 %s28, 1
          %s2516 = scalar_lea.sflag [#allocation11], %s2515
          %s2517 = sand.u32 %s154, 1
          %s2518 = scalar_lea.vmem [#allocation10], %s2517
          %2519 = dma.done %s2516, 16
        $region76: #{mmseg_fcn_decoder_forward.3} parent=67 // pred_fallthru
          _
        // Predicated region
        $region77: #{mmseg_fcn_decoder_forward.3} parent=67 // pred_check
          %p2520 = pneg %p195
        $region78: #{mmseg_fcn_decoder_forward.3} parent=67 // pred_check_branch
          %2522 = sbr.rel (%p2520) target = $region80
        $region79: #{mmseg_fcn_decoder_forward.3} parent=67 // pred_region
          %s2523 = sand.u32 %s28, 1
          %s2524 = scalar_lea.sflag [#allocation11], %s2523
          %s2525 = sand.u32 %s180, 1
          %s2526 = scalar_lea.vmem [#allocation12], %s2525
          %2527 = dma.done %s2524, 16
        $region80: #{mmseg_fcn_decoder_forward.3} parent=67 // pred_fallthru
          _
      $region68: #{mmseg_fcn_decoder_forward.3} parent=5 // pred_fallthru
        _
    $region6: #{mmseg_fcn_decoder_forward.3} parent=1 // loop_footer
      %s26 = sadd.s32 1, %s22
    $region7: #{mmseg_fcn_decoder_forward.3} parent=1 // loop_footer_branch
      %21 = sbr.rel target = $region3
    $region8: #{mmseg_fcn_decoder_forward.3} parent=1 // loop_exit
      _
    %2528 = vsyncpa [#allocation4], 1
    %s2529 = scalar_lea.sflag [#allocation4], 1
    %2530 = vsyncpa %s2529, 1
    %2531 = vsyncpa [#allocation7], 1
    %2532 = vsyncpa [#allocation5], 1
    %s2533 = scalar_lea.sflag [#allocation5], 1
    %2534 = vsyncpa %s2533, 1
    %2535 = vsyncpa [#allocation11], 1
    %s2536 = scalar_lea.sflag [#allocation11], 1
    %2537 = vsyncpa %s2536, 1

// kernel: mmseg_fcn_decoder_forward.2
$region0: #{mmseg_fcn_decoder_forward.2}
  #allocation0 [shape = 'u32[]', space=smem, size = 0x4, offset = 0x4, fixed_abs, tag = 'smem constant byte address 0x4 - core index']
  #allocation1 [shape = 'u32[144,128]{1,0:T(1,128)}', space=vmem, size = 0x12000, scoped, tag = 'internal scratch']
  #allocation2 [shape = 'f32[108,8]{1,0:T(8,128)}', space=vmem, size = 0xe000, scoped, tag = 'scratch operand']
  %s0 = inlined_call_operand.hbm [shape: f32[6,162,4], index: 0, kind: input, shape index: {}]
  %s1 = inlined_call_operand.hbm [shape: f32[9,4,8], index: 1, kind: input, shape index: {}]
  %s2 = inlined_call_operand.hbm [shape: f32[6,108,1], index: 2, kind: input, shape index: {}]
  %s3 = inlined_call_operand.hbm [shape: f32[6,108,8], index: 3, kind: output, shape index: {0}]
  %s4 = inlined_call_operand.hbm [shape: f32[6,1,8], index: 4, kind: output, shape index: {1}]
  %s5 = inlined_call_operand.hbm [shape: f32[6,1,8], index: 5, kind: output, shape index: {2}]
  %6 = xla_tuple %s3, %s4, %s5
  %s7 = sld [smem:[#allocation0]]
  $region81: #{mmseg_fcn_decoder_forward.2} parent=0
    _
  %s9 = ssub.s32 1, %s7
  %s10 = scalar_select 0, %s9, %s7
  $region1: #{mmseg_fcn_decoder_forward.2} parent=0
    #allocation3 [shape = 'u8[172032]{0}', space=vmem, size = 0x2a000, scoped, tag = 'input window, operand 0']
    #allocation4 [shape = 's32[2]{0}', space=sflag, size = 0x8, scoped, tag = 'scoped memory for mmseg_fcn_decoder_forward.2']
    #allocation5 [shape = 's32[2]{0}', space=sflag, size = 0x8, scoped, tag = 'scoped memory for mmseg_fcn_decoder_forward.2']
    #allocation6 [shape = 'u8[18432]{0}', space=vmem, size = 0x4800, scoped, tag = 'input window, operand 1, single buffered']
    #allocation7 [shape = 's32[1]{0}', space=sflag, size = 0x4, scoped, tag = 'scoped memory for mmseg_fcn_decoder_forward.2']
    #allocation8 [shape = 'u8[114688]{0}', space=vmem, size = 0x1c000, scoped, tag = 'input window, operand 2']
    #allocation9 [shape = 'u8[114688]{0}', space=vmem, size = 0x1c000, scoped, tag = 'output window, operand 0']
    #allocation10 [shape = 'u8[1024]{0}', space=vmem, size = 0x400, scoped, tag = 'output window, operand 1']
    #allocation11 [shape = 's32[2]{0}', space=sflag, size = 0x8, scoped, tag = 'scoped memory for mmseg_fcn_decoder_forward.2']
    #allocation12 [shape = 'u8[1024]{0}', space=vmem, size = 0x400, scoped, tag = 'output window, operand 2']
    %11 = vsyncpa [#allocation4], 0
    %s12 = scalar_lea.sflag [#allocation4], 1
    %13 = vsyncpa %s12, 0
    %14 = vsyncpa [#allocation7], 0
    %15 = vsyncpa [#allocation5], 0
    %s16 = scalar_lea.sflag [#allocation5], 1
    %17 = vsyncpa %s16, 0
    %18 = vsyncpa [#allocation11], 0
    %s19 = scalar_lea.sflag [#allocation11], 1
    %20 = vsyncpa %s19, 0
    loop: start=0, step=1, limit=8
    $region2: #{mmseg_fcn_decoder_forward.2} parent=1 // loop_pre_header
      _
    $region3: #{mmseg_fcn_decoder_forward.2} parent=1 // loop_header
      %s22 = sphi 0, %s26
      %p23 = scmp.ge.s32.totalorder %s22, 8
      %s29 = sphi 0, %s41
      %s30 = sphi 0, %s37
      %s31 = sphi 0, %s29
      %s32 = sphi 0, %s30
      %s33 = sphi 0, %s31
      %s34 = sphi 0, %s32
      %s46 = sphi 0, %s48
      %s49 = sphi 0, %s46
      %s50 = sphi 0, %s49
      %s66 = sphi 0, %s50
      %s72 = sphi 0, %s74
      %s75 = sphi 0, %s72
      %s76 = sphi 0, %s75
      %s92 = sphi 0, %s76
      %s98 = sphi 0, %s100
      %s101 = sphi 0, %s98
      %s102 = sphi 0, %s101
      %s118 = sphi 0, %s102
      %s124 = sphi 0, %s126
      %s127 = sphi 0, %s124
      %s128 = sphi 0, %s127
      %s144 = sphi 0, %s128
      %s150 = sphi 0, %s152
      %s153 = sphi 0, %s150
      %s154 = sphi 0, %s153
      %s170 = sphi 0, %s154
      %s176 = sphi 0, %s178
      %s179 = sphi 0, %s176
      %s180 = sphi 0, %s179
      %s196 = sphi 0, %s180
    $region4: #{mmseg_fcn_decoder_forward.2} parent=1 // loop_header_branch
      %25 = sbr.rel (%p23) target = $region8
    $region5: #{mmseg_fcn_decoder_forward.2} parent=1 // loop_body
      %s27 = ssub.s32 %s22, 1
      %s28 = ssub.s32 %s22, 2
      %s35 = sadd.s32 1, %s30
      %p36 = scmp.ge.s32.totalorder %s35, 1
      %s37 = scalar_select %p36, 0, %s35
      %s38 = sadd.s32 1, %s29
      %s39 = scalar_select %p36, %s38, %s29
      %p40 = scmp.ge.s32.totalorder %s39, 6
      %s41 = scalar_select %p40, 0, %s39
      %s42 = ssub.s32 %s29, %s41
      %s43 = ssub.s32 %s30, %s37
      %s44 = sor.u32 %s42, %s43
      %p45 = scmp.eq.s32.totalorder %s44, 0
      %s47 = sadd.s32 %s46, 1
      %s48 = scalar_select %p45, %s46, %s47
      %p51 = pneg %p45
      %p52 = scmp.eq.s32.totalorder %s22, 5
      %p53 = por %p51, %p52
      %p54 = scmp.ne.s32.totalorder %s46, %s49
      %p55 = scmp.eq.s32.totalorder %s22, 0
      %p56 = por %p54, %p55
      %p57 = scmp.ne.s32.totalorder %s46, %s49
      %p58 = scmp.eq.s32.totalorder %s27, 5
      %p59 = por %p57, %p58
      %p60 = scmp.ne.s32.totalorder %s49, %s50
      %p61 = scmp.eq.s32.totalorder %s27, 0
      %p62 = por %p60, %p61
      %p63 = scmp.ne.s32.totalorder %s49, %s50
      %p64 = scmp.eq.s32.totalorder %s28, 5
      %p65 = por %p63, %p64
      %p67 = scmp.ne.s32.totalorder %s50, %s66
      %p68 = scmp.eq.s32.totalorder %s28, 0
      %p69 = por %p67, %p68
      %s70 = ssub.s32 %s30, %s37
      %p71 = scmp.eq.s32.totalorder %s70, 0
      %s73 = sadd.s32 %s72, 1
      %s74 = scalar_select %p71, %s72, %s73
      %p77 = pneg %p71
      %p78 = scmp.eq.s32.totalorder %s22, 5
      %p79 = por %p77, %p78
      %p80 = scmp.ne.s32.totalorder %s72, %s75
      %p81 = scmp.eq.s32.totalorder %s22, 0
      %p82 = por %p80, %p81
      %p83 = scmp.ne.s32.totalorder %s72, %s75
      %p84 = scmp.eq.s32.totalorder %s27, 5
      %p85 = por %p83, %p84
      %p86 = scmp.ne.s32.totalorder %s75, %s76
      %p87 = scmp.eq.s32.totalorder %s27, 0
      %p88 = por %p86, %p87
      %p89 = scmp.ne.s32.totalorder %s75, %s76
      %p90 = scmp.eq.s32.totalorder %s28, 5
      %p91 = por %p89, %p90
      %p93 = scmp.ne.s32.totalorder %s76, %s92
      %p94 = scmp.eq.s32.totalorder %s28, 0
      %p95 = por %p93, %p94
      %s96 = ssub.s32 %s29, %s41
      %p97 = scmp.eq.s32.totalorder %s96, 0
      %s99 = sadd.s32 %s98, 1
      %s100 = scalar_select %p97, %s98, %s99
      %p103 = pneg %p97
      %p104 = scmp.eq.s32.totalorder %s22, 5
      %p105 = por %p103, %p104
      %p106 = scmp.ne.s32.totalorder %s98, %s101
      %p107 = scmp.eq.s32.totalorder %s22, 0
      %p108 = por %p106, %p107
      %p109 = scmp.ne.s32.totalorder %s98, %s101
      %p110 = scmp.eq.s32.totalorder %s27, 5
      %p111 = por %p109, %p110
      %p112 = scmp.ne.s32.totalorder %s101, %s102
      %p113 = scmp.eq.s32.totalorder %s27, 0
      %p114 = por %p112, %p113
      %p115 = scmp.ne.s32.totalorder %s101, %s102
      %p116 = scmp.eq.s32.totalorder %s28, 5
      %p117 = por %p115, %p116
      %p119 = scmp.ne.s32.totalorder %s102, %s118
      %p120 = scmp.eq.s32.totalorder %s28, 0
      %p121 = por %p119, %p120
      %s122 = ssub.s32 %s29, %s41
      %p123 = scmp.eq.s32.totalorder %s122, 0
      %s125 = sadd.s32 %s124, 1
      %s126 = scalar_select %p123, %s124, %s125
      %p129 = pneg %p123
      %p130 = scmp.eq.s32.totalorder %s22, 5
      %p131 = por %p129, %p130
      %p132 = scmp.ne.s32.totalorder %s124, %s127
      %p133 = scmp.eq.s32.totalorder %s22, 0
      %p134 = por %p132, %p133
      %p135 = scmp.ne.s32.totalorder %s124, %s127
      %p136 = scmp.eq.s32.totalorder %s27, 5
      %p137 = por %p135, %p136
      %p138 = scmp.ne.s32.totalorder %s127, %s128
      %p139 = scmp.eq.s32.totalorder %s27, 0
      %p140 = por %p138, %p139
      %p141 = scmp.ne.s32.totalorder %s127, %s128
      %p142 = scmp.eq.s32.totalorder %s28, 5
      %p143 = por %p141, %p142
      %p145 = scmp.ne.s32.totalorder %s128, %s144
      %p146 = scmp.eq.s32.totalorder %s28, 0
      %p147 = por %p145, %p146
      %s148 = ssub.s32 %s29, %s41
      %p149 = scmp.eq.s32.totalorder %s148, 0
      %s151 = sadd.s32 %s150, 1
      %s152 = scalar_select %p149, %s150, %s151
      %p155 = pneg %p149
      %p156 = scmp.eq.s32.totalorder %s22, 5
      %p157 = por %p155, %p156
      %p158 = scmp.ne.s32.totalorder %s150, %s153
      %p159 = scmp.eq.s32.totalorder %s22, 0
      %p160 = por %p158, %p159
      %p161 = scmp.ne.s32.totalorder %s150, %s153
      %p162 = scmp.eq.s32.totalorder %s27, 5
      %p163 = por %p161, %p162
      %p164 = scmp.ne.s32.totalorder %s153, %s154
      %p165 = scmp.eq.s32.totalorder %s27, 0
      %p166 = por %p164, %p165
      %p167 = scmp.ne.s32.totalorder %s153, %s154
      %p168 = scmp.eq.s32.totalorder %s28, 5
      %p169 = por %p167, %p168
      %p171 = scmp.ne.s32.totalorder %s154, %s170
      %p172 = scmp.eq.s32.totalorder %s28, 0
      %p173 = por %p171, %p172
      %s174 = ssub.s32 %s29, %s41
      %p175 = scmp.eq.s32.totalorder %s174, 0
      %s177 = sadd.s32 %s176, 1
      %s178 = scalar_select %p175, %s176, %s177
      %p181 = pneg %p175
      %p182 = scmp.eq.s32.totalorder %s22, 5
      %p183 = por %p181, %p182
      %p184 = scmp.ne.s32.totalorder %s176, %s179
      %p185 = scmp.eq.s32.totalorder %s22, 0
      %p186 = por %p184, %p185
      %p187 = scmp.ne.s32.totalorder %s176, %s179
      %p188 = scmp.eq.s32.totalorder %s27, 5
      %p189 = por %p187, %p188
      %p190 = scmp.ne.s32.totalorder %s179, %s180
      %p191 = scmp.eq.s32.totalorder %s27, 0
      %p192 = por %p190, %p191
      %p193 = scmp.ne.s32.totalorder %s179, %s180
      %p194 = scmp.eq.s32.totalorder %s28, 5
      %p195 = por %p193, %p194
      %p197 = scmp.ne.s32.totalorder %s180, %s196
      %p198 = scmp.eq.s32.totalorder %s28, 0
      %p199 = por %p197, %p198
      %p200 = scmp.le.s32.totalorder 1, %s22
      %p201 = scmp.lt.s32.totalorder %s22, 7
      %p202 = pnand %p200, %p201
      %p203 = pneg %p202
      // Predicated region
      $region9: #{mmseg_fcn_decoder_forward.2} parent=5 // pred_check
        _
      $region10: #{mmseg_fcn_decoder_forward.2} parent=5 // pred_check_branch
        %205 = sbr.rel (%p202) target = $region12
      $region11: #{mmseg_fcn_decoder_forward.2} parent=5 // pred_region
        %s206 = ssub.s32 %s22, 1
        // Predicated region
        $region13: #{mmseg_fcn_decoder_forward.2} parent=11 // pred_check
          %p207 = pneg %p88
        $region14: #{mmseg_fcn_decoder_forward.2} parent=11 // pred_check_branch
          %209 = sbr.rel (%p207) target = $region16
        $region15: #{mmseg_fcn_decoder_forward.2} parent=11 // pred_region
          %s211 = ssub.s32 576, 576
          %212 = vsyncadd [#allocation7], %s211
          %s213 = smul.addr %s32, 64
          %s214 = scalar_lea.hbm %s1, %s213
          %s215 = sshll.u32 [#allocation6], 4
          %s216 = int_to_ptr.vmem [resolvable:$true] %s215
          %221 = dma.hbm_to_vmem [thread:$0]  %s214, 576, %s216, [#allocation7], 64, 64, 4
        $region16: #{mmseg_fcn_decoder_forward.2} parent=11 // pred_fallthru
          _
      $region12: #{mmseg_fcn_decoder_forward.2} parent=5 // pred_fallthru
        _
      %p222 = scmp.lt.s32.totalorder %s22, 6
      // Predicated region
      $region17: #{mmseg_fcn_decoder_forward.2} parent=5 // pred_check
        %p223 = pneg %p222
      $region18: #{mmseg_fcn_decoder_forward.2} parent=5 // pred_check_branch
        %225 = sbr.rel (%p223) target = $region20
      $region19: #{mmseg_fcn_decoder_forward.2} parent=5 // pred_region
        // Predicated region
        $region21: #{mmseg_fcn_decoder_forward.2} parent=19 // pred_check
          %p226 = pneg %p56
        $region22: #{mmseg_fcn_decoder_forward.2} parent=19 // pred_check_branch
          %228 = sbr.rel (%p226) target = $region24
        $region23: #{mmseg_fcn_decoder_forward.2} parent=19 // pred_region
          %s229 = sand.u32 %s22, 1
          %s230 = scalar_lea.sflag [#allocation4], %s229
          %s231 = sand.u32 %s46, 1
          %s232 = smul.addr %s231, 168
          %s233 = scalar_lea.vmem [#allocation3], %s232
          %s235 = ssub.s32 2688, 2688
          %236 = vsyncadd %s230, %s235
          %s237 = smul.addr %s29, 21
          %s238 = sadd.s32 %s30, %s237
          %s239 = smul.addr %s238, 128
          %s240 = scalar_lea.hbm %s0, %s239
          %s241 = sshll.u32 %s233, 4
          %s242 = int_to_ptr.vmem [resolvable:$true] %s241
          %247 = dma.hbm_to_vmem [thread:$0]  %s240, 2688, %s242, %s230, 128, 128, 8
        $region24: #{mmseg_fcn_decoder_forward.2} parent=19 // pred_fallthru
          _
        // Predicated region
        $region25: #{mmseg_fcn_decoder_forward.2} parent=19 // pred_check
          %p248 = pneg %p108
        $region26: #{mmseg_fcn_decoder_forward.2} parent=19 // pred_check_branch
          %250 = sbr.rel (%p248) target = $region28
        $region27: #{mmseg_fcn_decoder_forward.2} parent=19 // pred_region
          %s251 = sand.u32 %s22, 1
          %s252 = scalar_lea.sflag [#allocation4], %s251
          %s253 = sand.u32 %s98, 1
          %s254 = smul.addr %s253, 112
          %s255 = scalar_lea.vmem [#allocation8], %s254
          %s257 = ssub.s32 1792, 1792
          %258 = vsyncadd %s252, %s257
          %s259 = smul.addr %s29, 14
          %s260 = smul.addr %s259, 128
          %s261 = scalar_lea.hbm %s2, %s260
          %s262 = sshll.u32 %s255, 4
          %s263 = int_to_ptr.vmem [resolvable:$true] %s262
          %268 = dma.hbm_to_vmem [thread:$0]  %s261, 1792, %s263, %s252, 128, 128, 8
        $region28: #{mmseg_fcn_decoder_forward.2} parent=19 // pred_fallthru
          _
      $region20: #{mmseg_fcn_decoder_forward.2} parent=5 // pred_fallthru
        _
      %p269 = scmp.le.s32.totalorder 1, %s22
      %p270 = scmp.lt.s32.totalorder %s22, 7
      %p271 = pnand %p269, %p270
      %p272 = pneg %p271
      // Predicated region
      $region29: #{mmseg_fcn_decoder_forward.2} parent=5 // pred_check
        _
      $region30: #{mmseg_fcn_decoder_forward.2} parent=5 // pred_check_branch
        %274 = sbr.rel (%p271) target = $region32
      $region31: #{mmseg_fcn_decoder_forward.2} parent=5 // pred_region
        %s275 = ssub.s32 %s22, 1
        %s276 = sand.u32 %s27, 1
        %s277 = scalar_lea.sflag [#allocation4], %s276
        %s278 = sand.u32 %s49, 1
        %s279 = smul.addr %s278, 168
        %s280 = scalar_lea.vmem [#allocation3], %s279
        // Predicated region
        $region33: #{mmseg_fcn_decoder_forward.2} parent=31 // pred_check
          %p281 = pneg %p62
        $region34: #{mmseg_fcn_decoder_forward.2} parent=31 // pred_check_branch
          %283 = sbr.rel (%p281) target = $region36
        $region35: #{mmseg_fcn_decoder_forward.2} parent=31 // pred_region
          %284 = dma.done %s277, 2688
        $region36: #{mmseg_fcn_decoder_forward.2} parent=31 // pred_fallthru
          _
        // Predicated region
        $region37: #{mmseg_fcn_decoder_forward.2} parent=31 // pred_check
          %p285 = pneg %p88
        $region38: #{mmseg_fcn_decoder_forward.2} parent=31 // pred_check_branch
          %287 = sbr.rel (%p285) target = $region40
        $region39: #{mmseg_fcn_decoder_forward.2} parent=31 // pred_region
          %288 = dma.done [#allocation7], 576
        $region40: #{mmseg_fcn_decoder_forward.2} parent=31 // pred_fallthru
          _
        %s289 = sand.u32 %s27, 1
        %s290 = scalar_lea.sflag [#allocation4], %s289
        %s291 = sand.u32 %s101, 1
        %s292 = smul.addr %s291, 112
        %s293 = scalar_lea.vmem [#allocation8], %s292
        // Predicated region
        $region41: #{mmseg_fcn_decoder_forward.2} parent=31 // pred_check
          %p294 = pneg %p114
        $region42: #{mmseg_fcn_decoder_forward.2} parent=31 // pred_check_branch
          %296 = sbr.rel (%p294) target = $region44
        $region43: #{mmseg_fcn_decoder_forward.2} parent=31 // pred_region
          %297 = dma.done %s290, 1792
        $region44: #{mmseg_fcn_decoder_forward.2} parent=31 // pred_fallthru
          _
        %s298 = sand.u32 %s27, 1
        %s299 = scalar_lea.sflag [#allocation4], %s298
        %s300 = sand.u32 %s49, 1
        %s301 = smul.addr %s300, 168
        %s302 = scalar_lea.vmem [#allocation3], %s301
        %p303 = pneg %p62
        %p304 = pneg %p59
        %p305 = pneg %p88
        %p306 = pneg %p85
        %s307 = sand.u32 %s27, 1
        %s308 = scalar_lea.sflag [#allocation4], %s307
        %s309 = sand.u32 %s101, 1
        %s310 = smul.addr %s309, 112
        %s311 = scalar_lea.vmem [#allocation8], %s310
        %p312 = pneg %p114
        %p313 = pneg %p111
        %p314 = pneg %p140
        %p315 = pneg %p137
        %s316 = sand.u32 %s127, 1
        %s317 = scalar_lea.sflag [#allocation5], %s316
        %s318 = sand.u32 %s127, 1
        %s319 = smul.addr %s318, 112
        %s320 = scalar_lea.vmem [#allocation9], %s319
        %p321 = pneg %p166
        %p322 = pneg %p163
        %s323 = sand.u32 %s27, 1
        %s324 = scalar_lea.sflag [#allocation11], %s323
        %s325 = sand.u32 %s153, 1
        %s326 = scalar_lea.vmem [#allocation10], %s325
        %p327 = pneg %p192
        %p328 = pneg %p189
        %s329 = sand.u32 %s27, 1
        %s330 = scalar_lea.sflag [#allocation11], %s329
        %s331 = sand.u32 %s179, 1
        %s332 = scalar_lea.vmem [#allocation12], %s331
        %p333 = scmp.eq.s32.totalorder %s32, 0
        // Predicated region
        $region45: #{mmseg_fcn_decoder_forward.2} parent=31 // pred_check
          %p334 = pneg %p333
        $region46: #{mmseg_fcn_decoder_forward.2} parent=31 // pred_check_branch
          %336 = sbr.rel (%p334) target = $region48
        $region47: #{mmseg_fcn_decoder_forward.2} parent=31 // pred_region
          %vm337 = vcmask 64512
          %338 = vst.msk [vmem:[#allocation2] sm:$0xff] %vm337, 0.0
          %339 = vst.msk [vmem:[#allocation2 + $0x8] sm:$0xff] %vm337, 0.0
          %340 = vst.msk [vmem:[#allocation2 + $0x10] sm:$0xff] %vm337, 0.0
          %341 = vst.msk [vmem:[#allocation2 + $0x18] sm:$0xff] %vm337, 0.0
          %342 = vst.msk [vmem:[#allocation2 + $0x20] sm:$0xff] %vm337, 0.0
          %343 = vst.msk [vmem:[#allocation2 + $0x28] sm:$0xff] %vm337, 0.0
          %344 = vst.msk [vmem:[#allocation2 + $0x30] sm:$0xff] %vm337, 0.0
          %345 = vst.msk [vmem:[#allocation2 + $0x38] sm:$0xff] %vm337, 0.0
          %346 = vst.msk [vmem:[#allocation2 + $0x40] sm:$0xff] %vm337, 0.0
          %347 = vst.msk [vmem:[#allocation2 + $0x48] sm:$0xff] %vm337, 0.0
          %348 = vst.msk [vmem:[#allocation2 + $0x50] sm:$0xff] %vm337, 0.0
          %349 = vst.msk [vmem:[#allocation2 + $0x58] sm:$0xff] %vm337, 0.0
          %350 = vst.msk [vmem:[#allocation2 + $0x60] sm:$0xff] %vm337, 0.0
          %vm351 = vcmask 60416
          %352 = vst.msk [vmem:[#allocation2 + $0x68] sm:$0xf] %vm351, 0.0
        $region48: #{mmseg_fcn_decoder_forward.2} parent=31 // pred_fallthru
          _
        %v353 = vld [vmem:[%s280] sm:$0xff]
        %v354 = vld [vmem:[%s280 + $0x8] sm:$0xff]
        %v355 = vld [vmem:[%s280 + $0x10] sm:$0xff]
        %v356 = vld [vmem:[%s280 + $0x18] sm:$0xff]
        %v357 = vld [vmem:[%s280 + $0x20] sm:$0xff]
        %v358 = vld [vmem:[%s280 + $0x28] sm:$0xff]
        %v359 = vld [vmem:[%s280 + $0x30] sm:$0xff]
        %v360 = vld [vmem:[%s280 + $0x38] sm:$0xff]
        %v361 = vld [vmem:[%s280 + $0x40] sm:$0xff]
        %v362 = vld [vmem:[%s280 + $0x48] sm:$0xff]
        %v363 = vld [vmem:[%s280 + $0x50] sm:$0xff]
        %v364 = vld [vmem:[%s280 + $0x58] sm:$0xff]
        %v365 = vld [vmem:[%s280 + $0x60] sm:$0xff]
        %v366 = vld [vmem:[%s280 + $0x68] sm:$0xf]
        %v367 = vld [vmem:[#allocation6] sm:$0xf]
        %v368 = vld [vmem:[%s280 + $0x1] sm:$0xff]
        %v369 = vld [vmem:[%s280 + $0x9] sm:$0xff]
        %v370 = vld [vmem:[%s280 + $0x11] sm:$0xff]
        %v371 = vld [vmem:[%s280 + $0x19] sm:$0xff]
        %v372 = vld [vmem:[%s280 + $0x21] sm:$0xff]
        %v373 = vld [vmem:[%s280 + $0x29] sm:$0xff]
        %v374 = vld [vmem:[%s280 + $0x31] sm:$0xff]
        %v375 = vld [vmem:[%s280 + $0x39] sm:$0xff]
        %v376 = vld [vmem:[%s280 + $0x41] sm:$0xff]
        %v377 = vld [vmem:[%s280 + $0x49] sm:$0xff]
        %v378 = vld [vmem:[%s280 + $0x51] sm:$0xff]
        %v379 = vld [vmem:[%s280 + $0x59] sm:$0xff]
        %v380 = vld [vmem:[%s280 + $0x61] sm:$0xff]
        %v381 = vld [vmem:[%s280 + $0x69] sm:$0xf]
        %s382 = scalar_lea.vmem [#allocation6], 4
        %v383 = vld [vmem:[%s382] sm:$0xf]
        %vm384 = vcmask 31744
        %v386 = vsel %vm384, %v368, 0
        %v389 = vsel %vm384, %v369, 0
        %v392 = vsel %vm384, %v370, 0
        %v395 = vsel %vm384, %v371, 0
        %v398 = vsel %vm384, %v372, 0
        %v401 = vsel %vm384, %v373, 0
        %v404 = vsel %vm384, %v374, 0
        %v407 = vsel %vm384, %v375, 0
        %v410 = vsel %vm384, %v376, 0
        %v413 = vsel %vm384, %v377, 0
        %v416 = vsel %vm384, %v378, 0
        %v419 = vsel %vm384, %v379, 0
        %v422 = vsel %vm384, %v380, 0
        %v425 = vsel %vm384, %v381, 0
        %vm427 = vcmask 1043456
        %v429 = vsel %vm427, %v383, 0
        %431 = vmatprep.subr.mxu0 0.0
        %432 = vmatpush1.msra.mxu0 %v429
        %433 = vmatprep.subr.mxu0 0.0
        %434 = vmatpush1.msra.mxu0 0.0
        %435 = vmatprep.subr.mxu0 0.0
        %436 = vmatpush1.msra.mxu0 0.0
        %437 = vmatprep.subr.mxu0 0.0
        %438 = vmatpush1.msra.mxu0 0.0
        %439 = vmatprep.subr.mxu0 0.0
        %440 = vmatpush1.msra.mxu0 0.0
        %441 = vmatprep.subr.mxu0 0.0
        %442 = vmatpush1.msra.mxu0 0.0
        %443 = vmatprep.subr.mxu0 0.0
        %444 = vmatpush1.msra.mxu0 0.0
        %445 = vmatprep.subr.mxu0 0.0
        %446 = vmatpush1.msra.mxu0 0.0
        %447 = vmatprep.subr.mxu0 0.0
        %448 = vmatpush1.msra.mxu0 0.0
        %449 = vmatprep.subr.mxu0 0.0
        %450 = vmatpush1.msra.mxu0 0.0
        %451 = vmatprep.subr.mxu0 0.0
        %452 = vmatpush1.msra.mxu0 0.0
        %453 = vmatprep.subr.mxu0 0.0
        %454 = vmatpush1.msra.mxu0 0.0
        %455 = vmatprep.subr.mxu0 0.0
        %456 = vmatpush1.msra.mxu0 0.0
        %457 = vmatprep.subr.mxu0 0.0
        %458 = vmatpush1.msra.mxu0 0.0
        %459 = vmatprep.subr.mxu0 0.0
        %460 = vmatpush1.msra.mxu0 0.0
        %461 = vmatprep.subr.mxu0 0.0
        %462 = vmatpush1.msra.mxu0 0.0
        %463 = vmatprep.subr.mxu0 0.0
        %464 = vmatpush1.msra.mxu0 0.0
        %465 = vmatprep.subr.mxu0 0.0
        %466 = vmatpush1.msra.mxu0 0.0
        %467 = vmatprep.subr.mxu0 0.0
        %468 = vmatpush1.msra.mxu0 0.0
        %469 = vmatprep.subr.mxu0 0.0
        %470 = vmatpush1.msra.mxu0 0.0
        %471 = vmatprep.subr.mxu0 0.0
        %472 = vmatpush1.msra.mxu0 0.0
        %473 = vmatprep.subr.mxu0 0.0
        %474 = vmatpush1.msra.mxu0 0.0
        %475 = vmatprep.subr.mxu0 0.0
        %476 = vmatpush1.msra.mxu0 0.0
        %477 = vmatprep.subr.mxu0 0.0
        %478 = vmatpush1.msra.mxu0 0.0
        %479 = vmatprep.subr.mxu0 0.0
        %480 = vmatpush1.msra.mxu0 0.0
        %481 = vmatprep.subr.mxu0 0.0
        %482 = vmatpush1.msra.mxu0 0.0
        %483 = vmatprep.subr.mxu0 0.0
        %484 = vmatpush1.msra.mxu0 0.0
        %485 = vmatprep.subr.mxu0 0.0
        %486 = vmatpush1.msra.mxu0 0.0
        %487 = vmatprep.subr.mxu0 0.0
        %488 = vmatpush1.msra.mxu0 0.0
        %489 = vmatprep.subr.mxu0 0.0
        %490 = vmatpush1.msra.mxu0 0.0
        %491 = vmatprep.subr.mxu0 0.0
        %492 = vmatpush1.msra.mxu0 0.0
        %493 = vmatprep.subr.mxu0 0.0
        %494 = vmatpush1.msra.mxu0 0.0
        %495 = vmatprep.mubr.f32.mxu0 0.0
        %496 = vmatmul.mubr.f32.gmra.mrb[0].mxu0 %v386
        %v497 = vpop.f32.mrb[0].mxu0
        %v498 = vadd.f32 0.0, %v497
        %v499 = vpop.f32.mrb[0].mxu0
        %500 = vmatprep.mubr.f32.mxu0 0.0
        %501 = vmatmul.mubr.f32.gmra.mrb[0].mxu0 %v389
        %v502 = vpop.f32.mrb[0].mxu0
        %v503 = vadd.f32 0.0, %v502
        %v504 = vpop.f32.mrb[0].mxu0
        %505 = vmatprep.mubr.f32.mxu0 0.0
        %506 = vmatmul.mubr.f32.gmra.mrb[0].mxu0 %v392
        %v507 = vpop.f32.mrb[0].mxu0
        %v508 = vadd.f32 0.0, %v507
        %v509 = vpop.f32.mrb[0].mxu0
        %510 = vmatprep.mubr.f32.mxu0 0.0
        %511 = vmatmul.mubr.f32.gmra.mrb[0].mxu0 %v395
        %v512 = vpop.f32.mrb[0].mxu0
        %v513 = vadd.f32 0.0, %v512
        %v514 = vpop.f32.mrb[0].mxu0
        %515 = vmatprep.mubr.f32.mxu0 0.0
        %516 = vmatmul.mubr.f32.gmra.mrb[0].mxu0 %v398
        %v517 = vpop.f32.mrb[0].mxu0
        %v518 = vadd.f32 0.0, %v517
        %v519 = vpop.f32.mrb[0].mxu0
        %520 = vmatprep.mubr.f32.mxu0 0.0
        %521 = vmatmul.mubr.f32.gmra.mrb[0].mxu0 %v401
        %v522 = vpop.f32.mrb[0].mxu0
        %v523 = vadd.f32 0.0, %v522
        %v524 = vpop.f32.mrb[0].mxu0
        %525 = vmatprep.mubr.f32.mxu0 0.0
        %526 = vmatmul.mubr.f32.gmra.mrb[0].mxu0 %v404
        %v527 = vpop.f32.mrb[0].mxu0
        %v528 = vadd.f32 0.0, %v527
        %v529 = vpop.f32.mrb[0].mxu0
        %530 = vmatprep.mubr.f32.mxu0 0.0
        %531 = vmatmul.mubr.f32.gmra.mrb[0].mxu0 %v407
        %v532 = vpop.f32.mrb[0].mxu0
        %v533 = vadd.f32 0.0, %v532
        %v534 = vpop.f32.mrb[0].mxu0
        %535 = vmatprep.mubr.f32.mxu0 0.0
        %536 = vmatmul.mubr.f32.gmra.mrb[0].mxu0 %v410
        %v537 = vpop.f32.mrb[0].mxu0
        %v538 = vadd.f32 0.0, %v537
        %v539 = vpop.f32.mrb[0].mxu0
        %540 = vmatprep.mubr.f32.mxu0 0.0
        %541 = vmatmul.mubr.f32.gmra.mrb[0].mxu0 %v413
        %v542 = vpop.f32.mrb[0].mxu0
        %v543 = vadd.f32 0.0, %v542
        %v544 = vpop.f32.mrb[0].mxu0
        %545 = vmatprep.mubr.f32.mxu0 0.0
        %546 = vmatmul.mubr.f32.gmra.mrb[0].mxu0 %v416
        %v547 = vpop.f32.mrb[0].mxu0
        %v548 = vadd.f32 0.0, %v547
        %v549 = vpop.f32.mrb[0].mxu0
        %550 = vmatprep.mubr.f32.mxu0 0.0
        %551 = vmatmul.mubr.f32.gmra.mrb[0].mxu0 %v419
        %v552 = vpop.f32.mrb[0].mxu0
        %v553 = vadd.f32 0.0, %v552
        %v554 = vpop.f32.mrb[0].mxu0
        %555 = vmatprep.mubr.f32.mxu0 0.0
        %556 = vmatmul.mubr.f32.gmra.mrb[0].mxu0 %v422
        %v557 = vpop.f32.mrb[0].mxu0
        %v558 = vadd.f32 0.0, %v557
        %v559 = vpop.f32.mrb[0].mxu0
        %560 = vmatprep.mubr.f32.mxu0 0.0
        %561 = vmatmul.mubr.f32.gmra.mrb[0].mxu0 %v425
        %v562 = vpop.f32.mrb[0].mxu0
        %v563 = vadd.f32 0.0, %v562
        %v564 = vpop.f32.mrb[0].mxu0
        %565 = vdwg.mxu0
        %v567 = vsel %vm384, %v353, 0
        %v570 = vsel %vm384, %v354, 0
        %v573 = vsel %vm384, %v355, 0
        %v576 = vsel %vm384, %v356, 0
        %v579 = vsel %vm384, %v357, 0
        %v582 = vsel %vm384, %v358, 0
        %v585 = vsel %vm384, %v359, 0
        %v588 = vsel %vm384, %v360, 0
        %v591 = vsel %vm384, %v361, 0
        %v594 = vsel %vm384, %v362, 0
        %v597 = vsel %vm384, %v363, 0
        %v600 = vsel %vm384, %v364, 0
        %v603 = vsel %vm384, %v365, 0
        %v606 = vsel %vm384, %v366, 0
        %v609 = vsel %vm427, %v367, 0
        %611 = vmatprep.subr.mxu0 0.0
        %612 = vmatpush1.msra.mxu0 %v609
        %613 = vmatprep.subr.mxu0 0.0
        %614 = vmatpush1.msra.mxu0 0.0
        %615 = vmatprep.subr.mxu0 0.0
        %616 = vmatpush1.msra.mxu0 0.0
        %617 = vmatprep.subr.mxu0 0.0
        %618 = vmatpush1.msra.mxu0 0.0
        %619 = vmatprep.subr.mxu0 0.0
        %620 = vmatpush1.msra.mxu0 0.0
        %621 = vmatprep.subr.mxu0 0.0
        %622 = vmatpush1.msra.mxu0 0.0
        %623 = vmatprep.subr.mxu0 0.0
        %624 = vmatpush1.msra.mxu0 0.0
        %625 = vmatprep.subr.mxu0 0.0
        %626 = vmatpush1.msra.mxu0 0.0
        %627 = vmatprep.subr.mxu0 0.0
        %628 = vmatpush1.msra.mxu0 0.0
        %629 = vmatprep.subr.mxu0 0.0
        %630 = vmatpush1.msra.mxu0 0.0
        %631 = vmatprep.subr.mxu0 0.0
        %632 = vmatpush1.msra.mxu0 0.0
        %633 = vmatprep.subr.mxu0 0.0
        %634 = vmatpush1.msra.mxu0 0.0
        %635 = vmatprep.subr.mxu0 0.0
        %636 = vmatpush1.msra.mxu0 0.0
        %637 = vmatprep.subr.mxu0 0.0
        %638 = vmatpush1.msra.mxu0 0.0
        %639 = vmatprep.subr.mxu0 0.0
        %640 = vmatpush1.msra.mxu0 0.0
        %641 = vmatprep.subr.mxu0 0.0
        %642 = vmatpush1.msra.mxu0 0.0
        %643 = vmatprep.subr.mxu0 0.0
        %644 = vmatpush1.msra.mxu0 0.0
        %645 = vmatprep.subr.mxu0 0.0
        %646 = vmatpush1.msra.mxu0 0.0
        %647 = vmatprep.subr.mxu0 0.0
        %648 = vmatpush1.msra.mxu0 0.0
        %649 = vmatprep.subr.mxu0 0.0
        %650 = vmatpush1.msra.mxu0 0.0
        %651 = vmatprep.subr.mxu0 0.0
        %652 = vmatpush1.msra.mxu0 0.0
        %653 = vmatprep.subr.mxu0 0.0
        %654 = vmatpush1.msra.mxu0 0.0
        %655 = vmatprep.subr.mxu0 0.0
        %656 = vmatpush1.msra.mxu0 0.0
        %657 = vmatprep.subr.mxu0 0.0
        %658 = vmatpush1.msra.mxu0 0.0
        %659 = vmatprep.subr.mxu0 0.0
        %660 = vmatpush1.msra.mxu0 0.0
        %661 = vmatprep.subr.mxu0 0.0
        %662 = vmatpush1.msra.mxu0 0.0
        %663 = vmatprep.subr.mxu0 0.0
        %664 = vmatpush1.msra.mxu0 0.0
        %665 = vmatprep.subr.mxu0 0.0
        %666 = vmatpush1.msra.mxu0 0.0
        %667 = vmatprep.subr.mxu0 0.0
        %668 = vmatpush1.msra.mxu0 0.0
        %669 = vmatprep.subr.mxu0 0.0
        %670 = vmatpush1.msra.mxu0 0.0
        %671 = vmatprep.subr.mxu0 0.0
        %672 = vmatpush1.msra.mxu0 0.0
        %673 = vmatprep.subr.mxu0 0.0
        %674 = vmatpush1.msra.mxu0 0.0
        %675 = vmatprep.mubr.f32.mxu0 0.0
        %676 = vmatmul.mubr.f32.gmra.mrb[0].mxu0 %v567
        %v677 = vpop.f32.mrb[0].mxu0
        %v678 = vadd.f32 %v498, %v677
        %v679 = vpop.f32.mrb[0].mxu0
        %680 = vmatprep.mubr.f32.mxu0 0.0
        %681 = vmatmul.mubr.f32.gmra.mrb[0].mxu0 %v570
        %v682 = vpop.f32.mrb[0].mxu0
        %v683 = vadd.f32 %v503, %v682
        %v684 = vpop.f32.mrb[0].mxu0
        %685 = vmatprep.mubr.f32.mxu0 0.0
        %686 = vmatmul.mubr.f32.gmra.mrb[0].mxu0 %v573
        %v687 = vpop.f32.mrb[0].mxu0
        %v688 = vadd.f32 %v508, %v687
        %v689 = vpop.f32.mrb[0].mxu0
        %690 = vmatprep.mubr.f32.mxu0 0.0
        %691 = vmatmul.mubr.f32.gmra.mrb[0].mxu0 %v576
        %v692 = vpop.f32.mrb[0].mxu0
        %v693 = vadd.f32 %v513, %v692
        %v694 = vpop.f32.mrb[0].mxu0
        %695 = vmatprep.mubr.f32.mxu0 0.0
        %696 = vmatmul.mubr.f32.gmra.mrb[0].mxu0 %v579
        %v697 = vpop.f32.mrb[0].mxu0
        %v698 = vadd.f32 %v518, %v697
        %v699 = vpop.f32.mrb[0].mxu0
        %700 = vmatprep.mubr.f32.mxu0 0.0
        %701 = vmatmul.mubr.f32.gmra.mrb[0].mxu0 %v582
        %v702 = vpop.f32.mrb[0].mxu0
        %v703 = vadd.f32 %v523, %v702
        %v704 = vpop.f32.mrb[0].mxu0
        %705 = vmatprep.mubr.f32.mxu0 0.0
        %706 = vmatmul.mubr.f32.gmra.mrb[0].mxu0 %v585
        %v707 = vpop.f32.mrb[0].mxu0
        %v708 = vadd.f32 %v528, %v707
        %v709 = vpop.f32.mrb[0].mxu0
        %710 = vmatprep.mubr.f32.mxu0 0.0
        %711 = vmatmul.mubr.f32.gmra.mrb[0].mxu0 %v588
        %v712 = vpop.f32.mrb[0].mxu0
        %v713 = vadd.f32 %v533, %v712
        %v714 = vpop.f32.mrb[0].mxu0
        %715 = vmatprep.mubr.f32.mxu0 0.0
        %716 = vmatmul.mubr.f32.gmra.mrb[0].mxu0 %v591
        %v717 = vpop.f32.mrb[0].mxu0
        %v718 = vadd.f32 %v538, %v717
        %v719 = vpop.f32.mrb[0].mxu0
        %720 = vmatprep.mubr.f32.mxu0 0.0
        %721 = vmatmul.mubr.f32.gmra.mrb[0].mxu0 %v594
        %v722 = vpop.f32.mrb[0].mxu0
        %v723 = vadd.f32 %v543, %v722
        %v724 = vpop.f32.mrb[0].mxu0
        %725 = vmatprep.mubr.f32.mxu0 0.0
        %726 = vmatmul.mubr.f32.gmra.mrb[0].mxu0 %v597
        %v727 = vpop.f32.mrb[0].mxu0
        %v728 = vadd.f32 %v548, %v727
        %v729 = vpop.f32.mrb[0].mxu0
        %730 = vmatprep.mubr.f32.mxu0 0.0
        %731 = vmatmul.mubr.f32.gmra.mrb[0].mxu0 %v600
        %v732 = vpop.f32.mrb[0].mxu0
        %v733 = vadd.f32 %v553, %v732
        %v734 = vpop.f32.mrb[0].mxu0
        %735 = vmatprep.mubr.f32.mxu0 0.0
        %736 = vmatmul.mubr.f32.gmra.mrb[0].mxu0 %v603
        %v737 = vpop.f32.mrb[0].mxu0
        %v738 = vadd.f32 %v558, %v737
        %v739 = vpop.f32.mrb[0].mxu0
        %740 = vmatprep.mubr.f32.mxu0 0.0
        %741 = vmatmul.mubr.f32.gmra.mrb[0].mxu0 %v606
        %v742 = vpop.f32.mrb[0].mxu0
        %v743 = vadd.f32 %v563, %v742
        %v744 = vpop.f32.mrb[0].mxu0
        %745 = vdwg.mxu0
        %v746 = vld [vmem:[%s280 + $0x2] sm:$0xff]
        %v747 = vld [vmem:[%s280 + $0xa] sm:$0xff]
        %v748 = vld [vmem:[%s280 + $0x12] sm:$0xff]
        %v749 = vld [vmem:[%s280 + $0x1a] sm:$0xff]
        %v750 = vld [vmem:[%s280 + $0x22] sm:$0xff]
        %v751 = vld [vmem:[%s280 + $0x2a] sm:$0xff]
        %v752 = vld [vmem:[%s280 + $0x32] sm:$0xff]
        %v753 = vld [vmem:[%s280 + $0x3a] sm:$0xff]
        %v754 = vld [vmem:[%s280 + $0x42] sm:$0xff]
        %v755 = vld [vmem:[%s280 + $0x4a] sm:$0xff]
        %v756 = vld [vmem:[%s280 + $0x52] sm:$0xff]
        %v757 = vld [vmem:[%s280 + $0x5a] sm:$0xff]
        %v758 = vld [vmem:[%s280 + $0x62] sm:$0xff]
        %v759 = vld [vmem:[%s280 + $0x6a] sm:$0xf]
        %s760 = scalar_lea.vmem [#allocation6], 8
        %v761 = vld [vmem:[%s760] sm:$0xf]
        %v763 = vsel %vm384, %v746, 0
        %v766 = vsel %vm384, %v747, 0
        %v769 = vsel %vm384, %v748, 0
        %v772 = vsel %vm384, %v749, 0
        %v775 = vsel %vm384, %v750, 0
        %v778 = vsel %vm384, %v751, 0
        %v781 = vsel %vm384, %v752, 0
        %v784 = vsel %vm384, %v753, 0
        %v787 = vsel %vm384, %v754, 0
        %v790 = vsel %vm384, %v755, 0
        %v793 = vsel %vm384, %v756, 0
        %v796 = vsel %vm384, %v757, 0
        %v799 = vsel %vm384, %v758, 0
        %v802 = vsel %vm384, %v759, 0
        %v805 = vsel %vm427, %v761, 0
        %807 = vmatprep.subr.mxu0 0.0
        %808 = vmatpush1.msra.mxu0 %v805
        %809 = vmatprep.subr.mxu0 0.0
        %810 = vmatpush1.msra.mxu0 0.0
        %811 = vmatprep.subr.mxu0 0.0
        %812 = vmatpush1.msra.mxu0 0.0
        %813 = vmatprep.subr.mxu0 0.0
        %814 = vmatpush1.msra.mxu0 0.0
        %815 = vmatprep.subr.mxu0 0.0
        %816 = vmatpush1.msra.mxu0 0.0
        %817 = vmatprep.subr.mxu0 0.0
        %818 = vmatpush1.msra.mxu0 0.0
        %819 = vmatprep.subr.mxu0 0.0
        %820 = vmatpush1.msra.mxu0 0.0
        %821 = vmatprep.subr.mxu0 0.0
        %822 = vmatpush1.msra.mxu0 0.0
        %823 = vmatprep.subr.mxu0 0.0
        %824 = vmatpush1.msra.mxu0 0.0
        %825 = vmatprep.subr.mxu0 0.0
        %826 = vmatpush1.msra.mxu0 0.0
        %827 = vmatprep.subr.mxu0 0.0
        %828 = vmatpush1.msra.mxu0 0.0
        %829 = vmatprep.subr.mxu0 0.0
        %830 = vmatpush1.msra.mxu0 0.0
        %831 = vmatprep.subr.mxu0 0.0
        %832 = vmatpush1.msra.mxu0 0.0
        %833 = vmatprep.subr.mxu0 0.0
        %834 = vmatpush1.msra.mxu0 0.0
        %835 = vmatprep.subr.mxu0 0.0
        %836 = vmatpush1.msra.mxu0 0.0
        %837 = vmatprep.subr.mxu0 0.0
        %838 = vmatpush1.msra.mxu0 0.0
        %839 = vmatprep.subr.mxu0 0.0
        %840 = vmatpush1.msra.mxu0 0.0
        %841 = vmatprep.subr.mxu0 0.0
        %842 = vmatpush1.msra.mxu0 0.0
        %843 = vmatprep.subr.mxu0 0.0
        %844 = vmatpush1.msra.mxu0 0.0
        %845 = vmatprep.subr.mxu0 0.0
        %846 = vmatpush1.msra.mxu0 0.0
        %847 = vmatprep.subr.mxu0 0.0
        %848 = vmatpush1.msra.mxu0 0.0
        %849 = vmatprep.subr.mxu0 0.0
        %850 = vmatpush1.msra.mxu0 0.0
        %851 = vmatprep.subr.mxu0 0.0
        %852 = vmatpush1.msra.mxu0 0.0
        %853 = vmatprep.subr.mxu0 0.0
        %854 = vmatpush1.msra.mxu0 0.0
        %855 = vmatprep.subr.mxu0 0.0
        %856 = vmatpush1.msra.mxu0 0.0
        %857 = vmatprep.subr.mxu0 0.0
        %858 = vmatpush1.msra.mxu0 0.0
        %859 = vmatprep.subr.mxu0 0.0
        %860 = vmatpush1.msra.mxu0 0.0
        %861 = vmatprep.subr.mxu0 0.0
        %862 = vmatpush1.msra.mxu0 0.0
        %863 = vmatprep.subr.mxu0 0.0
        %864 = vmatpush1.msra.mxu0 0.0
        %865 = vmatprep.subr.mxu0 0.0
        %866 = vmatpush1.msra.mxu0 0.0
        %867 = vmatprep.subr.mxu0 0.0
        %868 = vmatpush1.msra.mxu0 0.0
        %869 = vmatprep.subr.mxu0 0.0
        %870 = vmatpush1.msra.mxu0 0.0
        %871 = vmatprep.mubr.f32.mxu0 0.0
        %872 = vmatmul.mubr.f32.gmra.mrb[0].mxu0 %v763
        %v873 = vpop.f32.mrb[0].mxu0
        %v874 = vadd.f32 0.0, %v873
        %v875 = vpop.f32.mrb[0].mxu0
        %876 = vmatprep.mubr.f32.mxu0 0.0
        %877 = vmatmul.mubr.f32.gmra.mrb[0].mxu0 %v766
        %v878 = vpop.f32.mrb[0].mxu0
        %v879 = vadd.f32 0.0, %v878
        %v880 = vpop.f32.mrb[0].mxu0
        %881 = vmatprep.mubr.f32.mxu0 0.0
        %882 = vmatmul.mubr.f32.gmra.mrb[0].mxu0 %v769
        %v883 = vpop.f32.mrb[0].mxu0
        %v884 = vadd.f32 0.0, %v883
        %v885 = vpop.f32.mrb[0].mxu0
        %886 = vmatprep.mubr.f32.mxu0 0.0
        %887 = vmatmul.mubr.f32.gmra.mrb[0].mxu0 %v772
        %v888 = vpop.f32.mrb[0].mxu0
        %v889 = vadd.f32 0.0, %v888
        %v890 = vpop.f32.mrb[0].mxu0
        %891 = vmatprep.mubr.f32.mxu0 0.0
        %892 = vmatmul.mubr.f32.gmra.mrb[0].mxu0 %v775
        %v893 = vpop.f32.mrb[0].mxu0
        %v894 = vadd.f32 0.0, %v893
        %v895 = vpop.f32.mrb[0].mxu0
        %896 = vmatprep.mubr.f32.mxu0 0.0
        %897 = vmatmul.mubr.f32.gmra.mrb[0].mxu0 %v778
        %v898 = vpop.f32.mrb[0].mxu0
        %v899 = vadd.f32 0.0, %v898
        %v900 = vpop.f32.mrb[0].mxu0
        %901 = vmatprep.mubr.f32.mxu0 0.0
        %902 = vmatmul.mubr.f32.gmra.mrb[0].mxu0 %v781
        %v903 = vpop.f32.mrb[0].mxu0
        %v904 = vadd.f32 0.0, %v903
        %v905 = vpop.f32.mrb[0].mxu0
        %906 = vmatprep.mubr.f32.mxu0 0.0
        %907 = vmatmul.mubr.f32.gmra.mrb[0].mxu0 %v784
        %v908 = vpop.f32.mrb[0].mxu0
        %v909 = vadd.f32 0.0, %v908
        %v910 = vpop.f32.mrb[0].mxu0
        %911 = vmatprep.mubr.f32.mxu0 0.0
        %912 = vmatmul.mubr.f32.gmra.mrb[0].mxu0 %v787
        %v913 = vpop.f32.mrb[0].mxu0
        %v914 = vadd.f32 0.0, %v913
        %v915 = vpop.f32.mrb[0].mxu0
        %916 = vmatprep.mubr.f32.mxu0 0.0
        %917 = vmatmul.mubr.f32.gmra.mrb[0].mxu0 %v790
        %v918 = vpop.f32.mrb[0].mxu0
        %v919 = vadd.f32 0.0, %v918
        %v920 = vpop.f32.mrb[0].mxu0
        %921 = vmatprep.mubr.f32.mxu0 0.0
        %922 = vmatmul.mubr.f32.gmra.mrb[0].mxu0 %v793
        %v923 = vpop.f32.mrb[0].mxu0
        %v924 = vadd.f32 0.0, %v923
        %v925 = vpop.f32.mrb[0].mxu0
        %926 = vmatprep.mubr.f32.mxu0 0.0
        %927 = vmatmul.mubr.f32.gmra.mrb[0].mxu0 %v796
        %v928 = vpop.f32.mrb[0].mxu0
        %v929 = vadd.f32 0.0, %v928
        %v930 = vpop.f32.mrb[0].mxu0
        %931 = vmatprep.mubr.f32.mxu0 0.0
        %932 = vmatmul.mubr.f32.gmra.mrb[0].mxu0 %v799
        %v933 = vpop.f32.mrb[0].mxu0
        %v934 = vadd.f32 0.0, %v933
        %v935 = vpop.f32.mrb[0].mxu0
        %936 = vmatprep.mubr.f32.mxu0 0.0
        %937 = vmatmul.mubr.f32.gmra.mrb[0].mxu0 %v802
        %v938 = vpop.f32.mrb[0].mxu0
        %v939 = vadd.f32 0.0, %v938
        %v940 = vpop.f32.mrb[0].mxu0
        %941 = vdwg.mxu0
        %v942 = vadd.f32 %v678, %v874
        %v943 = vadd.f32 %v683, %v879
        %v944 = vadd.f32 %v688, %v884
        %v945 = vadd.f32 %v693, %v889
        %v946 = vadd.f32 %v698, %v894
        %v947 = vadd.f32 %v703, %v899
        %v948 = vadd.f32 %v708, %v904
        %v949 = vadd.f32 %v713, %v909
        %v950 = vadd.f32 %v718, %v914
        %v951 = vadd.f32 %v723, %v919
        %v952 = vadd.f32 %v728, %v924
        %v953 = vadd.f32 %v733, %v929
        %v954 = vadd.f32 %v738, %v934
        %v955 = vadd.f32 %v743, %v939
        %v956 = vld [vmem:[%s280 + $0x12] sm:$0xff]
        %v957 = vld [vmem:[%s280 + $0x1a] sm:$0xff]
        %v958 = vld [vmem:[%s280 + $0x22] sm:$0xff]
        %v959 = vld [vmem:[%s280 + $0x2a] sm:$0xff]
        %v960 = vld [vmem:[%s280 + $0x32] sm:$0xff]
        %v961 = vld [vmem:[%s280 + $0x3a] sm:$0xff]
        %v962 = vld [vmem:[%s280 + $0x42] sm:$0xff]
        %v963 = vld [vmem:[%s280 + $0x4a] sm:$0xff]
        %v964 = vld [vmem:[%s280 + $0x52] sm:$0xff]
        %v965 = vld [vmem:[%s280 + $0x5a] sm:$0xff]
        %v966 = vld [vmem:[%s280 + $0x62] sm:$0xff]
        %v967 = vld [vmem:[%s280 + $0x6a] sm:$0xff]
        %v968 = vld [vmem:[%s280 + $0x72] sm:$0xff]
        %v969 = vld [vmem:[%s280 + $0x7a] sm:$0xf]
        %s970 = scalar_lea.vmem [#allocation6], 12
        %v971 = vld [vmem:[%s970] sm:$0xf]
        %v973 = vsel %vm384, %v956, 0
        %v976 = vsel %vm384, %v957, 0
        %v979 = vsel %vm384, %v958, 0
        %v982 = vsel %vm384, %v959, 0
        %v985 = vsel %vm384, %v960, 0
        %v988 = vsel %vm384, %v961, 0
        %v991 = vsel %vm384, %v962, 0
        %v994 = vsel %vm384, %v963, 0
        %v997 = vsel %vm384, %v964, 0
        %v1000 = vsel %vm384, %v965, 0
        %v1003 = vsel %vm384, %v966, 0
        %v1006 = vsel %vm384, %v967, 0
        %v1009 = vsel %vm384, %v968, 0
        %v1012 = vsel %vm384, %v969, 0
        %v1015 = vsel %vm427, %v971, 0
        %1017 = vmatprep.subr.mxu0 0.0
        %1018 = vmatpush1.msra.mxu0 %v1015
        %1019 = vmatprep.subr.mxu0 0.0
        %1020 = vmatpush1.msra.mxu0 0.0
        %1021 = vmatprep.subr.mxu0 0.0
        %1022 = vmatpush1.msra.mxu0 0.0
        %1023 = vmatprep.subr.mxu0 0.0
        %1024 = vmatpush1.msra.mxu0 0.0
        %1025 = vmatprep.subr.mxu0 0.0
        %1026 = vmatpush1.msra.mxu0 0.0
        %1027 = vmatprep.subr.mxu0 0.0
        %1028 = vmatpush1.msra.mxu0 0.0
        %1029 = vmatprep.subr.mxu0 0.0
        %1030 = vmatpush1.msra.mxu0 0.0
        %1031 = vmatprep.subr.mxu0 0.0
        %1032 = vmatpush1.msra.mxu0 0.0
        %1033 = vmatprep.subr.mxu0 0.0
        %1034 = vmatpush1.msra.mxu0 0.0
        %1035 = vmatprep.subr.mxu0 0.0
        %1036 = vmatpush1.msra.mxu0 0.0
        %1037 = vmatprep.subr.mxu0 0.0
        %1038 = vmatpush1.msra.mxu0 0.0
        %1039 = vmatprep.subr.mxu0 0.0
        %1040 = vmatpush1.msra.mxu0 0.0
        %1041 = vmatprep.subr.mxu0 0.0
        %1042 = vmatpush1.msra.mxu0 0.0
        %1043 = vmatprep.subr.mxu0 0.0
        %1044 = vmatpush1.msra.mxu0 0.0
        %1045 = vmatprep.subr.mxu0 0.0
        %1046 = vmatpush1.msra.mxu0 0.0
        %1047 = vmatprep.subr.mxu0 0.0
        %1048 = vmatpush1.msra.mxu0 0.0
        %1049 = vmatprep.subr.mxu0 0.0
        %1050 = vmatpush1.msra.mxu0 0.0
        %1051 = vmatprep.subr.mxu0 0.0
        %1052 = vmatpush1.msra.mxu0 0.0
        %1053 = vmatprep.subr.mxu0 0.0
        %1054 = vmatpush1.msra.mxu0 0.0
        %1055 = vmatprep.subr.mxu0 0.0
        %1056 = vmatpush1.msra.mxu0 0.0
        %1057 = vmatprep.subr.mxu0 0.0
        %1058 = vmatpush1.msra.mxu0 0.0
        %1059 = vmatprep.subr.mxu0 0.0
        %1060 = vmatpush1.msra.mxu0 0.0
        %1061 = vmatprep.subr.mxu0 0.0
        %1062 = vmatpush1.msra.mxu0 0.0
        %1063 = vmatprep.subr.mxu0 0.0
        %1064 = vmatpush1.msra.mxu0 0.0
        %1065 = vmatprep.subr.mxu0 0.0
        %1066 = vmatpush1.msra.mxu0 0.0
        %1067 = vmatprep.subr.mxu0 0.0
        %1068 = vmatpush1.msra.mxu0 0.0
        %1069 = vmatprep.subr.mxu0 0.0
        %1070 = vmatpush1.msra.mxu0 0.0
        %1071 = vmatprep.subr.mxu0 0.0
        %1072 = vmatpush1.msra.mxu0 0.0
        %1073 = vmatprep.subr.mxu0 0.0
        %1074 = vmatpush1.msra.mxu0 0.0
        %1075 = vmatprep.subr.mxu0 0.0
        %1076 = vmatpush1.msra.mxu0 0.0
        %1077 = vmatprep.subr.mxu0 0.0
        %1078 = vmatpush1.msra.mxu0 0.0
        %1079 = vmatprep.subr.mxu0 0.0
        %1080 = vmatpush1.msra.mxu0 0.0
        %1081 = vmatprep.mubr.f32.mxu0 0.0
        %1082 = vmatmul.mubr.f32.gmra.mrb[0].mxu0 %v973
        %v1083 = vpop.f32.mrb[0].mxu0
        %v1084 = vadd.f32 0.0, %v1083
        %v1085 = vpop.f32.mrb[0].mxu0
        %1086 = vmatprep.mubr.f32.mxu0 0.0
        %1087 = vmatmul.mubr.f32.gmra.mrb[0].mxu0 %v976
        %v1088 = vpop.f32.mrb[0].mxu0
        %v1089 = vadd.f32 0.0, %v1088
        %v1090 = vpop.f32.mrb[0].mxu0
        %1091 = vmatprep.mubr.f32.mxu0 0.0
        %1092 = vmatmul.mubr.f32.gmra.mrb[0].mxu0 %v979
        %v1093 = vpop.f32.mrb[0].mxu0
        %v1094 = vadd.f32 0.0, %v1093
        %v1095 = vpop.f32.mrb[0].mxu0
        %1096 = vmatprep.mubr.f32.mxu0 0.0
        %1097 = vmatmul.mubr.f32.gmra.mrb[0].mxu0 %v982
        %v1098 = vpop.f32.mrb[0].mxu0
        %v1099 = vadd.f32 0.0, %v1098
        %v1100 = vpop.f32.mrb[0].mxu0
        %1101 = vmatprep.mubr.f32.mxu0 0.0
        %1102 = vmatmul.mubr.f32.gmra.mrb[0].mxu0 %v985
        %v1103 = vpop.f32.mrb[0].mxu0
        %v1104 = vadd.f32 0.0, %v1103
        %v1105 = vpop.f32.mrb[0].mxu0
        %1106 = vmatprep.mubr.f32.mxu0 0.0
        %1107 = vmatmul.mubr.f32.gmra.mrb[0].mxu0 %v988
        %v1108 = vpop.f32.mrb[0].mxu0
        %v1109 = vadd.f32 0.0, %v1108
        %v1110 = vpop.f32.mrb[0].mxu0
        %1111 = vmatprep.mubr.f32.mxu0 0.0
        %1112 = vmatmul.mubr.f32.gmra.mrb[0].mxu0 %v991
        %v1113 = vpop.f32.mrb[0].mxu0
        %v1114 = vadd.f32 0.0, %v1113
        %v1115 = vpop.f32.mrb[0].mxu0
        %1116 = vmatprep.mubr.f32.mxu0 0.0
        %1117 = vmatmul.mubr.f32.gmra.mrb[0].mxu0 %v994
        %v1118 = vpop.f32.mrb[0].mxu0
        %v1119 = vadd.f32 0.0, %v1118
        %v1120 = vpop.f32.mrb[0].mxu0
        %1121 = vmatprep.mubr.f32.mxu0 0.0
        %1122 = vmatmul.mubr.f32.gmra.mrb[0].mxu0 %v997
        %v1123 = vpop.f32.mrb[0].mxu0
        %v1124 = vadd.f32 0.0, %v1123
        %v1125 = vpop.f32.mrb[0].mxu0
        %1126 = vmatprep.mubr.f32.mxu0 0.0
        %1127 = vmatmul.mubr.f32.gmra.mrb[0].mxu0 %v1000
        %v1128 = vpop.f32.mrb[0].mxu0
        %v1129 = vadd.f32 0.0, %v1128
        %v1130 = vpop.f32.mrb[0].mxu0
        %1131 = vmatprep.mubr.f32.mxu0 0.0
        %1132 = vmatmul.mubr.f32.gmra.mrb[0].mxu0 %v1003
        %v1133 = vpop.f32.mrb[0].mxu0
        %v1134 = vadd.f32 0.0, %v1133
        %v1135 = vpop.f32.mrb[0].mxu0
        %1136 = vmatprep.mubr.f32.mxu0 0.0
        %1137 = vmatmul.mubr.f32.gmra.mrb[0].mxu0 %v1006
        %v1138 = vpop.f32.mrb[0].mxu0
        %v1139 = vadd.f32 0.0, %v1138
        %v1140 = vpop.f32.mrb[0].mxu0
        %1141 = vmatprep.mubr.f32.mxu0 0.0
        %1142 = vmatmul.mubr.f32.gmra.mrb[0].mxu0 %v1009
        %v1143 = vpop.f32.mrb[0].mxu0
        %v1144 = vadd.f32 0.0, %v1143
        %v1145 = vpop.f32.mrb[0].mxu0
        %1146 = vmatprep.mubr.f32.mxu0 0.0
        %1147 = vmatmul.mubr.f32.gmra.mrb[0].mxu0 %v1012
        %v1148 = vpop.f32.mrb[0].mxu0
        %v1149 = vadd.f32 0.0, %v1148
        %v1150 = vpop.f32.mrb[0].mxu0
        %1151 = vdwg.mxu0
        %v1152 = vadd.f32 %v942, %v1084
        %v1153 = vadd.f32 %v943, %v1089
        %v1154 = vadd.f32 %v944, %v1094
        %v1155 = vadd.f32 %v945, %v1099
        %v1156 = vadd.f32 %v946, %v1104
        %v1157 = vadd.f32 %v947, %v1109
        %v1158 = vadd.f32 %v948, %v1114
        %v1159 = vadd.f32 %v949, %v1119
        %v1160 = vadd.f32 %v950, %v1124
        %v1161 = vadd.f32 %v951, %v1129
        %v1162 = vadd.f32 %v952, %v1134
        %v1163 = vadd.f32 %v953, %v1139
        %v1164 = vadd.f32 %v954, %v1144
        %v1165 = vadd.f32 %v955, %v1149
        %v1166 = vld [vmem:[%s280 + $0x13] sm:$0xff]
        %v1167 = vld [vmem:[%s280 + $0x1b] sm:$0xff]
        %v1168 = vld [vmem:[%s280 + $0x23] sm:$0xff]
        %v1169 = vld [vmem:[%s280 + $0x2b] sm:$0xff]
        %v1170 = vld [vmem:[%s280 + $0x33] sm:$0xff]
        %v1171 = vld [vmem:[%s280 + $0x3b] sm:$0xff]
        %v1172 = vld [vmem:[%s280 + $0x43] sm:$0xff]
        %v1173 = vld [vmem:[%s280 + $0x4b] sm:$0xff]
        %v1174 = vld [vmem:[%s280 + $0x53] sm:$0xff]
        %v1175 = vld [vmem:[%s280 + $0x5b] sm:$0xff]
        %v1176 = vld [vmem:[%s280 + $0x63] sm:$0xff]
        %v1177 = vld [vmem:[%s280 + $0x6b] sm:$0xff]
        %v1178 = vld [vmem:[%s280 + $0x73] sm:$0xff]
        %v1179 = vld [vmem:[%s280 + $0x7b] sm:$0xf]
        %s1180 = scalar_lea.vmem [#allocation6], 16
        %v1181 = vld [vmem:[%s1180] sm:$0xf]
        %v1183 = vsel %vm384, %v1166, 0
        %v1186 = vsel %vm384, %v1167, 0
        %v1189 = vsel %vm384, %v1168, 0
        %v1192 = vsel %vm384, %v1169, 0
        %v1195 = vsel %vm384, %v1170, 0
        %v1198 = vsel %vm384, %v1171, 0
        %v1201 = vsel %vm384, %v1172, 0
        %v1204 = vsel %vm384, %v1173, 0
        %v1207 = vsel %vm384, %v1174, 0
        %v1210 = vsel %vm384, %v1175, 0
        %v1213 = vsel %vm384, %v1176, 0
        %v1216 = vsel %vm384, %v1177, 0
        %v1219 = vsel %vm384, %v1178, 0
        %v1222 = vsel %vm384, %v1179, 0
        %v1225 = vsel %vm427, %v1181, 0
        %1227 = vmatprep.subr.mxu0 0.0
        %1228 = vmatpush1.msra.mxu0 %v1225
        %1229 = vmatprep.subr.mxu0 0.0
        %1230 = vmatpush1.msra.mxu0 0.0
        %1231 = vmatprep.subr.mxu0 0.0
        %1232 = vmatpush1.msra.mxu0 0.0
        %1233 = vmatprep.subr.mxu0 0.0
        %1234 = vmatpush1.msra.mxu0 0.0
        %1235 = vmatprep.subr.mxu0 0.0
        %1236 = vmatpush1.msra.mxu0 0.0
        %1237 = vmatprep.subr.mxu0 0.0
        %1238 = vmatpush1.msra.mxu0 0.0
        %1239 = vmatprep.subr.mxu0 0.0
        %1240 = vmatpush1.msra.mxu0 0.0
        %1241 = vmatprep.subr.mxu0 0.0
        %1242 = vmatpush1.msra.mxu0 0.0
        %1243 = vmatprep.subr.mxu0 0.0
        %1244 = vmatpush1.msra.mxu0 0.0
        %1245 = vmatprep.subr.mxu0 0.0
        %1246 = vmatpush1.msra.mxu0 0.0
        %1247 = vmatprep.subr.mxu0 0.0
        %1248 = vmatpush1.msra.mxu0 0.0
        %1249 = vmatprep.subr.mxu0 0.0
        %1250 = vmatpush1.msra.mxu0 0.0
        %1251 = vmatprep.subr.mxu0 0.0
        %1252 = vmatpush1.msra.mxu0 0.0
        %1253 = vmatprep.subr.mxu0 0.0
        %1254 = vmatpush1.msra.mxu0 0.0
        %1255 = vmatprep.subr.mxu0 0.0
        %1256 = vmatpush1.msra.mxu0 0.0
        %1257 = vmatprep.subr.mxu0 0.0
        %1258 = vmatpush1.msra.mxu0 0.0
        %1259 = vmatprep.subr.mxu0 0.0
        %1260 = vmatpush1.msra.mxu0 0.0
        %1261 = vmatprep.subr.mxu0 0.0
        %1262 = vmatpush1.msra.mxu0 0.0
        %1263 = vmatprep.subr.mxu0 0.0
        %1264 = vmatpush1.msra.mxu0 0.0
        %1265 = vmatprep.subr.mxu0 0.0
        %1266 = vmatpush1.msra.mxu0 0.0
        %1267 = vmatprep.subr.mxu0 0.0
        %1268 = vmatpush1.msra.mxu0 0.0
        %1269 = vmatprep.subr.mxu0 0.0
        %1270 = vmatpush1.msra.mxu0 0.0
        %1271 = vmatprep.subr.mxu0 0.0
        %1272 = vmatpush1.msra.mxu0 0.0
        %1273 = vmatprep.subr.mxu0 0.0
        %1274 = vmatpush1.msra.mxu0 0.0
        %1275 = vmatprep.subr.mxu0 0.0
        %1276 = vmatpush1.msra.mxu0 0.0
        %1277 = vmatprep.subr.mxu0 0.0
        %1278 = vmatpush1.msra.mxu0 0.0
        %1279 = vmatprep.subr.mxu0 0.0
        %1280 = vmatpush1.msra.mxu0 0.0
        %1281 = vmatprep.subr.mxu0 0.0
        %1282 = vmatpush1.msra.mxu0 0.0
        %1283 = vmatprep.subr.mxu0 0.0
        %1284 = vmatpush1.msra.mxu0 0.0
        %1285 = vmatprep.subr.mxu0 0.0
        %1286 = vmatpush1.msra.mxu0 0.0
        %1287 = vmatprep.subr.mxu0 0.0
        %1288 = vmatpush1.msra.mxu0 0.0
        %1289 = vmatprep.subr.mxu0 0.0
        %1290 = vmatpush1.msra.mxu0 0.0
        %1291 = vmatprep.mubr.f32.mxu0 0.0
        %1292 = vmatmul.mubr.f32.gmra.mrb[0].mxu0 %v1183
        %v1293 = vpop.f32.mrb[0].mxu0
        %v1294 = vadd.f32 0.0, %v1293
        %v1295 = vpop.f32.mrb[0].mxu0
        %1296 = vmatprep.mubr.f32.mxu0 0.0
        %1297 = vmatmul.mubr.f32.gmra.mrb[0].mxu0 %v1186
        %v1298 = vpop.f32.mrb[0].mxu0
        %v1299 = vadd.f32 0.0, %v1298
        %v1300 = vpop.f32.mrb[0].mxu0
        %1301 = vmatprep.mubr.f32.mxu0 0.0
        %1302 = vmatmul.mubr.f32.gmra.mrb[0].mxu0 %v1189
        %v1303 = vpop.f32.mrb[0].mxu0
        %v1304 = vadd.f32 0.0, %v1303
        %v1305 = vpop.f32.mrb[0].mxu0
        %1306 = vmatprep.mubr.f32.mxu0 0.0
        %1307 = vmatmul.mubr.f32.gmra.mrb[0].mxu0 %v1192
        %v1308 = vpop.f32.mrb[0].mxu0
        %v1309 = vadd.f32 0.0, %v1308
        %v1310 = vpop.f32.mrb[0].mxu0
        %1311 = vmatprep.mubr.f32.mxu0 0.0
        %1312 = vmatmul.mubr.f32.gmra.mrb[0].mxu0 %v1195
        %v1313 = vpop.f32.mrb[0].mxu0
        %v1314 = vadd.f32 0.0, %v1313
        %v1315 = vpop.f32.mrb[0].mxu0
        %1316 = vmatprep.mubr.f32.mxu0 0.0
        %1317 = vmatmul.mubr.f32.gmra.mrb[0].mxu0 %v1198
        %v1318 = vpop.f32.mrb[0].mxu0
        %v1319 = vadd.f32 0.0, %v1318
        %v1320 = vpop.f32.mrb[0].mxu0
        %1321 = vmatprep.mubr.f32.mxu0 0.0
        %1322 = vmatmul.mubr.f32.gmra.mrb[0].mxu0 %v1201
        %v1323 = vpop.f32.mrb[0].mxu0
        %v1324 = vadd.f32 0.0, %v1323
        %v1325 = vpop.f32.mrb[0].mxu0
        %1326 = vmatprep.mubr.f32.mxu0 0.0
        %1327 = vmatmul.mubr.f32.gmra.mrb[0].mxu0 %v1204
        %v1328 = vpop.f32.mrb[0].mxu0
        %v1329 = vadd.f32 0.0, %v1328
        %v1330 = vpop.f32.mrb[0].mxu0
        %1331 = vmatprep.mubr.f32.mxu0 0.0
        %1332 = vmatmul.mubr.f32.gmra.mrb[0].mxu0 %v1207
        %v1333 = vpop.f32.mrb[0].mxu0
        %v1334 = vadd.f32 0.0, %v1333
        %v1335 = vpop.f32.mrb[0].mxu0
        %1336 = vmatprep.mubr.f32.mxu0 0.0
        %1337 = vmatmul.mubr.f32.gmra.mrb[0].mxu0 %v1210
        %v1338 = vpop.f32.mrb[0].mxu0
        %v1339 = vadd.f32 0.0, %v1338
        %v1340 = vpop.f32.mrb[0].mxu0
        %1341 = vmatprep.mubr.f32.mxu0 0.0
        %1342 = vmatmul.mubr.f32.gmra.mrb[0].mxu0 %v1213
        %v1343 = vpop.f32.mrb[0].mxu0
        %v1344 = vadd.f32 0.0, %v1343
        %v1345 = vpop.f32.mrb[0].mxu0
        %1346 = vmatprep.mubr.f32.mxu0 0.0
        %1347 = vmatmul.mubr.f32.gmra.mrb[0].mxu0 %v1216
        %v1348 = vpop.f32.mrb[0].mxu0
        %v1349 = vadd.f32 0.0, %v1348
        %v1350 = vpop.f32.mrb[0].mxu0
        %1351 = vmatprep.mubr.f32.mxu0 0.0
        %1352 = vmatmul.mubr.f32.gmra.mrb[0].mxu0 %v1219
        %v1353 = vpop.f32.mrb[0].mxu0
        %v1354 = vadd.f32 0.0, %v1353
        %v1355 = vpop.f32.mrb[0].mxu0
        %1356 = vmatprep.mubr.f32.mxu0 0.0
        %1357 = vmatmul.mubr.f32.gmra.mrb[0].mxu0 %v1222
        %v1358 = vpop.f32.mrb[0].mxu0
        %v1359 = vadd.f32 0.0, %v1358
        %v1360 = vpop.f32.mrb[0].mxu0
        %1361 = vdwg.mxu0
        %v1362 = vadd.f32 %v1152, %v1294
        %v1363 = vadd.f32 %v1153, %v1299
        %v1364 = vadd.f32 %v1154, %v1304
        %v1365 = vadd.f32 %v1155, %v1309
        %v1366 = vadd.f32 %v1156, %v1314
        %v1367 = vadd.f32 %v1157, %v1319
        %v1368 = vadd.f32 %v1158, %v1324
        %v1369 = vadd.f32 %v1159, %v1329
        %v1370 = vadd.f32 %v1160, %v1334
        %v1371 = vadd.f32 %v1161, %v1339
        %v1372 = vadd.f32 %v1162, %v1344
        %v1373 = vadd.f32 %v1163, %v1349
        %v1374 = vadd.f32 %v1164, %v1354
        %v1375 = vadd.f32 %v1165, %v1359
        %v1376 = vld [vmem:[%s280 + $0x14] sm:$0xff]
        %v1377 = vld [vmem:[%s280 + $0x1c] sm:$0xff]
        %v1378 = vld [vmem:[%s280 + $0x24] sm:$0xff]
        %v1379 = vld [vmem:[%s280 + $0x2c] sm:$0xff]
        %v1380 = vld [vmem:[%s280 + $0x34] sm:$0xff]
        %v1381 = vld [vmem:[%s280 + $0x3c] sm:$0xff]
        %v1382 = vld [vmem:[%s280 + $0x44] sm:$0xff]
        %v1383 = vld [vmem:[%s280 + $0x4c] sm:$0xff]
        %v1384 = vld [vmem:[%s280 + $0x54] sm:$0xff]
        %v1385 = vld [vmem:[%s280 + $0x5c] sm:$0xff]
        %v1386 = vld [vmem:[%s280 + $0x64] sm:$0xff]
        %v1387 = vld [vmem:[%s280 + $0x6c] sm:$0xff]
        %v1388 = vld [vmem:[%s280 + $0x74] sm:$0xff]
        %v1389 = vld [vmem:[%s280 + $0x7c] sm:$0xf]
        %s1390 = scalar_lea.vmem [#allocation6], 20
        %v1391 = vld [vmem:[%s1390] sm:$0xf]
        %v1393 = vsel %vm384, %v1376, 0
        %v1396 = vsel %vm384, %v1377, 0
        %v1399 = vsel %vm384, %v1378, 0
        %v1402 = vsel %vm384, %v1379, 0
        %v1405 = vsel %vm384, %v1380, 0
        %v1408 = vsel %vm384, %v1381, 0
        %v1411 = vsel %vm384, %v1382, 0
        %v1414 = vsel %vm384, %v1383, 0
        %v1417 = vsel %vm384, %v1384, 0
        %v1420 = vsel %vm384, %v1385, 0
        %v1423 = vsel %vm384, %v1386, 0
        %v1426 = vsel %vm384, %v1387, 0
        %v1429 = vsel %vm384, %v1388, 0
        %v1432 = vsel %vm384, %v1389, 0
        %v1435 = vsel %vm427, %v1391, 0
        %1437 = vmatprep.subr.mxu0 0.0
        %1438 = vmatpush1.msra.mxu0 %v1435
        %1439 = vmatprep.subr.mxu0 0.0
        %1440 = vmatpush1.msra.mxu0 0.0
        %1441 = vmatprep.subr.mxu0 0.0
        %1442 = vmatpush1.msra.mxu0 0.0
        %1443 = vmatprep.subr.mxu0 0.0
        %1444 = vmatpush1.msra.mxu0 0.0
        %1445 = vmatprep.subr.mxu0 0.0
        %1446 = vmatpush1.msra.mxu0 0.0
        %1447 = vmatprep.subr.mxu0 0.0
        %1448 = vmatpush1.msra.mxu0 0.0
        %1449 = vmatprep.subr.mxu0 0.0
        %1450 = vmatpush1.msra.mxu0 0.0
        %1451 = vmatprep.subr.mxu0 0.0
        %1452 = vmatpush1.msra.mxu0 0.0
        %1453 = vmatprep.subr.mxu0 0.0
        %1454 = vmatpush1.msra.mxu0 0.0
        %1455 = vmatprep.subr.mxu0 0.0
        %1456 = vmatpush1.msra.mxu0 0.0
        %1457 = vmatprep.subr.mxu0 0.0
        %1458 = vmatpush1.msra.mxu0 0.0
        %1459 = vmatprep.subr.mxu0 0.0
        %1460 = vmatpush1.msra.mxu0 0.0
        %1461 = vmatprep.subr.mxu0 0.0
        %1462 = vmatpush1.msra.mxu0 0.0
        %1463 = vmatprep.subr.mxu0 0.0
        %1464 = vmatpush1.msra.mxu0 0.0
        %1465 = vmatprep.subr.mxu0 0.0
        %1466 = vmatpush1.msra.mxu0 0.0
        %1467 = vmatprep.subr.mxu0 0.0
        %1468 = vmatpush1.msra.mxu0 0.0
        %1469 = vmatprep.subr.mxu0 0.0
        %1470 = vmatpush1.msra.mxu0 0.0
        %1471 = vmatprep.subr.mxu0 0.0
        %1472 = vmatpush1.msra.mxu0 0.0
        %1473 = vmatprep.subr.mxu0 0.0
        %1474 = vmatpush1.msra.mxu0 0.0
        %1475 = vmatprep.subr.mxu0 0.0
        %1476 = vmatpush1.msra.mxu0 0.0
        %1477 = vmatprep.subr.mxu0 0.0
        %1478 = vmatpush1.msra.mxu0 0.0
        %1479 = vmatprep.subr.mxu0 0.0
        %1480 = vmatpush1.msra.mxu0 0.0
        %1481 = vmatprep.subr.mxu0 0.0
        %1482 = vmatpush1.msra.mxu0 0.0
        %1483 = vmatprep.subr.mxu0 0.0
        %1484 = vmatpush1.msra.mxu0 0.0
        %1485 = vmatprep.subr.mxu0 0.0
        %1486 = vmatpush1.msra.mxu0 0.0
        %1487 = vmatprep.subr.mxu0 0.0
        %1488 = vmatpush1.msra.mxu0 0.0
        %1489 = vmatprep.subr.mxu0 0.0
        %1490 = vmatpush1.msra.mxu0 0.0
        %1491 = vmatprep.subr.mxu0 0.0
        %1492 = vmatpush1.msra.mxu0 0.0
        %1493 = vmatprep.subr.mxu0 0.0
        %1494 = vmatpush1.msra.mxu0 0.0
        %1495 = vmatprep.subr.mxu0 0.0
        %1496 = vmatpush1.msra.mxu0 0.0
        %1497 = vmatprep.subr.mxu0 0.0
        %1498 = vmatpush1.msra.mxu0 0.0
        %1499 = vmatprep.subr.mxu0 0.0
        %1500 = vmatpush1.msra.mxu0 0.0
        %1501 = vmatprep.mubr.f32.mxu0 0.0
        %1502 = vmatmul.mubr.f32.gmra.mrb[0].mxu0 %v1393
        %v1503 = vpop.f32.mrb[0].mxu0
        %v1504 = vadd.f32 0.0, %v1503
        %v1505 = vpop.f32.mrb[0].mxu0
        %1506 = vmatprep.mubr.f32.mxu0 0.0
        %1507 = vmatmul.mubr.f32.gmra.mrb[0].mxu0 %v1396
        %v1508 = vpop.f32.mrb[0].mxu0
        %v1509 = vadd.f32 0.0, %v1508
        %v1510 = vpop.f32.mrb[0].mxu0
        %1511 = vmatprep.mubr.f32.mxu0 0.0
        %1512 = vmatmul.mubr.f32.gmra.mrb[0].mxu0 %v1399
        %v1513 = vpop.f32.mrb[0].mxu0
        %v1514 = vadd.f32 0.0, %v1513
        %v1515 = vpop.f32.mrb[0].mxu0
        %1516 = vmatprep.mubr.f32.mxu0 0.0
        %1517 = vmatmul.mubr.f32.gmra.mrb[0].mxu0 %v1402
        %v1518 = vpop.f32.mrb[0].mxu0
        %v1519 = vadd.f32 0.0, %v1518
        %v1520 = vpop.f32.mrb[0].mxu0
        %1521 = vmatprep.mubr.f32.mxu0 0.0
        %1522 = vmatmul.mubr.f32.gmra.mrb[0].mxu0 %v1405
        %v1523 = vpop.f32.mrb[0].mxu0
        %v1524 = vadd.f32 0.0, %v1523
        %v1525 = vpop.f32.mrb[0].mxu0
        %1526 = vmatprep.mubr.f32.mxu0 0.0
        %1527 = vmatmul.mubr.f32.gmra.mrb[0].mxu0 %v1408
        %v1528 = vpop.f32.mrb[0].mxu0
        %v1529 = vadd.f32 0.0, %v1528
        %v1530 = vpop.f32.mrb[0].mxu0
        %1531 = vmatprep.mubr.f32.mxu0 0.0
        %1532 = vmatmul.mubr.f32.gmra.mrb[0].mxu0 %v1411
        %v1533 = vpop.f32.mrb[0].mxu0
        %v1534 = vadd.f32 0.0, %v1533
        %v1535 = vpop.f32.mrb[0].mxu0
        %1536 = vmatprep.mubr.f32.mxu0 0.0
        %1537 = vmatmul.mubr.f32.gmra.mrb[0].mxu0 %v1414
        %v1538 = vpop.f32.mrb[0].mxu0
        %v1539 = vadd.f32 0.0, %v1538
        %v1540 = vpop.f32.mrb[0].mxu0
        %1541 = vmatprep.mubr.f32.mxu0 0.0
        %1542 = vmatmul.mubr.f32.gmra.mrb[0].mxu0 %v1417
        %v1543 = vpop.f32.mrb[0].mxu0
        %v1544 = vadd.f32 0.0, %v1543
        %v1545 = vpop.f32.mrb[0].mxu0
        %1546 = vmatprep.mubr.f32.mxu0 0.0
        %1547 = vmatmul.mubr.f32.gmra.mrb[0].mxu0 %v1420
        %v1548 = vpop.f32.mrb[0].mxu0
        %v1549 = vadd.f32 0.0, %v1548
        %v1550 = vpop.f32.mrb[0].mxu0
        %1551 = vmatprep.mubr.f32.mxu0 0.0
        %1552 = vmatmul.mubr.f32.gmra.mrb[0].mxu0 %v1423
        %v1553 = vpop.f32.mrb[0].mxu0
        %v1554 = vadd.f32 0.0, %v1553
        %v1555 = vpop.f32.mrb[0].mxu0
        %1556 = vmatprep.mubr.f32.mxu0 0.0
        %1557 = vmatmul.mubr.f32.gmra.mrb[0].mxu0 %v1426
        %v1558 = vpop.f32.mrb[0].mxu0
        %v1559 = vadd.f32 0.0, %v1558
        %v1560 = vpop.f32.mrb[0].mxu0
        %1561 = vmatprep.mubr.f32.mxu0 0.0
        %1562 = vmatmul.mubr.f32.gmra.mrb[0].mxu0 %v1429
        %v1563 = vpop.f32.mrb[0].mxu0
        %v1564 = vadd.f32 0.0, %v1563
        %v1565 = vpop.f32.mrb[0].mxu0
        %1566 = vmatprep.mubr.f32.mxu0 0.0
        %1567 = vmatmul.mubr.f32.gmra.mrb[0].mxu0 %v1432
        %v1568 = vpop.f32.mrb[0].mxu0
        %v1569 = vadd.f32 0.0, %v1568
        %v1570 = vpop.f32.mrb[0].mxu0
        %1571 = vdwg.mxu0
        %v1572 = vadd.f32 %v1362, %v1504
        %v1573 = vadd.f32 %v1363, %v1509
        %v1574 = vadd.f32 %v1364, %v1514
        %v1575 = vadd.f32 %v1365, %v1519
        %v1576 = vadd.f32 %v1366, %v1524
        %v1577 = vadd.f32 %v1367, %v1529
        %v1578 = vadd.f32 %v1368, %v1534
        %v1579 = vadd.f32 %v1369, %v1539
        %v1580 = vadd.f32 %v1370, %v1544
        %v1581 = vadd.f32 %v1371, %v1549
        %v1582 = vadd.f32 %v1372, %v1554
        %v1583 = vadd.f32 %v1373, %v1559
        %v1584 = vadd.f32 %v1374, %v1564
        %v1585 = vadd.f32 %v1375, %v1569
        %v1586 = vld [vmem:[%s280 + $0x24] sm:$0xff]
        %v1587 = vld [vmem:[%s280 + $0x2c] sm:$0xff]
        %v1588 = vld [vmem:[%s280 + $0x34] sm:$0xff]
        %v1589 = vld [vmem:[%s280 + $0x3c] sm:$0xff]
        %v1590 = vld [vmem:[%s280 + $0x44] sm:$0xff]
        %v1591 = vld [vmem:[%s280 + $0x4c] sm:$0xff]
        %v1592 = vld [vmem:[%s280 + $0x54] sm:$0xff]
        %v1593 = vld [vmem:[%s280 + $0x5c] sm:$0xff]
        %v1594 = vld [vmem:[%s280 + $0x64] sm:$0xff]
        %v1595 = vld [vmem:[%s280 + $0x6c] sm:$0xff]
        %v1596 = vld [vmem:[%s280 + $0x74] sm:$0xff]
        %v1597 = vld [vmem:[%s280 + $0x7c] sm:$0xff]
        %v1598 = vld [vmem:[%s280 + $0x84] sm:$0xff]
        %v1599 = vld [vmem:[%s280 + $0x8c] sm:$0xf]
        %s1600 = scalar_lea.vmem [#allocation6], 24
        %v1601 = vld [vmem:[%s1600] sm:$0xf]
        %v1603 = vsel %vm384, %v1586, 0
        %v1606 = vsel %vm384, %v1587, 0
        %v1609 = vsel %vm384, %v1588, 0
        %v1612 = vsel %vm384, %v1589, 0
        %v1615 = vsel %vm384, %v1590, 0
        %v1618 = vsel %vm384, %v1591, 0
        %v1621 = vsel %vm384, %v1592, 0
        %v1624 = vsel %vm384, %v1593, 0
        %v1627 = vsel %vm384, %v1594, 0
        %v1630 = vsel %vm384, %v1595, 0
        %v1633 = vsel %vm384, %v1596, 0
        %v1636 = vsel %vm384, %v1597, 0
        %v1639 = vsel %vm384, %v1598, 0
        %v1642 = vsel %vm384, %v1599, 0
        %v1645 = vsel %vm427, %v1601, 0
        %1647 = vmatprep.subr.mxu0 0.0
        %1648 = vmatpush1.msra.mxu0 %v1645
        %1649 = vmatprep.subr.mxu0 0.0
        %1650 = vmatpush1.msra.mxu0 0.0
        %1651 = vmatprep.subr.mxu0 0.0
        %1652 = vmatpush1.msra.mxu0 0.0
        %1653 = vmatprep.subr.mxu0 0.0
        %1654 = vmatpush1.msra.mxu0 0.0
        %1655 = vmatprep.subr.mxu0 0.0
        %1656 = vmatpush1.msra.mxu0 0.0
        %1657 = vmatprep.subr.mxu0 0.0
        %1658 = vmatpush1.msra.mxu0 0.0
        %1659 = vmatprep.subr.mxu0 0.0
        %1660 = vmatpush1.msra.mxu0 0.0
        %1661 = vmatprep.subr.mxu0 0.0
        %1662 = vmatpush1.msra.mxu0 0.0
        %1663 = vmatprep.subr.mxu0 0.0
        %1664 = vmatpush1.msra.mxu0 0.0
        %1665 = vmatprep.subr.mxu0 0.0
        %1666 = vmatpush1.msra.mxu0 0.0
        %1667 = vmatprep.subr.mxu0 0.0
        %1668 = vmatpush1.msra.mxu0 0.0
        %1669 = vmatprep.subr.mxu0 0.0
        %1670 = vmatpush1.msra.mxu0 0.0
        %1671 = vmatprep.subr.mxu0 0.0
        %1672 = vmatpush1.msra.mxu0 0.0
        %1673 = vmatprep.subr.mxu0 0.0
        %1674 = vmatpush1.msra.mxu0 0.0
        %1675 = vmatprep.subr.mxu0 0.0
        %1676 = vmatpush1.msra.mxu0 0.0
        %1677 = vmatprep.subr.mxu0 0.0
        %1678 = vmatpush1.msra.mxu0 0.0
        %1679 = vmatprep.subr.mxu0 0.0
        %1680 = vmatpush1.msra.mxu0 0.0
        %1681 = vmatprep.subr.mxu0 0.0
        %1682 = vmatpush1.msra.mxu0 0.0
        %1683 = vmatprep.subr.mxu0 0.0
        %1684 = vmatpush1.msra.mxu0 0.0
        %1685 = vmatprep.subr.mxu0 0.0
        %1686 = vmatpush1.msra.mxu0 0.0
        %1687 = vmatprep.subr.mxu0 0.0
        %1688 = vmatpush1.msra.mxu0 0.0
        %1689 = vmatprep.subr.mxu0 0.0
        %1690 = vmatpush1.msra.mxu0 0.0
        %1691 = vmatprep.subr.mxu0 0.0
        %1692 = vmatpush1.msra.mxu0 0.0
        %1693 = vmatprep.subr.mxu0 0.0
        %1694 = vmatpush1.msra.mxu0 0.0
        %1695 = vmatprep.subr.mxu0 0.0
        %1696 = vmatpush1.msra.mxu0 0.0
        %1697 = vmatprep.subr.mxu0 0.0
        %1698 = vmatpush1.msra.mxu0 0.0
        %1699 = vmatprep.subr.mxu0 0.0
        %1700 = vmatpush1.msra.mxu0 0.0
        %1701 = vmatprep.subr.mxu0 0.0
        %1702 = vmatpush1.msra.mxu0 0.0
        %1703 = vmatprep.subr.mxu0 0.0
        %1704 = vmatpush1.msra.mxu0 0.0
        %1705 = vmatprep.subr.mxu0 0.0
        %1706 = vmatpush1.msra.mxu0 0.0
        %1707 = vmatprep.subr.mxu0 0.0
        %1708 = vmatpush1.msra.mxu0 0.0
        %1709 = vmatprep.subr.mxu0 0.0
        %1710 = vmatpush1.msra.mxu0 0.0
        %1711 = vmatprep.mubr.f32.mxu0 0.0
        %1712 = vmatmul.mubr.f32.gmra.mrb[0].mxu0 %v1603
        %v1713 = vpop.f32.mrb[0].mxu0
        %v1714 = vadd.f32 0.0, %v1713
        %v1715 = vpop.f32.mrb[0].mxu0
        %1716 = vmatprep.mubr.f32.mxu0 0.0
        %1717 = vmatmul.mubr.f32.gmra.mrb[0].mxu0 %v1606
        %v1718 = vpop.f32.mrb[0].mxu0
        %v1719 = vadd.f32 0.0, %v1718
        %v1720 = vpop.f32.mrb[0].mxu0
        %1721 = vmatprep.mubr.f32.mxu0 0.0
        %1722 = vmatmul.mubr.f32.gmra.mrb[0].mxu0 %v1609
        %v1723 = vpop.f32.mrb[0].mxu0
        %v1724 = vadd.f32 0.0, %v1723
        %v1725 = vpop.f32.mrb[0].mxu0
        %1726 = vmatprep.mubr.f32.mxu0 0.0
        %1727 = vmatmul.mubr.f32.gmra.mrb[0].mxu0 %v1612
        %v1728 = vpop.f32.mrb[0].mxu0
        %v1729 = vadd.f32 0.0, %v1728
        %v1730 = vpop.f32.mrb[0].mxu0
        %1731 = vmatprep.mubr.f32.mxu0 0.0
        %1732 = vmatmul.mubr.f32.gmra.mrb[0].mxu0 %v1615
        %v1733 = vpop.f32.mrb[0].mxu0
        %v1734 = vadd.f32 0.0, %v1733
        %v1735 = vpop.f32.mrb[0].mxu0
        %1736 = vmatprep.mubr.f32.mxu0 0.0
        %1737 = vmatmul.mubr.f32.gmra.mrb[0].mxu0 %v1618
        %v1738 = vpop.f32.mrb[0].mxu0
        %v1739 = vadd.f32 0.0, %v1738
        %v1740 = vpop.f32.mrb[0].mxu0
        %1741 = vmatprep.mubr.f32.mxu0 0.0
        %1742 = vmatmul.mubr.f32.gmra.mrb[0].mxu0 %v1621
        %v1743 = vpop.f32.mrb[0].mxu0
        %v1744 = vadd.f32 0.0, %v1743
        %v1745 = vpop.f32.mrb[0].mxu0
        %1746 = vmatprep.mubr.f32.mxu0 0.0
        %1747 = vmatmul.mubr.f32.gmra.mrb[0].mxu0 %v1624
        %v1748 = vpop.f32.mrb[0].mxu0
        %v1749 = vadd.f32 0.0, %v1748
        %v1750 = vpop.f32.mrb[0].mxu0
        %1751 = vmatprep.mubr.f32.mxu0 0.0
        %1752 = vmatmul.mubr.f32.gmra.mrb[0].mxu0 %v1627
        %v1753 = vpop.f32.mrb[0].mxu0
        %v1754 = vadd.f32 0.0, %v1753
        %v1755 = vpop.f32.mrb[0].mxu0
        %1756 = vmatprep.mubr.f32.mxu0 0.0
        %1757 = vmatmul.mubr.f32.gmra.mrb[0].mxu0 %v1630
        %v1758 = vpop.f32.mrb[0].mxu0
        %v1759 = vadd.f32 0.0, %v1758
        %v1760 = vpop.f32.mrb[0].mxu0
        %1761 = vmatprep.mubr.f32.mxu0 0.0
        %1762 = vmatmul.mubr.f32.gmra.mrb[0].mxu0 %v1633
        %v1763 = vpop.f32.mrb[0].mxu0
        %v1764 = vadd.f32 0.0, %v1763
        %v1765 = vpop.f32.mrb[0].mxu0
        %1766 = vmatprep.mubr.f32.mxu0 0.0
        %1767 = vmatmul.mubr.f32.gmra.mrb[0].mxu0 %v1636
        %v1768 = vpop.f32.mrb[0].mxu0
        %v1769 = vadd.f32 0.0, %v1768
        %v1770 = vpop.f32.mrb[0].mxu0
        %1771 = vmatprep.mubr.f32.mxu0 0.0
        %1772 = vmatmul.mubr.f32.gmra.mrb[0].mxu0 %v1639
        %v1773 = vpop.f32.mrb[0].mxu0
        %v1774 = vadd.f32 0.0, %v1773
        %v1775 = vpop.f32.mrb[0].mxu0
        %1776 = vmatprep.mubr.f32.mxu0 0.0
        %1777 = vmatmul.mubr.f32.gmra.mrb[0].mxu0 %v1642
        %v1778 = vpop.f32.mrb[0].mxu0
        %v1779 = vadd.f32 0.0, %v1778
        %v1780 = vpop.f32.mrb[0].mxu0
        %1781 = vdwg.mxu0
        %v1782 = vadd.f32 %v1572, %v1714
        %v1783 = vadd.f32 %v1573, %v1719
        %v1784 = vadd.f32 %v1574, %v1724
        %v1785 = vadd.f32 %v1575, %v1729
        %v1786 = vadd.f32 %v1576, %v1734
        %v1787 = vadd.f32 %v1577, %v1739
        %v1788 = vadd.f32 %v1578, %v1744
        %v1789 = vadd.f32 %v1579, %v1749
        %v1790 = vadd.f32 %v1580, %v1754
        %v1791 = vadd.f32 %v1581, %v1759
        %v1792 = vadd.f32 %v1582, %v1764
        %v1793 = vadd.f32 %v1583, %v1769
        %v1794 = vadd.f32 %v1584, %v1774
        %v1795 = vadd.f32 %v1585, %v1779
        %v1796 = vld [vmem:[%s280 + $0x25] sm:$0xff]
        %v1797 = vld [vmem:[%s280 + $0x2d] sm:$0xff]
        %v1798 = vld [vmem:[%s280 + $0x35] sm:$0xff]
        %v1799 = vld [vmem:[%s280 + $0x3d] sm:$0xff]
        %v1800 = vld [vmem:[%s280 + $0x45] sm:$0xff]
        %v1801 = vld [vmem:[%s280 + $0x4d] sm:$0xff]
        %v1802 = vld [vmem:[%s280 + $0x55] sm:$0xff]
        %v1803 = vld [vmem:[%s280 + $0x5d] sm:$0xff]
        %v1804 = vld [vmem:[%s280 + $0x65] sm:$0xff]
        %v1805 = vld [vmem:[%s280 + $0x6d] sm:$0xff]
        %v1806 = vld [vmem:[%s280 + $0x75] sm:$0xff]
        %v1807 = vld [vmem:[%s280 + $0x7d] sm:$0xff]
        %v1808 = vld [vmem:[%s280 + $0x85] sm:$0xff]
        %v1809 = vld [vmem:[%s280 + $0x8d] sm:$0xf]
        %s1810 = scalar_lea.vmem [#allocation6], 28
        %v1811 = vld [vmem:[%s1810] sm:$0xf]
        %v1813 = vsel %vm384, %v1796, 0
        %v1816 = vsel %vm384, %v1797, 0
        %v1819 = vsel %vm384, %v1798, 0
        %v1822 = vsel %vm384, %v1799, 0
        %v1825 = vsel %vm384, %v1800, 0
        %v1828 = vsel %vm384, %v1801, 0
        %v1831 = vsel %vm384, %v1802, 0
        %v1834 = vsel %vm384, %v1803, 0
        %v1837 = vsel %vm384, %v1804, 0
        %v1840 = vsel %vm384, %v1805, 0
        %v1843 = vsel %vm384, %v1806, 0
        %v1846 = vsel %vm384, %v1807, 0
        %v1849 = vsel %vm384, %v1808, 0
        %v1852 = vsel %vm384, %v1809, 0
        %v1855 = vsel %vm427, %v1811, 0
        %1857 = vmatprep.subr.mxu0 0.0
        %1858 = vmatpush1.msra.mxu0 %v1855
        %1859 = vmatprep.subr.mxu0 0.0
        %1860 = vmatpush1.msra.mxu0 0.0
        %1861 = vmatprep.subr.mxu0 0.0
        %1862 = vmatpush1.msra.mxu0 0.0
        %1863 = vmatprep.subr.mxu0 0.0
        %1864 = vmatpush1.msra.mxu0 0.0
        %1865 = vmatprep.subr.mxu0 0.0
        %1866 = vmatpush1.msra.mxu0 0.0
        %1867 = vmatprep.subr.mxu0 0.0
        %1868 = vmatpush1.msra.mxu0 0.0
        %1869 = vmatprep.subr.mxu0 0.0
        %1870 = vmatpush1.msra.mxu0 0.0
        %1871 = vmatprep.subr.mxu0 0.0
        %1872 = vmatpush1.msra.mxu0 0.0
        %1873 = vmatprep.subr.mxu0 0.0
        %1874 = vmatpush1.msra.mxu0 0.0
        %1875 = vmatprep.subr.mxu0 0.0
        %1876 = vmatpush1.msra.mxu0 0.0
        %1877 = vmatprep.subr.mxu0 0.0
        %1878 = vmatpush1.msra.mxu0 0.0
        %1879 = vmatprep.subr.mxu0 0.0
        %1880 = vmatpush1.msra.mxu0 0.0
        %1881 = vmatprep.subr.mxu0 0.0
        %1882 = vmatpush1.msra.mxu0 0.0
        %1883 = vmatprep.subr.mxu0 0.0
        %1884 = vmatpush1.msra.mxu0 0.0
        %1885 = vmatprep.subr.mxu0 0.0
        %1886 = vmatpush1.msra.mxu0 0.0
        %1887 = vmatprep.subr.mxu0 0.0
        %1888 = vmatpush1.msra.mxu0 0.0
        %1889 = vmatprep.subr.mxu0 0.0
        %1890 = vmatpush1.msra.mxu0 0.0
        %1891 = vmatprep.subr.mxu0 0.0
        %1892 = vmatpush1.msra.mxu0 0.0
        %1893 = vmatprep.subr.mxu0 0.0
        %1894 = vmatpush1.msra.mxu0 0.0
        %1895 = vmatprep.subr.mxu0 0.0
        %1896 = vmatpush1.msra.mxu0 0.0
        %1897 = vmatprep.subr.mxu0 0.0
        %1898 = vmatpush1.msra.mxu0 0.0
        %1899 = vmatprep.subr.mxu0 0.0
        %1900 = vmatpush1.msra.mxu0 0.0
        %1901 = vmatprep.subr.mxu0 0.0
        %1902 = vmatpush1.msra.mxu0 0.0
        %1903 = vmatprep.subr.mxu0 0.0
        %1904 = vmatpush1.msra.mxu0 0.0
        %1905 = vmatprep.subr.mxu0 0.0
        %1906 = vmatpush1.msra.mxu0 0.0
        %1907 = vmatprep.subr.mxu0 0.0
        %1908 = vmatpush1.msra.mxu0 0.0
        %1909 = vmatprep.subr.mxu0 0.0
        %1910 = vmatpush1.msra.mxu0 0.0
        %1911 = vmatprep.subr.mxu0 0.0
        %1912 = vmatpush1.msra.mxu0 0.0
        %1913 = vmatprep.subr.mxu0 0.0
        %1914 = vmatpush1.msra.mxu0 0.0
        %1915 = vmatprep.subr.mxu0 0.0
        %1916 = vmatpush1.msra.mxu0 0.0
        %1917 = vmatprep.subr.mxu0 0.0
        %1918 = vmatpush1.msra.mxu0 0.0
        %1919 = vmatprep.subr.mxu0 0.0
        %1920 = vmatpush1.msra.mxu0 0.0
        %1921 = vmatprep.mubr.f32.mxu0 0.0
        %1922 = vmatmul.mubr.f32.gmra.mrb[0].mxu0 %v1813
        %v1923 = vpop.f32.mrb[0].mxu0
        %v1924 = vadd.f32 0.0, %v1923
        %v1925 = vpop.f32.mrb[0].mxu0
        %1926 = vmatprep.mubr.f32.mxu0 0.0
        %1927 = vmatmul.mubr.f32.gmra.mrb[0].mxu0 %v1816
        %v1928 = vpop.f32.mrb[0].mxu0
        %v1929 = vadd.f32 0.0, %v1928
        %v1930 = vpop.f32.mrb[0].mxu0
        %1931 = vmatprep.mubr.f32.mxu0 0.0
        %1932 = vmatmul.mubr.f32.gmra.mrb[0].mxu0 %v1819
        %v1933 = vpop.f32.mrb[0].mxu0
        %v1934 = vadd.f32 0.0, %v1933
        %v1935 = vpop.f32.mrb[0].mxu0
        %1936 = vmatprep.mubr.f32.mxu0 0.0
        %1937 = vmatmul.mubr.f32.gmra.mrb[0].mxu0 %v1822
        %v1938 = vpop.f32.mrb[0].mxu0
        %v1939 = vadd.f32 0.0, %v1938
        %v1940 = vpop.f32.mrb[0].mxu0
        %1941 = vmatprep.mubr.f32.mxu0 0.0
        %1942 = vmatmul.mubr.f32.gmra.mrb[0].mxu0 %v1825
        %v1943 = vpop.f32.mrb[0].mxu0
        %v1944 = vadd.f32 0.0, %v1943
        %v1945 = vpop.f32.mrb[0].mxu0
        %1946 = vmatprep.mubr.f32.mxu0 0.0
        %1947 = vmatmul.mubr.f32.gmra.mrb[0].mxu0 %v1828
        %v1948 = vpop.f32.mrb[0].mxu0
        %v1949 = vadd.f32 0.0, %v1948
        %v1950 = vpop.f32.mrb[0].mxu0
        %1951 = vmatprep.mubr.f32.mxu0 0.0
        %1952 = vmatmul.mubr.f32.gmra.mrb[0].mxu0 %v1831
        %v1953 = vpop.f32.mrb[0].mxu0
        %v1954 = vadd.f32 0.0, %v1953
        %v1955 = vpop.f32.mrb[0].mxu0
        %1956 = vmatprep.mubr.f32.mxu0 0.0
        %1957 = vmatmul.mubr.f32.gmra.mrb[0].mxu0 %v1834
        %v1958 = vpop.f32.mrb[0].mxu0
        %v1959 = vadd.f32 0.0, %v1958
        %v1960 = vpop.f32.mrb[0].mxu0
        %1961 = vmatprep.mubr.f32.mxu0 0.0
        %1962 = vmatmul.mubr.f32.gmra.mrb[0].mxu0 %v1837
        %v1963 = vpop.f32.mrb[0].mxu0
        %v1964 = vadd.f32 0.0, %v1963
        %v1965 = vpop.f32.mrb[0].mxu0
        %1966 = vmatprep.mubr.f32.mxu0 0.0
        %1967 = vmatmul.mubr.f32.gmra.mrb[0].mxu0 %v1840
        %v1968 = vpop.f32.mrb[0].mxu0
        %v1969 = vadd.f32 0.0, %v1968
        %v1970 = vpop.f32.mrb[0].mxu0
        %1971 = vmatprep.mubr.f32.mxu0 0.0
        %1972 = vmatmul.mubr.f32.gmra.mrb[0].mxu0 %v1843
        %v1973 = vpop.f32.mrb[0].mxu0
        %v1974 = vadd.f32 0.0, %v1973
        %v1975 = vpop.f32.mrb[0].mxu0
        %1976 = vmatprep.mubr.f32.mxu0 0.0
        %1977 = vmatmul.mubr.f32.gmra.mrb[0].mxu0 %v1846
        %v1978 = vpop.f32.mrb[0].mxu0
        %v1979 = vadd.f32 0.0, %v1978
        %v1980 = vpop.f32.mrb[0].mxu0
        %1981 = vmatprep.mubr.f32.mxu0 0.0
        %1982 = vmatmul.mubr.f32.gmra.mrb[0].mxu0 %v1849
        %v1983 = vpop.f32.mrb[0].mxu0
        %v1984 = vadd.f32 0.0, %v1983
        %v1985 = vpop.f32.mrb[0].mxu0
        %1986 = vmatprep.mubr.f32.mxu0 0.0
        %1987 = vmatmul.mubr.f32.gmra.mrb[0].mxu0 %v1852
        %v1988 = vpop.f32.mrb[0].mxu0
        %v1989 = vadd.f32 0.0, %v1988
        %v1990 = vpop.f32.mrb[0].mxu0
        %1991 = vdwg.mxu0
        %v1992 = vadd.f32 %v1782, %v1924
        %v1993 = vadd.f32 %v1783, %v1929
        %v1994 = vadd.f32 %v1784, %v1934
        %v1995 = vadd.f32 %v1785, %v1939
        %v1996 = vadd.f32 %v1786, %v1944
        %v1997 = vadd.f32 %v1787, %v1949
        %v1998 = vadd.f32 %v1788, %v1954
        %v1999 = vadd.f32 %v1789, %v1959
        %v2000 = vadd.f32 %v1790, %v1964
        %v2001 = vadd.f32 %v1791, %v1969
        %v2002 = vadd.f32 %v1792, %v1974
        %v2003 = vadd.f32 %v1793, %v1979
        %v2004 = vadd.f32 %v1794, %v1984
        %v2005 = vadd.f32 %v1795, %v1989
        %v2006 = vld [vmem:[%s280 + $0x26] sm:$0xff]
        %v2007 = vld [vmem:[%s280 + $0x2e] sm:$0xff]
        %v2008 = vld [vmem:[%s280 + $0x36] sm:$0xff]
        %v2009 = vld [vmem:[%s280 + $0x3e] sm:$0xff]
        %v2010 = vld [vmem:[%s280 + $0x46] sm:$0xff]
        %v2011 = vld [vmem:[%s280 + $0x4e] sm:$0xff]
        %v2012 = vld [vmem:[%s280 + $0x56] sm:$0xff]
        %v2013 = vld [vmem:[%s280 + $0x5e] sm:$0xff]
        %v2014 = vld [vmem:[%s280 + $0x66] sm:$0xff]
        %v2015 = vld [vmem:[%s280 + $0x6e] sm:$0xff]
        %v2016 = vld [vmem:[%s280 + $0x76] sm:$0xff]
        %v2017 = vld [vmem:[%s280 + $0x7e] sm:$0xff]
        %v2018 = vld [vmem:[%s280 + $0x86] sm:$0xff]
        %v2019 = vld [vmem:[%s280 + $0x8e] sm:$0xf]
        %s2020 = scalar_lea.vmem [#allocation6], 32
        %v2021 = vld [vmem:[%s2020] sm:$0xf]
        %v2023 = vsel %vm384, %v2006, 0
        %v2026 = vsel %vm384, %v2007, 0
        %v2029 = vsel %vm384, %v2008, 0
        %v2032 = vsel %vm384, %v2009, 0
        %v2035 = vsel %vm384, %v2010, 0
        %v2038 = vsel %vm384, %v2011, 0
        %v2041 = vsel %vm384, %v2012, 0
        %v2044 = vsel %vm384, %v2013, 0
        %v2047 = vsel %vm384, %v2014, 0
        %v2050 = vsel %vm384, %v2015, 0
        %v2053 = vsel %vm384, %v2016, 0
        %v2056 = vsel %vm384, %v2017, 0
        %v2059 = vsel %vm384, %v2018, 0
        %v2062 = vsel %vm384, %v2019, 0
        %v2065 = vsel %vm427, %v2021, 0
        %2067 = vmatprep.subr.mxu0 0.0
        %2068 = vmatpush1.msra.mxu0 %v2065
        %2069 = vmatprep.subr.mxu0 0.0
        %2070 = vmatpush1.msra.mxu0 0.0
        %2071 = vmatprep.subr.mxu0 0.0
        %2072 = vmatpush1.msra.mxu0 0.0
        %2073 = vmatprep.subr.mxu0 0.0
        %2074 = vmatpush1.msra.mxu0 0.0
        %2075 = vmatprep.subr.mxu0 0.0
        %2076 = vmatpush1.msra.mxu0 0.0
        %2077 = vmatprep.subr.mxu0 0.0
        %2078 = vmatpush1.msra.mxu0 0.0
        %2079 = vmatprep.subr.mxu0 0.0
        %2080 = vmatpush1.msra.mxu0 0.0
        %2081 = vmatprep.subr.mxu0 0.0
        %2082 = vmatpush1.msra.mxu0 0.0
        %2083 = vmatprep.subr.mxu0 0.0
        %2084 = vmatpush1.msra.mxu0 0.0
        %2085 = vmatprep.subr.mxu0 0.0
        %2086 = vmatpush1.msra.mxu0 0.0
        %2087 = vmatprep.subr.mxu0 0.0
        %2088 = vmatpush1.msra.mxu0 0.0
        %2089 = vmatprep.subr.mxu0 0.0
        %2090 = vmatpush1.msra.mxu0 0.0
        %2091 = vmatprep.subr.mxu0 0.0
        %2092 = vmatpush1.msra.mxu0 0.0
        %2093 = vmatprep.subr.mxu0 0.0
        %2094 = vmatpush1.msra.mxu0 0.0
        %2095 = vmatprep.subr.mxu0 0.0
        %2096 = vmatpush1.msra.mxu0 0.0
        %2097 = vmatprep.subr.mxu0 0.0
        %2098 = vmatpush1.msra.mxu0 0.0
        %2099 = vmatprep.subr.mxu0 0.0
        %2100 = vmatpush1.msra.mxu0 0.0
        %2101 = vmatprep.subr.mxu0 0.0
        %2102 = vmatpush1.msra.mxu0 0.0
        %2103 = vmatprep.subr.mxu0 0.0
        %2104 = vmatpush1.msra.mxu0 0.0
        %2105 = vmatprep.subr.mxu0 0.0
        %2106 = vmatpush1.msra.mxu0 0.0
        %2107 = vmatprep.subr.mxu0 0.0
        %2108 = vmatpush1.msra.mxu0 0.0
        %2109 = vmatprep.subr.mxu0 0.0
        %2110 = vmatpush1.msra.mxu0 0.0
        %2111 = vmatprep.subr.mxu0 0.0
        %2112 = vmatpush1.msra.mxu0 0.0
        %2113 = vmatprep.subr.mxu0 0.0
        %2114 = vmatpush1.msra.mxu0 0.0
        %2115 = vmatprep.subr.mxu0 0.0
        %2116 = vmatpush1.msra.mxu0 0.0
        %2117 = vmatprep.subr.mxu0 0.0
        %2118 = vmatpush1.msra.mxu0 0.0
        %2119 = vmatprep.subr.mxu0 0.0
        %2120 = vmatpush1.msra.mxu0 0.0
        %2121 = vmatprep.subr.mxu0 0.0
        %2122 = vmatpush1.msra.mxu0 0.0
        %2123 = vmatprep.subr.mxu0 0.0
        %2124 = vmatpush1.msra.mxu0 0.0
        %2125 = vmatprep.subr.mxu0 0.0
        %2126 = vmatpush1.msra.mxu0 0.0
        %2127 = vmatprep.subr.mxu0 0.0
        %2128 = vmatpush1.msra.mxu0 0.0
        %2129 = vmatprep.subr.mxu0 0.0
        %2130 = vmatpush1.msra.mxu0 0.0
        %2131 = vmatprep.mubr.f32.mxu0 0.0
        %2132 = vmatmul.mubr.f32.gmra.mrb[0].mxu0 %v2023
        %v2133 = vpop.f32.mrb[0].mxu0
        %v2134 = vadd.f32 0.0, %v2133
        %v2135 = vpop.f32.mrb[0].mxu0
        %2136 = vmatprep.mubr.f32.mxu0 0.0
        %2137 = vmatmul.mubr.f32.gmra.mrb[0].mxu0 %v2026
        %v2138 = vpop.f32.mrb[0].mxu0
        %v2139 = vadd.f32 0.0, %v2138
        %v2140 = vpop.f32.mrb[0].mxu0
        %2141 = vmatprep.mubr.f32.mxu0 0.0
        %2142 = vmatmul.mubr.f32.gmra.mrb[0].mxu0 %v2029
        %v2143 = vpop.f32.mrb[0].mxu0
        %v2144 = vadd.f32 0.0, %v2143
        %v2145 = vpop.f32.mrb[0].mxu0
        %2146 = vmatprep.mubr.f32.mxu0 0.0
        %2147 = vmatmul.mubr.f32.gmra.mrb[0].mxu0 %v2032
        %v2148 = vpop.f32.mrb[0].mxu0
        %v2149 = vadd.f32 0.0, %v2148
        %v2150 = vpop.f32.mrb[0].mxu0
        %2151 = vmatprep.mubr.f32.mxu0 0.0
        %2152 = vmatmul.mubr.f32.gmra.mrb[0].mxu0 %v2035
        %v2153 = vpop.f32.mrb[0].mxu0
        %v2154 = vadd.f32 0.0, %v2153
        %v2155 = vpop.f32.mrb[0].mxu0
        %2156 = vmatprep.mubr.f32.mxu0 0.0
        %2157 = vmatmul.mubr.f32.gmra.mrb[0].mxu0 %v2038
        %v2158 = vpop.f32.mrb[0].mxu0
        %v2159 = vadd.f32 0.0, %v2158
        %v2160 = vpop.f32.mrb[0].mxu0
        %2161 = vmatprep.mubr.f32.mxu0 0.0
        %2162 = vmatmul.mubr.f32.gmra.mrb[0].mxu0 %v2041
        %v2163 = vpop.f32.mrb[0].mxu0
        %v2164 = vadd.f32 0.0, %v2163
        %v2165 = vpop.f32.mrb[0].mxu0
        %2166 = vmatprep.mubr.f32.mxu0 0.0
        %2167 = vmatmul.mubr.f32.gmra.mrb[0].mxu0 %v2044
        %v2168 = vpop.f32.mrb[0].mxu0
        %v2169 = vadd.f32 0.0, %v2168
        %v2170 = vpop.f32.mrb[0].mxu0
        %2171 = vmatprep.mubr.f32.mxu0 0.0
        %2172 = vmatmul.mubr.f32.gmra.mrb[0].mxu0 %v2047
        %v2173 = vpop.f32.mrb[0].mxu0
        %v2174 = vadd.f32 0.0, %v2173
        %v2175 = vpop.f32.mrb[0].mxu0
        %2176 = vmatprep.mubr.f32.mxu0 0.0
        %2177 = vmatmul.mubr.f32.gmra.mrb[0].mxu0 %v2050
        %v2178 = vpop.f32.mrb[0].mxu0
        %v2179 = vadd.f32 0.0, %v2178
        %v2180 = vpop.f32.mrb[0].mxu0
        %2181 = vmatprep.mubr.f32.mxu0 0.0
        %2182 = vmatmul.mubr.f32.gmra.mrb[0].mxu0 %v2053
        %v2183 = vpop.f32.mrb[0].mxu0
        %v2184 = vadd.f32 0.0, %v2183
        %v2185 = vpop.f32.mrb[0].mxu0
        %2186 = vmatprep.mubr.f32.mxu0 0.0
        %2187 = vmatmul.mubr.f32.gmra.mrb[0].mxu0 %v2056
        %v2188 = vpop.f32.mrb[0].mxu0
        %v2189 = vadd.f32 0.0, %v2188
        %v2190 = vpop.f32.mrb[0].mxu0
        %2191 = vmatprep.mubr.f32.mxu0 0.0
        %2192 = vmatmul.mubr.f32.gmra.mrb[0].mxu0 %v2059
        %v2193 = vpop.f32.mrb[0].mxu0
        %v2194 = vadd.f32 0.0, %v2193
        %v2195 = vpop.f32.mrb[0].mxu0
        %2196 = vmatprep.mubr.f32.mxu0 0.0
        %2197 = vmatmul.mubr.f32.gmra.mrb[0].mxu0 %v2062
        %v2198 = vpop.f32.mrb[0].mxu0
        %v2199 = vadd.f32 0.0, %v2198
        %v2200 = vpop.f32.mrb[0].mxu0
        %2201 = vdwg.mxu0
        %v2202 = vadd.f32 %v1992, %v2134
        %v2203 = vadd.f32 %v1993, %v2139
        %v2204 = vadd.f32 %v1994, %v2144
        %v2205 = vadd.f32 %v1995, %v2149
        %v2206 = vadd.f32 %v1996, %v2154
        %v2207 = vadd.f32 %v1997, %v2159
        %v2208 = vadd.f32 %v1998, %v2164
        %v2209 = vadd.f32 %v1999, %v2169
        %v2210 = vadd.f32 %v2000, %v2174
        %v2211 = vadd.f32 %v2001, %v2179
        %v2212 = vadd.f32 %v2002, %v2184
        %v2213 = vadd.f32 %v2003, %v2189
        %v2214 = vadd.f32 %v2004, %v2194
        %v2215 = vadd.f32 %v2005, %v2199
        %v2216 = vld [vmem:[#allocation2] sm:$0xff]
        %v2217 = vld [vmem:[#allocation2 + $0x8] sm:$0xff]
        %v2218 = vld [vmem:[#allocation2 + $0x10] sm:$0xff]
        %v2219 = vld [vmem:[#allocation2 + $0x18] sm:$0xff]
        %v2220 = vld [vmem:[#allocation2 + $0x20] sm:$0xff]
        %v2221 = vld [vmem:[#allocation2 + $0x28] sm:$0xff]
        %v2222 = vld [vmem:[#allocation2 + $0x30] sm:$0xff]
        %v2223 = vld [vmem:[#allocation2 + $0x38] sm:$0xff]
        %v2224 = vld [vmem:[#allocation2 + $0x40] sm:$0xff]
        %v2225 = vld [vmem:[#allocation2 + $0x48] sm:$0xff]
        %v2226 = vld [vmem:[#allocation2 + $0x50] sm:$0xff]
        %v2227 = vld [vmem:[#allocation2 + $0x58] sm:$0xff]
        %v2228 = vld [vmem:[#allocation2 + $0x60] sm:$0xff]
        %v2229 = vld [vmem:[#allocation2 + $0x68] sm:$0xf]
        %v2230 = vadd.f32 %v2216, %v2202
        %v2231 = vadd.f32 %v2217, %v2203
        %v2232 = vadd.f32 %v2218, %v2204
        %v2233 = vadd.f32 %v2219, %v2205
        %v2234 = vadd.f32 %v2220, %v2206
        %v2235 = vadd.f32 %v2221, %v2207
        %v2236 = vadd.f32 %v2222, %v2208
        %v2237 = vadd.f32 %v2223, %v2209
        %v2238 = vadd.f32 %v2224, %v2210
        %v2239 = vadd.f32 %v2225, %v2211
        %v2240 = vadd.f32 %v2226, %v2212
        %v2241 = vadd.f32 %v2227, %v2213
        %v2242 = vadd.f32 %v2228, %v2214
        %v2243 = vadd.f32 %v2229, %v2215
        %vm2244 = vcmask 64512
        %2245 = vst.msk [vmem:[#allocation2] sm:$0xff] %vm2244, %v2230
        %2246 = vst.msk [vmem:[#allocation2 + $0x8] sm:$0xff] %vm2244, %v2231
        %2247 = vst.msk [vmem:[#allocation2 + $0x10] sm:$0xff] %vm2244, %v2232
        %2248 = vst.msk [vmem:[#allocation2 + $0x18] sm:$0xff] %vm2244, %v2233
        %2249 = vst.msk [vmem:[#allocation2 + $0x20] sm:$0xff] %vm2244, %v2234
        %2250 = vst.msk [vmem:[#allocation2 + $0x28] sm:$0xff] %vm2244, %v2235
        %2251 = vst.msk [vmem:[#allocation2 + $0x30] sm:$0xff] %vm2244, %v2236
        %2252 = vst.msk [vmem:[#allocation2 + $0x38] sm:$0xff] %vm2244, %v2237
        %2253 = vst.msk [vmem:[#allocation2 + $0x40] sm:$0xff] %vm2244, %v2238
        %2254 = vst.msk [vmem:[#allocation2 + $0x48] sm:$0xff] %vm2244, %v2239
        %2255 = vst.msk [vmem:[#allocation2 + $0x50] sm:$0xff] %vm2244, %v2240
        %2256 = vst.msk [vmem:[#allocation2 + $0x58] sm:$0xff] %vm2244, %v2241
        %2257 = vst.msk [vmem:[#allocation2 + $0x60] sm:$0xff] %vm2244, %v2242
        %vm2258 = vcmask 60416
        %2259 = vst.msk [vmem:[#allocation2 + $0x68] sm:$0xf] %vm2258, %v2243
        // Predicated region
        $region49: #{mmseg_fcn_decoder_forward.2} parent=31 // pred_check
          %p2260 = pneg %p333
        $region50: #{mmseg_fcn_decoder_forward.2} parent=31 // pred_check_branch
          %2262 = sbr.rel (%p2260) target = $region52
        $region51: #{mmseg_fcn_decoder_forward.2} parent=31 // pred_region
          %v2263 = vld [vmem:[#allocation2] sm:$0xff]
          %v2264 = vld [vmem:[#allocation2 + $0x8] sm:$0xff]
          %v2265 = vld [vmem:[#allocation2 + $0x10] sm:$0xff]
          %v2266 = vld [vmem:[#allocation2 + $0x18] sm:$0xff]
          %v2267 = vld [vmem:[#allocation2 + $0x20] sm:$0xff]
          %v2268 = vld [vmem:[#allocation2 + $0x28] sm:$0xff]
          %v2269 = vld [vmem:[#allocation2 + $0x30] sm:$0xff]
          %v2270 = vld [vmem:[#allocation2 + $0x38] sm:$0xff]
          %v2271 = vld [vmem:[#allocation2 + $0x40] sm:$0xff]
          %v2272 = vld [vmem:[#allocation2 + $0x48] sm:$0xff]
          %v2273 = vld [vmem:[#allocation2 + $0x50] sm:$0xff]
          %v2274 = vld [vmem:[#allocation2 + $0x58] sm:$0xff]
          %v2275 = vld [vmem:[#allocation2 + $0x60] sm:$0xff]
          %v2276 = vld [vmem:[#allocation2 + $0x68] sm:$0xf]
          %2277 = vst.msk [vmem:[%s320] sm:$0xff] %vm2244, %v2263
          %2278 = vst.msk [vmem:[%s320 + $0x8] sm:$0xff] %vm2244, %v2264
          %2279 = vst.msk [vmem:[%s320 + $0x10] sm:$0xff] %vm2244, %v2265
          %2280 = vst.msk [vmem:[%s320 + $0x18] sm:$0xff] %vm2244, %v2266
          %2281 = vst.msk [vmem:[%s320 + $0x20] sm:$0xff] %vm2244, %v2267
          %2282 = vst.msk [vmem:[%s320 + $0x28] sm:$0xff] %vm2244, %v2268
          %2283 = vst.msk [vmem:[%s320 + $0x30] sm:$0xff] %vm2244, %v2269
          %2284 = vst.msk [vmem:[%s320 + $0x38] sm:$0xff] %vm2244, %v2270
          %2285 = vst.msk [vmem:[%s320 + $0x40] sm:$0xff] %vm2244, %v2271
          %2286 = vst.msk [vmem:[%s320 + $0x48] sm:$0xff] %vm2244, %v2272
          %2287 = vst.msk [vmem:[%s320 + $0x50] sm:$0xff] %vm2244, %v2273
          %2288 = vst.msk [vmem:[%s320 + $0x58] sm:$0xff] %vm2244, %v2274
          %2289 = vst.msk [vmem:[%s320 + $0x60] sm:$0xff] %vm2244, %v2275
          %2290 = vst.msk [vmem:[%s320 + $0x68] sm:$0xf] %vm2258, %v2276
          %v2291 = vld [vmem:[%s293] sm:$0xff]
          %v2292 = vld [vmem:[%s293 + $0x8] sm:$0xff]
          %v2293 = vld [vmem:[%s293 + $0x10] sm:$0xff]
          %v2294 = vld [vmem:[%s293 + $0x18] sm:$0xff]
          %v2295 = vld [vmem:[%s293 + $0x20] sm:$0xff]
          %v2296 = vld [vmem:[%s293 + $0x28] sm:$0xff]
          %v2297 = vld [vmem:[%s293 + $0x30] sm:$0xff]
          %v2298 = vld [vmem:[%s293 + $0x38] sm:$0xff]
          %v2299 = vld [vmem:[%s293 + $0x40] sm:$0xff]
          %v2300 = vld [vmem:[%s293 + $0x48] sm:$0xff]
          %v2301 = vld [vmem:[%s293 + $0x50] sm:$0xff]
          %v2302 = vld [vmem:[%s293 + $0x58] sm:$0xff]
          %v2303 = vld [vmem:[%s293 + $0x60] sm:$0xff]
          %v2304 = vld [vmem:[%s293 + $0x68] sm:$0xf]
          %2306 = vset.pattern.permute.xlu0 0
          %2307 = vperm.xlu0 %2306, %v2291
          %v2308 = vpop.permute.xlu0 %2307
          %2311 = vset.pattern.permute.xlu0 0
          %2312 = vperm.xlu0 %2311, %v2292
          %v2313 = vpop.permute.xlu0 %2312
          %2316 = vset.pattern.permute.xlu0 0
          %2317 = vperm.xlu0 %2316, %v2293
          %v2318 = vpop.permute.xlu0 %2317
          %2321 = vset.pattern.permute.xlu0 0
          %2322 = vperm.xlu0 %2321, %v2294
          %v2323 = vpop.permute.xlu0 %2322
          %2326 = vset.pattern.permute.xlu0 0
          %2327 = vperm.xlu0 %2326, %v2295
          %v2328 = vpop.permute.xlu0 %2327
          %2331 = vset.pattern.permute.xlu0 0
          %2332 = vperm.xlu0 %2331, %v2296
          %v2333 = vpop.permute.xlu0 %2332
          %2336 = vset.pattern.permute.xlu0 0
          %2337 = vperm.xlu0 %2336, %v2297
          %v2338 = vpop.permute.xlu0 %2337
          %2341 = vset.pattern.permute.xlu0 0
          %2342 = vperm.xlu0 %2341, %v2298
          %v2343 = vpop.permute.xlu0 %2342
          %2346 = vset.pattern.permute.xlu0 0
          %2347 = vperm.xlu0 %2346, %v2299
          %v2348 = vpop.permute.xlu0 %2347
          %2351 = vset.pattern.permute.xlu0 0
          %2352 = vperm.xlu0 %2351, %v2300
          %v2353 = vpop.permute.xlu0 %2352
          %2356 = vset.pattern.permute.xlu0 0
          %2357 = vperm.xlu0 %2356, %v2301
          %v2358 = vpop.permute.xlu0 %2357
          %2361 = vset.pattern.permute.xlu0 0
          %2362 = vperm.xlu0 %2361, %v2302
          %v2363 = vpop.permute.xlu0 %2362
          %2366 = vset.pattern.permute.xlu0 0
          %2367 = vperm.xlu0 %2366, %v2303
          %v2368 = vpop.permute.xlu0 %2367
          %2371 = vset.pattern.permute.xlu0 0
          %2372 = vperm.xlu0 %2371, %v2304
          %v2373 = vpop.permute.xlu0 %2372
          %v2375 = vmul.f32 %v2263, %v2308
          %v2376 = vmul.f32 %v2264, %v2313
          %v2377 = vmul.f32 %v2265, %v2318
          %v2378 = vmul.f32 %v2266, %v2323
          %v2379 = vmul.f32 %v2267, %v2328
          %v2380 = vmul.f32 %v2268, %v2333
          %v2381 = vmul.f32 %v2269, %v2338
          %v2382 = vmul.f32 %v2270, %v2343
          %v2383 = vmul.f32 %v2271, %v2348
          %v2384 = vmul.f32 %v2272, %v2353
          %v2385 = vmul.f32 %v2273, %v2358
          %v2386 = vmul.f32 %v2274, %v2363
          %v2387 = vmul.f32 %v2275, %v2368
          %v2388 = vmul.f32 %v2276, %v2373
          %v2389 = vsel %vm2244, %v2375, 0.0
          %v2390 = vsel %vm2244, %v2376, 0.0
          %v2391 = vadd.f32 %v2389, %v2390
          %v2392 = vsel %vm2244, %v2377, 0.0
          %v2393 = vadd.f32 %v2391, %v2392
          %v2394 = vsel %vm2244, %v2378, 0.0
          %v2395 = vadd.f32 %v2393, %v2394
          %v2396 = vsel %vm2244, %v2379, 0.0
          %v2397 = vadd.f32 %v2395, %v2396
          %v2398 = vsel %vm2244, %v2380, 0.0
          %v2399 = vadd.f32 %v2397, %v2398
          %v2400 = vsel %vm2244, %v2381, 0.0
          %v2401 = vadd.f32 %v2399, %v2400
          %v2402 = vsel %vm2244, %v2382, 0.0
          %v2403 = vadd.f32 %v2401, %v2402
          %v2404 = vsel %vm2244, %v2383, 0.0
          %v2405 = vadd.f32 %v2403, %v2404
          %v2406 = vsel %vm2244, %v2384, 0.0
          %v2407 = vadd.f32 %v2405, %v2406
          %v2408 = vsel %vm2244, %v2385, 0.0
          %v2409 = vadd.f32 %v2407, %v2408
          %v2410 = vsel %vm2244, %v2386, 0.0
          %v2411 = vadd.f32 %v2409, %v2410
          %v2412 = vsel %vm2244, %v2387, 0.0
          %v2413 = vadd.f32 %v2411, %v2412
          %v2414 = vsel %vm2258, %v2388, 0.0
          %v2415 = vadd.f32 %v2413, %v2414
          %v2416 = vrot.slane %v2415, 4
          %v2417 = vadd.f32 %v2415, %v2416
          %v2418 = vrot.slane %v2417, 2
          %v2419 = vadd.f32 %v2417, %v2418
          %v2420 = vrot.slane %v2419, 1
          %v2421 = vadd.f32 %v2419, %v2420
          %vm2422 = vcmask 57344
          %2423 = vst.msk [vmem:[%s326] sm:$0x1] %vm2422, %v2421
          %v2424 = vmul.f32 %v2375, %v2263
          %v2425 = vmul.f32 %v2376, %v2264
          %v2426 = vmul.f32 %v2377, %v2265
          %v2427 = vmul.f32 %v2378, %v2266
          %v2428 = vmul.f32 %v2379, %v2267
          %v2429 = vmul.f32 %v2380, %v2268
          %v2430 = vmul.f32 %v2381, %v2269
          %v2431 = vmul.f32 %v2382, %v2270
          %v2432 = vmul.f32 %v2383, %v2271
          %v2433 = vmul.f32 %v2384, %v2272
          %v2434 = vmul.f32 %v2385, %v2273
          %v2435 = vmul.f32 %v2386, %v2274
          %v2436 = vmul.f32 %v2387, %v2275
          %v2437 = vmul.f32 %v2388, %v2276
          %v2438 = vsel %vm2244, %v2424, 0.0
          %v2439 = vsel %vm2244, %v2425, 0.0
          %v2440 = vadd.f32 %v2438, %v2439
          %v2441 = vsel %vm2244, %v2426, 0.0
          %v2442 = vadd.f32 %v2440, %v2441
          %v2443 = vsel %vm2244, %v2427, 0.0
          %v2444 = vadd.f32 %v2442, %v2443
          %v2445 = vsel %vm2244, %v2428, 0.0
          %v2446 = vadd.f32 %v2444, %v2445
          %v2447 = vsel %vm2244, %v2429, 0.0
          %v2448 = vadd.f32 %v2446, %v2447
          %v2449 = vsel %vm2244, %v2430, 0.0
          %v2450 = vadd.f32 %v2448, %v2449
          %v2451 = vsel %vm2244, %v2431, 0.0
          %v2452 = vadd.f32 %v2450, %v2451
          %v2453 = vsel %vm2244, %v2432, 0.0
          %v2454 = vadd.f32 %v2452, %v2453
          %v2455 = vsel %vm2244, %v2433, 0.0
          %v2456 = vadd.f32 %v2454, %v2455
          %v2457 = vsel %vm2244, %v2434, 0.0
          %v2458 = vadd.f32 %v2456, %v2457
          %v2459 = vsel %vm2244, %v2435, 0.0
          %v2460 = vadd.f32 %v2458, %v2459
          %v2461 = vsel %vm2244, %v2436, 0.0
          %v2462 = vadd.f32 %v2460, %v2461
          %v2463 = vsel %vm2258, %v2437, 0.0
          %v2464 = vadd.f32 %v2462, %v2463
          %v2465 = vrot.slane %v2464, 4
          %v2466 = vadd.f32 %v2464, %v2465
          %v2467 = vrot.slane %v2466, 2
          %v2468 = vadd.f32 %v2466, %v2467
          %v2469 = vrot.slane %v2468, 1
          %v2470 = vadd.f32 %v2468, %v2469
          %2471 = vst.msk [vmem:[%s332] sm:$0x1] %vm2422, %v2470
        $region52: #{mmseg_fcn_decoder_forward.2} parent=31 // pred_fallthru
          _
        %s2472 = sand.u32 %s127, 1
        %s2473 = scalar_lea.sflag [#allocation5], %s2472
        %s2474 = sand.u32 %s127, 1
        %s2475 = smul.addr %s2474, 112
        %s2476 = scalar_lea.vmem [#allocation9], %s2475
        %s2477 = sand.u32 %s27, 1
        %s2478 = scalar_lea.sflag [#allocation11], %s2477
        %s2479 = sand.u32 %s153, 1
        %s2480 = scalar_lea.vmem [#allocation10], %s2479
        %s2481 = sand.u32 %s27, 1
        %s2482 = scalar_lea.sflag [#allocation11], %s2481
        %s2483 = sand.u32 %s179, 1
        %s2484 = scalar_lea.vmem [#allocation12], %s2483
        // Predicated region
        $region53: #{mmseg_fcn_decoder_forward.2} parent=31 // pred_check
          %p2485 = pneg %p137
        $region54: #{mmseg_fcn_decoder_forward.2} parent=31 // pred_check_branch
          %2487 = sbr.rel (%p2485) target = $region56
        $region55: #{mmseg_fcn_decoder_forward.2} parent=31 // pred_region
          %s2489 = ssub.s32 1792, 1792
          %2490 = vsyncadd %s2473, %s2489
          %s2491 = smul.addr %s31, 14
          %s2492 = smul.addr %s2491, 128
          %s2493 = scalar_lea.hbm %s3, %s2492
          %s2494 = sshll.u32 %s2476, 4
          %s2495 = int_to_ptr.vmem [resolvable:$true] %s2494
          %2500 = dma.vmem_to_hbm [thread:$0]  %s2495, 1792, %s2493, %s2473, 128, 128, 8
        $region56: #{mmseg_fcn_decoder_forward.2} parent=31 // pred_fallthru
          _
        // Predicated region
        $region57: #{mmseg_fcn_decoder_forward.2} parent=31 // pred_check
          %p2501 = pneg %p163
        $region58: #{mmseg_fcn_decoder_forward.2} parent=31 // pred_check_branch
          %2503 = sbr.rel (%p2501) target = $region60
        $region59: #{mmseg_fcn_decoder_forward.2} parent=31 // pred_region
          %s2505 = ssub.s32 16, 16
          %2506 = vsyncadd %s2478, %s2505
          %s2507 = smul.addr %s31, 16
          %s2508 = scalar_lea.hbm %s4, %s2507
          %s2510 = sshll.u32 %s2480, 4
          %s2511 = int_to_ptr.vmem [resolvable:$true] %s2510
          %2513 = dma.vmem_to_hbm [thread:$0]  %s2511, 16, %s2508, %s2478
        $region60: #{mmseg_fcn_decoder_forward.2} parent=31 // pred_fallthru
          _
        // Predicated region
        $region61: #{mmseg_fcn_decoder_forward.2} parent=31 // pred_check
          %p2514 = pneg %p189
        $region62: #{mmseg_fcn_decoder_forward.2} parent=31 // pred_check_branch
          %2516 = sbr.rel (%p2514) target = $region64
        $region63: #{mmseg_fcn_decoder_forward.2} parent=31 // pred_region
          %s2518 = ssub.s32 16, 16
          %2519 = vsyncadd %s2482, %s2518
          %s2520 = smul.addr %s31, 16
          %s2521 = scalar_lea.hbm %s5, %s2520
          %s2523 = sshll.u32 %s2484, 4
          %s2524 = int_to_ptr.vmem [resolvable:$true] %s2523
          %2526 = dma.vmem_to_hbm [thread:$0]  %s2524, 16, %s2521, %s2482
        $region64: #{mmseg_fcn_decoder_forward.2} parent=31 // pred_fallthru
          _
      $region32: #{mmseg_fcn_decoder_forward.2} parent=5 // pred_fallthru
        _
      %p2527 = scmp.le.s32.totalorder 2, %s22
      // Predicated region
      $region65: #{mmseg_fcn_decoder_forward.2} parent=5 // pred_check
        %p2528 = pneg %p2527
      $region66: #{mmseg_fcn_decoder_forward.2} parent=5 // pred_check_branch
        %2530 = sbr.rel (%p2528) target = $region68
      $region67: #{mmseg_fcn_decoder_forward.2} parent=5 // pred_region
        %s2531 = ssub.s32 %s22, 2
        // Predicated region
        $region69: #{mmseg_fcn_decoder_forward.2} parent=67 // pred_check
          %p2532 = pneg %p143
        $region70: #{mmseg_fcn_decoder_forward.2} parent=67 // pred_check_branch
          %2534 = sbr.rel (%p2532) target = $region72
        $region71: #{mmseg_fcn_decoder_forward.2} parent=67 // pred_region
          %s2535 = sand.u32 %s128, 1
          %s2536 = scalar_lea.sflag [#allocation5], %s2535
          %s2537 = sand.u32 %s128, 1
          %s2538 = smul.addr %s2537, 112
          %s2539 = scalar_lea.vmem [#allocation9], %s2538
          %2540 = dma.done %s2536, 1792
        $region72: #{mmseg_fcn_decoder_forward.2} parent=67 // pred_fallthru
          _
        // Predicated region
        $region73: #{mmseg_fcn_decoder_forward.2} parent=67 // pred_check
          %p2541 = pneg %p169
        $region74: #{mmseg_fcn_decoder_forward.2} parent=67 // pred_check_branch
          %2543 = sbr.rel (%p2541) target = $region76
        $region75: #{mmseg_fcn_decoder_forward.2} parent=67 // pred_region
          %s2544 = sand.u32 %s28, 1
          %s2545 = scalar_lea.sflag [#allocation11], %s2544
          %s2546 = sand.u32 %s154, 1
          %s2547 = scalar_lea.vmem [#allocation10], %s2546
          %2548 = dma.done %s2545, 16
        $region76: #{mmseg_fcn_decoder_forward.2} parent=67 // pred_fallthru
          _
        // Predicated region
        $region77: #{mmseg_fcn_decoder_forward.2} parent=67 // pred_check
          %p2549 = pneg %p195
        $region78: #{mmseg_fcn_decoder_forward.2} parent=67 // pred_check_branch
          %2551 = sbr.rel (%p2549) target = $region80
        $region79: #{mmseg_fcn_decoder_forward.2} parent=67 // pred_region
          %s2552 = sand.u32 %s28, 1
          %s2553 = scalar_lea.sflag [#allocation11], %s2552
          %s2554 = sand.u32 %s180, 1
          %s2555 = scalar_lea.vmem [#allocation12], %s2554
          %2556 = dma.done %s2553, 16
        $region80: #{mmseg_fcn_decoder_forward.2} parent=67 // pred_fallthru
          _
      $region68: #{mmseg_fcn_decoder_forward.2} parent=5 // pred_fallthru
        _
    $region6: #{mmseg_fcn_decoder_forward.2} parent=1 // loop_footer
      %s26 = sadd.s32 1, %s22
    $region7: #{mmseg_fcn_decoder_forward.2} parent=1 // loop_footer_branch
      %21 = sbr.rel target = $region3
    $region8: #{mmseg_fcn_decoder_forward.2} parent=1 // loop_exit
      _
    %2557 = vsyncpa [#allocation4], 1
    %s2558 = scalar_lea.sflag [#allocation4], 1
    %2559 = vsyncpa %s2558, 1
    %2560 = vsyncpa [#allocation7], 1
    %2561 = vsyncpa [#allocation5], 1
    %s2562 = scalar_lea.sflag [#allocation5], 1
    %2563 = vsyncpa %s2562, 1
    %2564 = vsyncpa [#allocation11], 1
    %s2565 = scalar_lea.sflag [#allocation11], 1
    %2566 = vsyncpa %s2565, 1

</llo_original>
